<compile_context>
chip_gen: v5e
topology: v5e:2x2
jax: 0.10.0
libtpu: 0.0.40
codegen_flags: <defaults>
</compile_context>

<pallas_src>
import functools

import jax
import jax.numpy as jnp
import numpy as np
from jax import lax
from jax.experimental import pallas as pl
from jax.experimental.pallas import tpu as pltpu


# ----------------------------------------------------------------------------
# Fused Pallas kernel
# ----------------------------------------------------------------------------
def _fused_kernel(H, W, Cin, Chid, Cout, stride, TH, expand, use_res, *refs):
    """One grid point = (image n, output-row block r).

    Ref order (expand=True):
      x_p, w1, s1, b1, wdw, s2, b2, w3, s3, b3, out
    Ref order (expand=False):
      x_p,             wdw, s2, b2, w3, s3, b3, out

    x_p_ref : (1, Cin, H+4, W+4)   zero-padded image (revisited across r)
    w1_ref  : (Cin, Chid, 1, 1)    expand 1x1 weights  (broadcast-ready)
    wdw_ref : (5, 5, Chid, 1, 1)   depthwise taps      (broadcast-ready)
    w3_ref  : (Chid, Cout, 1, 1)   projection weights  (broadcast-ready)
    s*/b*   : (C, 1, 1)            folded BN scale / bias
    o_ref   : (1, Cout, TH*Wo)     lane-dense output row block
    """
    if expand:
        (xp_ref, w1_ref, s1_ref, b1_ref, wdw_ref, s2_ref, b2_ref,
         w3_ref, s3_ref, b3_ref, o_ref) = refs
    else:
        (xp_ref, wdw_ref, s2_ref, b2_ref,
         w3_ref, s3_ref, b3_ref, o_ref) = refs

    r = pl.program_id(1)
    Wp = W + 4
    Wo = (W + 4 - 5) // stride + 1
    HIN = (TH - 1) * stride + 5                      # padded rows this block needs
    row0 = pl.multiple_of(r * (TH * stride), TH * stride)

    # ---- per-block expand (1x1 conv + BN + ReLU); halo rows recomputed -------
    xs = xp_ref[0, :, pl.ds(row0, HIN), :]           # (Cin, HIN, Wp) f32
    if expand:
        # VPU broadcast-MACs over the tiny contracted dim (MXU would be <1% used).
        h = xs[0] * w1_ref[0]                        # (Chid, HIN, Wp)
        for ci in range(1, Cin):
            h = h + xs[ci] * w1_ref[ci]
        h = jnp.maximum(h * s1_ref[...] + b1_ref[...], 0.0)
        # The depthwise conv needs zeros in the 2-pixel halo, but ReLU(b1) != 0
        # there after BN -> mask it (no scratch, no conditional zero-fills).
        row_ids = row0 + lax.broadcasted_iota(jnp.int32, (1, HIN, Wp), 1)
        col_ids = lax.broadcasted_iota(jnp.int32, (1, HIN, Wp), 2)
        interior = ((row_ids >= 2) & (row_ids < H + 2) &
                    (col_ids >= 2) & (col_ids < W + 2))
        h = jnp.where(interior, h, 0.0)
    else:
        h = xs                                       # Chid == Cin; x_p already zero-padded

    # ---- depthwise 5x5 conv + BN + ReLU (25 unrolled VPU taps) ---------------
    # TODO(synk): roll-based lane shifts + parity pre-split (stride 2) -> XLU slot.
    acc = jnp.zeros((Chid, TH, Wo), jnp.float32)
    for di in range(5):
        h_di = lax.slice(h, (0, di, 0),
                         (Chid, di + (TH - 1) * stride + 1, Wp),
                         (1, stride, 1))             # (Chid, TH, Wp)
        for dj in range(5):
            win = lax.slice(h_di, (0, 0, dj),
                            (Chid, TH, dj + (Wo - 1) * stride + 1),
                            (1, 1, stride))          # (Chid, TH, Wo)
            acc = acc + win * wdw_ref[di, dj]
    act = jnp.maximum(acc * s2_ref[...] + b2_ref[...], 0.0)

    # ---- 1x1 projection + BN (+ residual), VPU broadcast-MACs ----------------
    y = act[0] * w3_ref[0]                           # (Cout, TH, Wo)
    for c in range(1, Chid):
        y = y + act[c] * w3_ref[c]
    y = y * s3_ref[...] + b3_ref[...]

    if use_res:  # static: stride == 1 and Cin == Cout  =>  Wo == W
        y = y + xp_ref[0, :, pl.ds(2 + r * TH, TH), 2:W + 2]

    # Lane-dense output block: the HBM writeback of this (Cout, TH*Wo) slab is
    # dense; rows are dropped in at static lane offsets (Mosaic-safe, avoids a
    # sublane->lane reshape).
    for i in range(TH):
        o_ref[0, :, i * Wo:(i + 1) * Wo] = y[:, i, :].astype(o_ref.dtype)


# ----------------------------------------------------------------------------
# Parameter init (deterministic, synthetic; BN folded to scale/bias)
# ----------------------------------------------------------------------------
def init_params(key, inp, outp, stride, expand_ratio):
    hidden = int(round(inp * expand_ratio))
    keys = jax.random.split(key, 15)

    def bn_fold(kg, kb, km, kv, c):
        gamma = 1.0 + 0.1 * jax.random.normal(kg, (c,), jnp.float32)
        beta = 0.1 * jax.random.normal(kb, (c,), jnp.float32)
        mean = 0.1 * jax.random.normal(km, (c,), jnp.float32)
        var = jnp.abs(jax.random.normal(kv, (c,), jnp.float32)) + 0.5
        scale = gamma / jnp.sqrt(var + 1e-5)
        bias = beta - mean * scale
        return scale.reshape(c, 1, 1), bias.reshape(c, 1, 1)

    p = dict(inp=inp, outp=outp, stride=stride,
             expand_ratio=expand_ratio, hidden=hidden)
    # expand 1x1: torch (hidden, inp, 1, 1) -> stored as (inp, hidden, 1, 1)
    p['w1'] = 0.3 * jax.random.normal(keys[0], (inp, hidden, 1, 1), jnp.float32)
    p['s1'], p['b1'] = bn_fold(keys[1], keys[2], keys[3], keys[4], hidden)
    # depthwise 5x5: torch (hidden, 1, 5, 5) -> stored as (5, 5, hidden, 1, 1)
    p['wdw'] = 0.3 * jax.random.normal(keys[5], (5, 5, hidden, 1, 1), jnp.float32)
    p['s2'], p['b2'] = bn_fold(keys[6], keys[7], keys[8], keys[9], hidden)
    # projection 1x1: torch (outp, hidden, 1, 1) -> stored as (hidden, outp, 1, 1)
    p['w3'] = 0.3 * jax.random.normal(keys[10], (hidden, outp, 1, 1), jnp.float32)
    p['s3'], p['b3'] = bn_fold(keys[11], keys[12], keys[13], keys[14], outp)
    return p


# ----------------------------------------------------------------------------
# Forward wrapper (public API stays NCHW to match the PyTorch module)
# ----------------------------------------------------------------------------
def invert_residual_forward(params, x_nchw):
    inp, outp = params['inp'], params['outp']
    stride, expand_ratio = params['stride'], params['expand_ratio']
    hidden = params['hidden']
    N, C, H, W = x_nchw.shape
    assert C == inp and stride in (1, 2)
    use_res = (stride == 1 and inp == outp)
    expand = (expand_ratio != 1)

    Ho = (H + 4 - 5) // stride + 1
    Wo = (W + 4 - 5) // stride + 1

    # Output-row tile: TH must divide Ho, and the flattened out-block lane
    # width TH*Wo must be a multiple of 128 (dense stores) unless the block is
    # the whole Ho*Wo extent.
    TH = Ho
    for cand in (8, 16, 4, 32, 2, 1):
        if Ho % cand == 0 and (cand * Wo) % 128 == 0:
            TH = cand
            break
    R = Ho // TH
    HIN = (TH - 1) * stride + 5

    # Zero-pad once host-side; the kernel masks the expand halo itself.
    x_p = jnp.pad(x_nchw.astype(jnp.float32), ((0, 0), (0, 0), (2, 2), (2, 2)))

    def _const_spec(shape):
        nd = len(shape)
        return pl.BlockSpec(shape, lambda n, r, _nd=nd: (0,) * _nd)

    # x_p block index ignores r -> DMA'd once per image, revisited across r.
    # TODO(synk): haloed row-strip BlockSpec for very large maps on v7x.
    in_specs = [pl.BlockSpec((1, inp, H + 4, W + 4), lambda n, r: (n, 0, 0, 0))]
    args = [x_p]
    if expand:
        in_specs += [_const_spec(params['w1'].shape),
                     _const_spec(params['s1'].shape),
                     _const_spec(params['b1'].shape)]
        args += [params['w1'], params['s1'], params['b1']]
    in_specs += [_const_spec(params['wdw'].shape),
                 _const_spec(params['s2'].shape),
                 _const_spec(params['b2'].shape),
                 _const_spec(params['w3'].shape),
                 _const_spec(params['s3'].shape),
                 _const_spec(params['b3'].shape)]
    args += [params['wdw'], params['s2'], params['b2'],
             params['w3'], params['s3'], params['b3']]

    # ---- generation-aware VMEM budget ----------------------------------------
    def _pad_bytes(shape):
        s = tuple(int(d) for d in shape)
        if len(s) < 2:
            s = (1,) * (2 - len(s)) + s
        lead = 1
        for d in s[:-2]:
            lead *= d
        return lead * (-(-s[-2] // 8) * 8) * (-(-s[-1] // 128) * 128) * 4

    vmem_est = (2 * (_pad_bytes((inp, H + 4, W + 4)) + _pad_bytes((outp, TH * Wo)))
                + 2 * sum(_pad_bytes(a.shape) for a in args[1:])
                + 4 * _pad_bytes((hidden, HIN, W + 4)))
    try:
        phys = int(getattr(pltpu.get_tpu_info(), "vmem_capacity_bytes", 128 << 20))
    except Exception:  # pragma: no cover - conservative fallback
        phys = 128 << 20
    cap = max(phys * 3 // 4, 16 << 20)        # ~48 MiB on v7x, ~96 MiB on v5e/v6e
    vmem_limit = int(min(max(2 * vmem_est, 8 << 20), cap))

    kernel = functools.partial(_fused_kernel, H, W, inp, hidden, outp,
                               stride, TH, expand, use_res)

    y = pl.pallas_call(
        kernel,
        out_shape=jax.ShapeDtypeStruct((N, outp, Ho * Wo), jnp.float32),
        grid=(N, R),
        in_specs=in_specs,
        out_specs=pl.BlockSpec((1, outp, TH * Wo), lambda n, r: (n, 0, r)),
        compiler_params=pltpu.CompilerParams(
            dimension_semantics=("parallel", "parallel"),
            vmem_limit_bytes=vmem_limit),
    )(*args)

    # Free reshape (no transpose): (N, Cout, Ho*Wo) -> NCHW.
    return y.reshape(N, outp, Ho, Wo)


# ----------------------------------------------------------------------------
# Pure-JAX reference (correctness check only)
# ----------------------------------------------------------------------------
def reference_forward(params, x_nchw):
    inp, outp = params['inp'], params['outp']
    stride, expand_ratio = params['stride'], params['expand_ratio']
    hidden = params['hidden']
    use_res = (stride == 1 and inp == outp)
    dn = ('NHWC', 'HWIO', 'NHWC')
    prec = lax.Precision.HIGHEST

    x = jnp.transpose(x_nchw, (0, 2, 3, 1)).astype(jnp.float32)
    h = x
    if expand_ratio != 1:
        h = lax.conv_general_dilated(
            x, params['w1'].reshape(1, 1, inp, hidden), (1, 1), 'VALID',
            dimension_numbers=dn, precision=prec)
        h = jnp.maximum(h * params['s1'].reshape(1, 1, 1, hidden)
                        + params['b1'].reshape(1, 1, 1, hidden), 0.0)
    d = lax.conv_general_dilated(
        h, params['wdw'].reshape(5, 5, 1, hidden), (stride, stride),
        ((2, 2), (2, 2)), dimension_numbers=dn, feature_group_count=hidden,
        precision=prec)
    d = jnp.maximum(d * params['s2'].reshape(1, 1, 1, hidden)
                    + params['b2'].reshape(1, 1, 1, hidden), 0.0)
    y = lax.conv_general_dilated(
        d, params['w3'].reshape(1, 1, hidden, outp), (1, 1), 'VALID',
        dimension_numbers=dn, precision=prec)
    y = (y * params['s3'].reshape(1, 1, 1, outp)
         + params['b3'].reshape(1, 1, 1, outp))
    if use_res:
        y = y + x
    return jnp.transpose(y, (0, 3, 1, 2))


# ----------------------------------------------------------------------------
if __name__ == "__main__":
    key = jax.random.PRNGKey(0)
    N, H, W = 2, 16, 16

    # (inp, outp, stride, expand_ratio):
    #   expand + residual, expand w/o residual, no-expand w/ residual.
    configs = [
        (4, 4, 1, 2),
        (4, 8, 1, 2),
        (8, 8, 1, 1),
    ]
    for inp, outp, stride, er in configs:
        kp, kx, key = jax.random.split(key, 3)
        params = init_params(kp, inp, outp, stride, er)
        x = jax.random.normal(kx, (N, inp, H, W), jnp.float32)

        out = jax.block_until_ready(invert_residual_forward(params, x))
        ref = jax.block_until_ready(reference_forward(params, x))
        assert out.shape == ref.shape
        np.testing.assert_allclose(np.asarray(out), np.asarray(ref),
                                   rtol=1e-4, atol=1e-4)
    print("KERNEL_OK")
</pallas_src>

<mosaic_0001>
module attributes {stable_mosaic.version = 11 : i64} {
  func.func @_fused_kernel(%arg0: i32, %arg1: i32, %arg2: memref<1x4x20x20xf32, #tpu.memory_space<vmem>>, %arg3: memref<4x8x1x1xf32, #tpu.memory_space<vmem>>, %arg4: memref<8x1x1xf32, #tpu.memory_space<vmem>>, %arg5: memref<8x1x1xf32, #tpu.memory_space<vmem>>, %arg6: memref<5x5x8x1x1xf32, #tpu.memory_space<vmem>>, %arg7: memref<8x1x1xf32, #tpu.memory_space<vmem>>, %arg8: memref<8x1x1xf32, #tpu.memory_space<vmem>>, %arg9: memref<8x4x1x1xf32, #tpu.memory_space<vmem>>, %arg10: memref<4x1x1xf32, #tpu.memory_space<vmem>>, %arg11: memref<4x1x1xf32, #tpu.memory_space<vmem>>, %arg12: memref<1x4x128xf32, #tpu.memory_space<vmem>>) attributes {dimension_semantics = [#tpu.dimension_semantics<parallel>, #tpu.dimension_semantics<parallel>], iteration_bounds = array<i64: 2, 2>, scalar_prefetch = 0 : i64, scratch_operands = 0 : i64, tpu.core_type = #tpu.core_type<tc>, window_params = [{transform_indices = @transform_0, window_bounds = array<i64: 1, 4, 20, 20>}, {pipeline_mode = #tpu.pipeline_mode<synchronous>, transform_indices = @transform_1, window_bounds = array<i64: 4, 8, 1, 1>}, {pipeline_mode = #tpu.pipeline_mode<synchronous>, transform_indices = @transform_2, window_bounds = array<i64: 8, 1, 1>}, {pipeline_mode = #tpu.pipeline_mode<synchronous>, transform_indices = @transform_3, window_bounds = array<i64: 8, 1, 1>}, {pipeline_mode = #tpu.pipeline_mode<synchronous>, transform_indices = @transform_4, window_bounds = array<i64: 5, 5, 8, 1, 1>}, {pipeline_mode = #tpu.pipeline_mode<synchronous>, transform_indices = @transform_5, window_bounds = array<i64: 8, 1, 1>}, {pipeline_mode = #tpu.pipeline_mode<synchronous>, transform_indices = @transform_6, window_bounds = array<i64: 8, 1, 1>}, {pipeline_mode = #tpu.pipeline_mode<synchronous>, transform_indices = @transform_7, window_bounds = array<i64: 8, 4, 1, 1>}, {pipeline_mode = #tpu.pipeline_mode<synchronous>, transform_indices = @transform_8, window_bounds = array<i64: 4, 1, 1>}, {pipeline_mode = #tpu.pipeline_mode<synchronous>, transform_indices = @transform_9, window_bounds = array<i64: 4, 1, 1>}, {transform_indices = @transform_10, window_bounds = array<i64: 1, 4, 128>}]} {
    %c8_i32 = arith.constant 8 : i32
    %0 = arith.muli %arg1, %c8_i32 : i32
    %1 = tpu.assume_multiple %0, 8 : i32
    %c0 = arith.constant 0 : index
    %c0_0 = arith.constant 0 : index
    %2 = arith.index_cast %1 : i32 to index
    %c0_1 = arith.constant 0 : index
    %3 = vector.load %arg2[%c0, %c0_0, %2, %c0_1] : memref<1x4x20x20xf32, #tpu.memory_space<vmem>>, vector<1x4x12x20xf32>
    %4 = vector.shape_cast %3 : vector<1x4x12x20xf32> to vector<4x12x20xf32>
    %5 = vector.extract_strided_slice %4 {offsets = [0, 0, 0], sizes = [1, 12, 20], strides = [1, 1, 1]} : vector<4x12x20xf32> to vector<1x12x20xf32>
    %6 = vector.shape_cast %5 : vector<1x12x20xf32> to vector<12x20xf32>
    %c0_2 = arith.constant 0 : index
    %c0_3 = arith.constant 0 : index
    %c0_4 = arith.constant 0 : index
    %c0_5 = arith.constant 0 : index
    %7 = vector.load %arg3[%c0_2, %c0_3, %c0_4, %c0_5] : memref<4x8x1x1xf32, #tpu.memory_space<vmem>>, vector<1x8x1x1xf32>
    %8 = vector.shape_cast %7 : vector<1x8x1x1xf32> to vector<8x1x1xf32>
    %9 = vector.shape_cast %6 : vector<12x20xf32> to vector<1x12x20xf32>
    %10 = vector.broadcast %9 : vector<1x12x20xf32> to vector<8x12x20xf32>
    %11 = vector.broadcast %8 : vector<8x1x1xf32> to vector<8x12x20xf32>
    %12 = arith.mulf %10, %11 : vector<8x12x20xf32>
    %13 = vector.extract_strided_slice %4 {offsets = [1, 0, 0], sizes = [1, 12, 20], strides = [1, 1, 1]} : vector<4x12x20xf32> to vector<1x12x20xf32>
    %14 = vector.shape_cast %13 : vector<1x12x20xf32> to vector<12x20xf32>
    %c1 = arith.constant 1 : index
    %c0_6 = arith.constant 0 : index
    %c0_7 = arith.constant 0 : index
    %c0_8 = arith.constant 0 : index
    %15 = vector.load %arg3[%c1, %c0_6, %c0_7, %c0_8] : memref<4x8x1x1xf32, #tpu.memory_space<vmem>>, vector<1x8x1x1xf32>
    %16 = vector.shape_cast %15 : vector<1x8x1x1xf32> to vector<8x1x1xf32>
    %17 = vector.shape_cast %14 : vector<12x20xf32> to vector<1x12x20xf32>
    %18 = vector.broadcast %17 : vector<1x12x20xf32> to vector<8x12x20xf32>
    %19 = vector.broadcast %16 : vector<8x1x1xf32> to vector<8x12x20xf32>
    %20 = arith.mulf %18, %19 : vector<8x12x20xf32>
    %21 = arith.addf %12, %20 : vector<8x12x20xf32>
    %22 = vector.extract_strided_slice %4 {offsets = [2, 0, 0], sizes = [1, 12, 20], strides = [1, 1, 1]} : vector<4x12x20xf32> to vector<1x12x20xf32>
    %23 = vector.shape_cast %22 : vector<1x12x20xf32> to vector<12x20xf32>
    %c2 = arith.constant 2 : index
    %c0_9 = arith.constant 0 : index
    %c0_10 = arith.constant 0 : index
    %c0_11 = arith.constant 0 : index
    %24 = vector.load %arg3[%c2, %c0_9, %c0_10, %c0_11] : memref<4x8x1x1xf32, #tpu.memory_space<vmem>>, vector<1x8x1x1xf32>
    %25 = vector.shape_cast %24 : vector<1x8x1x1xf32> to vector<8x1x1xf32>
    %26 = vector.shape_cast %23 : vector<12x20xf32> to vector<1x12x20xf32>
    %27 = vector.broadcast %26 : vector<1x12x20xf32> to vector<8x12x20xf32>
    %28 = vector.broadcast %25 : vector<8x1x1xf32> to vector<8x12x20xf32>
    %29 = arith.mulf %27, %28 : vector<8x12x20xf32>
    %30 = arith.addf %21, %29 : vector<8x12x20xf32>
    %31 = vector.extract_strided_slice %4 {offsets = [3, 0, 0], sizes = [1, 12, 20], strides = [1, 1, 1]} : vector<4x12x20xf32> to vector<1x12x20xf32>
    %32 = vector.shape_cast %31 : vector<1x12x20xf32> to vector<12x20xf32>
    %c3 = arith.constant 3 : index
    %c0_12 = arith.constant 0 : index
    %c0_13 = arith.constant 0 : index
    %c0_14 = arith.constant 0 : index
    %33 = vector.load %arg3[%c3, %c0_12, %c0_13, %c0_14] : memref<4x8x1x1xf32, #tpu.memory_space<vmem>>, vector<1x8x1x1xf32>
    %34 = vector.shape_cast %33 : vector<1x8x1x1xf32> to vector<8x1x1xf32>
    %35 = vector.shape_cast %32 : vector<12x20xf32> to vector<1x12x20xf32>
    %36 = vector.broadcast %35 : vector<1x12x20xf32> to vector<8x12x20xf32>
    %37 = vector.broadcast %34 : vector<8x1x1xf32> to vector<8x12x20xf32>
    %38 = arith.mulf %36, %37 : vector<8x12x20xf32>
    %39 = arith.addf %30, %38 : vector<8x12x20xf32>
    %c0_15 = arith.constant 0 : index
    %c0_16 = arith.constant 0 : index
    %c0_17 = arith.constant 0 : index
    %40 = vector.load %arg4[%c0_15, %c0_16, %c0_17] : memref<8x1x1xf32, #tpu.memory_space<vmem>>, vector<8x1x1xf32>
    %41 = vector.broadcast %40 : vector<8x1x1xf32> to vector<8x12x20xf32>
    %42 = arith.mulf %39, %41 : vector<8x12x20xf32>
    %c0_18 = arith.constant 0 : index
    %c0_19 = arith.constant 0 : index
    %c0_20 = arith.constant 0 : index
    %43 = vector.load %arg5[%c0_18, %c0_19, %c0_20] : memref<8x1x1xf32, #tpu.memory_space<vmem>>, vector<8x1x1xf32>
    %44 = vector.broadcast %43 : vector<8x1x1xf32> to vector<8x12x20xf32>
    %45 = arith.addf %42, %44 : vector<8x12x20xf32>
    %cst = arith.constant 0.000000e+00 : f32
    %46 = vector.broadcast %cst : f32 to vector<8x12x20xf32>
    %47 = arith.maximumf %45, %46 : vector<8x12x20xf32>
    %48 = tpu.iota {dimensions = array<i32: 1>} : vector<1x12x20xi32>
    %49 = vector.broadcast %1 : i32 to vector<1x12x20xi32>
    %50 = arith.addi %49, %48 : vector<1x12x20xi32>
    %51 = tpu.iota {dimensions = array<i32: 2>} : vector<1x12x20xi32>
    %c2_i32 = arith.constant 2 : i32
    %52 = vector.broadcast %c2_i32 : i32 to vector<1x12x20xi32>
    %53 = arith.cmpi sge, %50, %52 : vector<1x12x20xi32>
    %c18_i32 = arith.constant 18 : i32
    %54 = vector.broadcast %c18_i32 : i32 to vector<1x12x20xi32>
    %55 = arith.cmpi slt, %50, %54 : vector<1x12x20xi32>
    %56 = arith.andi %53, %55 : vector<1x12x20xi1>
    %c2_i32_21 = arith.constant 2 : i32
    %57 = vector.broadcast %c2_i32_21 : i32 to vector<1x12x20xi32>
    %58 = arith.cmpi sge, %51, %57 : vector<1x12x20xi32>
    %59 = arith.andi %56, %58 : vector<1x12x20xi1>
    %c18_i32_22 = arith.constant 18 : i32
    %60 = vector.broadcast %c18_i32_22 : i32 to vector<1x12x20xi32>
    %61 = arith.cmpi slt, %51, %60 : vector<1x12x20xi32>
    %62 = arith.andi %59, %61 : vector<1x12x20xi1>
    %cst_23 = arith.constant 0.000000e+00 : f32
    %63 = vector.shape_cast %62 : vector<1x12x20xi1> to vector<1x12x20xi1>
    %64 = vector.broadcast %63 : vector<1x12x20xi1> to vector<8x12x20xi1>
    %65 = vector.broadcast %cst_23 : f32 to vector<8x12x20xf32>
    %66 = arith.select %64, %47, %65 : vector<8x12x20xi1>, vector<8x12x20xf32>
    %cst_24 = arith.constant 0.000000e+00 : f32
    %67 = vector.broadcast %cst_24 : f32 to vector<8x8x16xf32>
    %68 = vector.extract_strided_slice %66 {offsets = [0, 0, 0], sizes = [8, 8, 20], strides = [1, 1, 1]} : vector<8x12x20xf32> to vector<8x8x20xf32>
    %69 = vector.extract_strided_slice %68 {offsets = [0, 0, 0], sizes = [8, 8, 16], strides = [1, 1, 1]} : vector<8x8x20xf32> to vector<8x8x16xf32>
    %c0_25 = arith.constant 0 : index
    %c0_26 = arith.constant 0 : index
    %c0_27 = arith.constant 0 : index
    %c0_28 = arith.constant 0 : index
    %c0_29 = arith.constant 0 : index
    %70 = vector.load %arg6[%c0_25, %c0_26, %c0_27, %c0_28, %c0_29] : memref<5x5x8x1x1xf32, #tpu.memory_space<vmem>>, vector<1x1x8x1x1xf32>
    %71 = vector.shape_cast %70 : vector<1x1x8x1x1xf32> to vector<8x1x1xf32>
    %72 = vector.broadcast %71 : vector<8x1x1xf32> to vector<8x8x16xf32>
    %73 = arith.mulf %69, %72 : vector<8x8x16xf32>
    %74 = arith.addf %67, %73 : vector<8x8x16xf32>
    %75 = vector.extract_strided_slice %68 {offsets = [0, 0, 1], sizes = [8, 8, 16], strides = [1, 1, 1]} : vector<8x8x20xf32> to vector<8x8x16xf32>
    %c0_30 = arith.constant 0 : index
    %c1_31 = arith.constant 1 : index
    %c0_32 = arith.constant 0 : index
    %c0_33 = arith.constant 0 : index
    %c0_34 = arith.constant 0 : index
    %76 = vector.load %arg6[%c0_30, %c1_31, %c0_32, %c0_33, %c0_34] : memref<5x5x8x1x1xf32, #tpu.memory_space<vmem>>, vector<1x1x8x1x1xf32>
    %77 = vector.shape_cast %76 : vector<1x1x8x1x1xf32> to vector<8x1x1xf32>
    %78 = vector.broadcast %77 : vector<8x1x1xf32> to vector<8x8x16xf32>
    %79 = arith.mulf %75, %78 : vector<8x8x16xf32>
    %80 = arith.addf %74, %79 : vector<8x8x16xf32>
    %81 = vector.extract_strided_slice %68 {offsets = [0, 0, 2], sizes = [8, 8, 16], strides = [1, 1, 1]} : vector<8x8x20xf32> to vector<8x8x16xf32>
    %c0_35 = arith.constant 0 : index
    %c2_36 = arith.constant 2 : index
    %c0_37 = arith.constant 0 : index
    %c0_38 = arith.constant 0 : index
    %c0_39 = arith.constant 0 : index
    %82 = vector.load %arg6[%c0_35, %c2_36, %c0_37, %c0_38, %c0_39] : memref<5x5x8x1x1xf32, #tpu.memory_space<vmem>>, vector<1x1x8x1x1xf32>
    %83 = vector.shape_cast %82 : vector<1x1x8x1x1xf32> to vector<8x1x1xf32>
    %84 = vector.broadcast %83 : vector<8x1x1xf32> to vector<8x8x16xf32>
    %85 = arith.mulf %81, %84 : vector<8x8x16xf32>
    %86 = arith.addf %80, %85 : vector<8x8x16xf32>
    %87 = vector.extract_strided_slice %68 {offsets = [0, 0, 3], sizes = [8, 8, 16], strides = [1, 1, 1]} : vector<8x8x20xf32> to vector<8x8x16xf32>
    %c0_40 = arith.constant 0 : index
    %c3_41 = arith.constant 3 : index
    %c0_42 = arith.constant 0 : index
    %c0_43 = arith.constant 0 : index
    %c0_44 = arith.constant 0 : index
    %88 = vector.load %arg6[%c0_40, %c3_41, %c0_42, %c0_43, %c0_44] : memref<5x5x8x1x1xf32, #tpu.memory_space<vmem>>, vector<1x1x8x1x1xf32>
    %89 = vector.shape_cast %88 : vector<1x1x8x1x1xf32> to vector<8x1x1xf32>
    %90 = vector.broadcast %89 : vector<8x1x1xf32> to vector<8x8x16xf32>
    %91 = arith.mulf %87, %90 : vector<8x8x16xf32>
    %92 = arith.addf %86, %91 : vector<8x8x16xf32>
    %93 = vector.extract_strided_slice %68 {offsets = [0, 0, 4], sizes = [8, 8, 16], strides = [1, 1, 1]} : vector<8x8x20xf32> to vector<8x8x16xf32>
    %c0_45 = arith.constant 0 : index
    %c4 = arith.constant 4 : index
    %c0_46 = arith.constant 0 : index
    %c0_47 = arith.constant 0 : index
    %c0_48 = arith.constant 0 : index
    %94 = vector.load %arg6[%c0_45, %c4, %c0_46, %c0_47, %c0_48] : memref<5x5x8x1x1xf32, #tpu.memory_space<vmem>>, vector<1x1x8x1x1xf32>
    %95 = vector.shape_cast %94 : vector<1x1x8x1x1xf32> to vector<8x1x1xf32>
    %96 = vector.broadcast %95 : vector<8x1x1xf32> to vector<8x8x16xf32>
    %97 = arith.mulf %93, %96 : vector<8x8x16xf32>
    %98 = arith.addf %92, %97 : vector<8x8x16xf32>
    %99 = vector.extract_strided_slice %66 {offsets = [0, 1, 0], sizes = [8, 8, 20], strides = [1, 1, 1]} : vector<8x12x20xf32> to vector<8x8x20xf32>
    %100 = vector.extract_strided_slice %99 {offsets = [0, 0, 0], sizes = [8, 8, 16], strides = [1, 1, 1]} : vector<8x8x20xf32> to vector<8x8x16xf32>
    %c1_49 = arith.constant 1 : index
    %c0_50 = arith.constant 0 : index
    %c0_51 = arith.constant 0 : index
    %c0_52 = arith.constant 0 : index
    %c0_53 = arith.constant 0 : index
    %101 = vector.load %arg6[%c1_49, %c0_50, %c0_51, %c0_52, %c0_53] : memref<5x5x8x1x1xf32, #tpu.memory_space<vmem>>, vector<1x1x8x1x1xf32>
    %102 = vector.shape_cast %101 : vector<1x1x8x1x1xf32> to vector<8x1x1xf32>
    %103 = vector.broadcast %102 : vector<8x1x1xf32> to vector<8x8x16xf32>
    %104 = arith.mulf %100, %103 : vector<8x8x16xf32>
    %105 = arith.addf %98, %104 : vector<8x8x16xf32>
    %106 = vector.extract_strided_slice %99 {offsets = [0, 0, 1], sizes = [8, 8, 16], strides = [1, 1, 1]} : vector<8x8x20xf32> to vector<8x8x16xf32>
    %c1_54 = arith.constant 1 : index
    %c1_55 = arith.constant 1 : index
    %c0_56 = arith.constant 0 : index
    %c0_57 = arith.constant 0 : index
    %c0_58 = arith.constant 0 : index
    %107 = vector.load %arg6[%c1_54, %c1_55, %c0_56, %c0_57, %c0_58] : memref<5x5x8x1x1xf32, #tpu.memory_space<vmem>>, vector<1x1x8x1x1xf32>
    %108 = vector.shape_cast %107 : vector<1x1x8x1x1xf32> to vector<8x1x1xf32>
    %109 = vector.broadcast %108 : vector<8x1x1xf32> to vector<8x8x16xf32>
    %110 = arith.mulf %106, %109 : vector<8x8x16xf32>
    %111 = arith.addf %105, %110 : vector<8x8x16xf32>
    %112 = vector.extract_strided_slice %99 {offsets = [0, 0, 2], sizes = [8, 8, 16], strides = [1, 1, 1]} : vector<8x8x20xf32> to vector<8x8x16xf32>
    %c1_59 = arith.constant 1 : index
    %c2_60 = arith.constant 2 : index
    %c0_61 = arith.constant 0 : index
    %c0_62 = arith.constant 0 : index
    %c0_63 = arith.constant 0 : index
    %113 = vector.load %arg6[%c1_59, %c2_60, %c0_61, %c0_62, %c0_63] : memref<5x5x8x1x1xf32, #tpu.memory_space<vmem>>, vector<1x1x8x1x1xf32>
    %114 = vector.shape_cast %113 : vector<1x1x8x1x1xf32> to vector<8x1x1xf32>
    %115 = vector.broadcast %114 : vector<8x1x1xf32> to vector<8x8x16xf32>
    %116 = arith.mulf %112, %115 : vector<8x8x16xf32>
    %117 = arith.addf %111, %116 : vector<8x8x16xf32>
    %118 = vector.extract_strided_slice %99 {offsets = [0, 0, 3], sizes = [8, 8, 16], strides = [1, 1, 1]} : vector<8x8x20xf32> to vector<8x8x16xf32>
    %c1_64 = arith.constant 1 : index
    %c3_65 = arith.constant 3 : index
    %c0_66 = arith.constant 0 : index
    %c0_67 = arith.constant 0 : index
    %c0_68 = arith.constant 0 : index
    %119 = vector.load %arg6[%c1_64, %c3_65, %c0_66, %c0_67, %c0_68] : memref<5x5x8x1x1xf32, #tpu.memory_space<vmem>>, vector<1x1x8x1x1xf32>
    %120 = vector.shape_cast %119 : vector<1x1x8x1x1xf32> to vector<8x1x1xf32>
    %121 = vector.broadcast %120 : vector<8x1x1xf32> to vector<8x8x16xf32>
    %122 = arith.mulf %118, %121 : vector<8x8x16xf32>
    %123 = arith.addf %117, %122 : vector<8x8x16xf32>
    %124 = vector.extract_strided_slice %99 {offsets = [0, 0, 4], sizes = [8, 8, 16], strides = [1, 1, 1]} : vector<8x8x20xf32> to vector<8x8x16xf32>
    %c1_69 = arith.constant 1 : index
    %c4_70 = arith.constant 4 : index
    %c0_71 = arith.constant 0 : index
    %c0_72 = arith.constant 0 : index
    %c0_73 = arith.constant 0 : index
    %125 = vector.load %arg6[%c1_69, %c4_70, %c0_71, %c0_72, %c0_73] : memref<5x5x8x1x1xf32, #tpu.memory_space<vmem>>, vector<1x1x8x1x1xf32>
    %126 = vector.shape_cast %125 : vector<1x1x8x1x1xf32> to vector<8x1x1xf32>
    %127 = vector.broadcast %126 : vector<8x1x1xf32> to vector<8x8x16xf32>
    %128 = arith.mulf %124, %127 : vector<8x8x16xf32>
    %129 = arith.addf %123, %128 : vector<8x8x16xf32>
    %130 = vector.extract_strided_slice %66 {offsets = [0, 2, 0], sizes = [8, 8, 20], strides = [1, 1, 1]} : vector<8x12x20xf32> to vector<8x8x20xf32>
    %131 = vector.extract_strided_slice %130 {offsets = [0, 0, 0], sizes = [8, 8, 16], strides = [1, 1, 1]} : vector<8x8x20xf32> to vector<8x8x16xf32>
    %c2_74 = arith.constant 2 : index
    %c0_75 = arith.constant 0 : index
    %c0_76 = arith.constant 0 : index
    %c0_77 = arith.constant 0 : index
    %c0_78 = arith.constant 0 : index
    %132 = vector.load %arg6[%c2_74, %c0_75, %c0_76, %c0_77, %c0_78] : memref<5x5x8x1x1xf32, #tpu.memory_space<vmem>>, vector<1x1x8x1x1xf32>
    %133 = vector.shape_cast %132 : vector<1x1x8x1x1xf32> to vector<8x1x1xf32>
    %134 = vector.broadcast %133 : vector<8x1x1xf32> to vector<8x8x16xf32>
    %135 = arith.mulf %131, %134 : vector<8x8x16xf32>
    %136 = arith.addf %129, %135 : vector<8x8x16xf32>
    %137 = vector.extract_strided_slice %130 {offsets = [0, 0, 1], sizes = [8, 8, 16], strides = [1, 1, 1]} : vector<8x8x20xf32> to vector<8x8x16xf32>
    %c2_79 = arith.constant 2 : index
    %c1_80 = arith.constant 1 : index
    %c0_81 = arith.constant 0 : index
    %c0_82 = arith.constant 0 : index
    %c0_83 = arith.constant 0 : index
    %138 = vector.load %arg6[%c2_79, %c1_80, %c0_81, %c0_82, %c0_83] : memref<5x5x8x1x1xf32, #tpu.memory_space<vmem>>, vector<1x1x8x1x1xf32>
    %139 = vector.shape_cast %138 : vector<1x1x8x1x1xf32> to vector<8x1x1xf32>
    %140 = vector.broadcast %139 : vector<8x1x1xf32> to vector<8x8x16xf32>
    %141 = arith.mulf %137, %140 : vector<8x8x16xf32>
    %142 = arith.addf %136, %141 : vector<8x8x16xf32>
    %143 = vector.extract_strided_slice %130 {offsets = [0, 0, 2], sizes = [8, 8, 16], strides = [1, 1, 1]} : vector<8x8x20xf32> to vector<8x8x16xf32>
    %c2_84 = arith.constant 2 : index
    %c2_85 = arith.constant 2 : index
    %c0_86 = arith.constant 0 : index
    %c0_87 = arith.constant 0 : index
    %c0_88 = arith.constant 0 : index
    %144 = vector.load %arg6[%c2_84, %c2_85, %c0_86, %c0_87, %c0_88] : memref<5x5x8x1x1xf32, #tpu.memory_space<vmem>>, vector<1x1x8x1x1xf32>
    %145 = vector.shape_cast %144 : vector<1x1x8x1x1xf32> to vector<8x1x1xf32>
    %146 = vector.broadcast %145 : vector<8x1x1xf32> to vector<8x8x16xf32>
    %147 = arith.mulf %143, %146 : vector<8x8x16xf32>
    %148 = arith.addf %142, %147 : vector<8x8x16xf32>
    %149 = vector.extract_strided_slice %130 {offsets = [0, 0, 3], sizes = [8, 8, 16], strides = [1, 1, 1]} : vector<8x8x20xf32> to vector<8x8x16xf32>
    %c2_89 = arith.constant 2 : index
    %c3_90 = arith.constant 3 : index
    %c0_91 = arith.constant 0 : index
    %c0_92 = arith.constant 0 : index
    %c0_93 = arith.constant 0 : index
    %150 = vector.load %arg6[%c2_89, %c3_90, %c0_91, %c0_92, %c0_93] : memref<5x5x8x1x1xf32, #tpu.memory_space<vmem>>, vector<1x1x8x1x1xf32>
    %151 = vector.shape_cast %150 : vector<1x1x8x1x1xf32> to vector<8x1x1xf32>
    %152 = vector.broadcast %151 : vector<8x1x1xf32> to vector<8x8x16xf32>
    %153 = arith.mulf %149, %152 : vector<8x8x16xf32>
    %154 = arith.addf %148, %153 : vector<8x8x16xf32>
    %155 = vector.extract_strided_slice %130 {offsets = [0, 0, 4], sizes = [8, 8, 16], strides = [1, 1, 1]} : vector<8x8x20xf32> to vector<8x8x16xf32>
    %c2_94 = arith.constant 2 : index
    %c4_95 = arith.constant 4 : index
    %c0_96 = arith.constant 0 : index
    %c0_97 = arith.constant 0 : index
    %c0_98 = arith.constant 0 : index
    %156 = vector.load %arg6[%c2_94, %c4_95, %c0_96, %c0_97, %c0_98] : memref<5x5x8x1x1xf32, #tpu.memory_space<vmem>>, vector<1x1x8x1x1xf32>
    %157 = vector.shape_cast %156 : vector<1x1x8x1x1xf32> to vector<8x1x1xf32>
    %158 = vector.broadcast %157 : vector<8x1x1xf32> to vector<8x8x16xf32>
    %159 = arith.mulf %155, %158 : vector<8x8x16xf32>
    %160 = arith.addf %154, %159 : vector<8x8x16xf32>
    %161 = vector.extract_strided_slice %66 {offsets = [0, 3, 0], sizes = [8, 8, 20], strides = [1, 1, 1]} : vector<8x12x20xf32> to vector<8x8x20xf32>
    %162 = vector.extract_strided_slice %161 {offsets = [0, 0, 0], sizes = [8, 8, 16], strides = [1, 1, 1]} : vector<8x8x20xf32> to vector<8x8x16xf32>
    %c3_99 = arith.constant 3 : index
    %c0_100 = arith.constant 0 : index
    %c0_101 = arith.constant 0 : index
    %c0_102 = arith.constant 0 : index
    %c0_103 = arith.constant 0 : index
    %163 = vector.load %arg6[%c3_99, %c0_100, %c0_101, %c0_102, %c0_103] : memref<5x5x8x1x1xf32, #tpu.memory_space<vmem>>, vector<1x1x8x1x1xf32>
    %164 = vector.shape_cast %163 : vector<1x1x8x1x1xf32> to vector<8x1x1xf32>
    %165 = vector.broadcast %164 : vector<8x1x1xf32> to vector<8x8x16xf32>
    %166 = arith.mulf %162, %165 : vector<8x8x16xf32>
    %167 = arith.addf %160, %166 : vector<8x8x16xf32>
    %168 = vector.extract_strided_slice %161 {offsets = [0, 0, 1], sizes = [8, 8, 16], strides = [1, 1, 1]} : vector<8x8x20xf32> to vector<8x8x16xf32>
    %c3_104 = arith.constant 3 : index
    %c1_105 = arith.constant 1 : index
    %c0_106 = arith.constant 0 : index
    %c0_107 = arith.constant 0 : index
    %c0_108 = arith.constant 0 : index
    %169 = vector.load %arg6[%c3_104, %c1_105, %c0_106, %c0_107, %c0_108] : memref<5x5x8x1x1xf32, #tpu.memory_space<vmem>>, vector<1x1x8x1x1xf32>
    %170 = vector.shape_cast %169 : vector<1x1x8x1x1xf32> to vector<8x1x1xf32>
    %171 = vector.broadcast %170 : vector<8x1x1xf32> to vector<8x8x16xf32>
    %172 = arith.mulf %168, %171 : vector<8x8x16xf32>
    %173 = arith.addf %167, %172 : vector<8x8x16xf32>
    %174 = vector.extract_strided_slice %161 {offsets = [0, 0, 2], sizes = [8, 8, 16], strides = [1, 1, 1]} : vector<8x8x20xf32> to vector<8x8x16xf32>
    %c3_109 = arith.constant 3 : index
    %c2_110 = arith.constant 2 : index
    %c0_111 = arith.constant 0 : index
    %c0_112 = arith.constant 0 : index
    %c0_113 = arith.constant 0 : index
    %175 = vector.load %arg6[%c3_109, %c2_110, %c0_111, %c0_112, %c0_113] : memref<5x5x8x1x1xf32, #tpu.memory_space<vmem>>, vector<1x1x8x1x1xf32>
    %176 = vector.shape_cast %175 : vector<1x1x8x1x1xf32> to vector<8x1x1xf32>
    %177 = vector.broadcast %176 : vector<8x1x1xf32> to vector<8x8x16xf32>
    %178 = arith.mulf %174, %177 : vector<8x8x16xf32>
    %179 = arith.addf %173, %178 : vector<8x8x16xf32>
    %180 = vector.extract_strided_slice %161 {offsets = [0, 0, 3], sizes = [8, 8, 16], strides = [1, 1, 1]} : vector<8x8x20xf32> to vector<8x8x16xf32>
    %c3_114 = arith.constant 3 : index
    %c3_115 = arith.constant 3 : index
    %c0_116 = arith.constant 0 : index
    %c0_117 = arith.constant 0 : index
    %c0_118 = arith.constant 0 : index
    %181 = vector.load %arg6[%c3_114, %c3_115, %c0_116, %c0_117, %c0_118] : memref<5x5x8x1x1xf32, #tpu.memory_space<vmem>>, vector<1x1x8x1x1xf32>
    %182 = vector.shape_cast %181 : vector<1x1x8x1x1xf32> to vector<8x1x1xf32>
    %183 = vector.broadcast %182 : vector<8x1x1xf32> to vector<8x8x16xf32>
    %184 = arith.mulf %180, %183 : vector<8x8x16xf32>
    %185 = arith.addf %179, %184 : vector<8x8x16xf32>
    %186 = vector.extract_strided_slice %161 {offsets = [0, 0, 4], sizes = [8, 8, 16], strides = [1, 1, 1]} : vector<8x8x20xf32> to vector<8x8x16xf32>
    %c3_119 = arith.constant 3 : index
    %c4_120 = arith.constant 4 : index
    %c0_121 = arith.constant 0 : index
    %c0_122 = arith.constant 0 : index
    %c0_123 = arith.constant 0 : index
    %187 = vector.load %arg6[%c3_119, %c4_120, %c0_121, %c0_122, %c0_123] : memref<5x5x8x1x1xf32, #tpu.memory_space<vmem>>, vector<1x1x8x1x1xf32>
    %188 = vector.shape_cast %187 : vector<1x1x8x1x1xf32> to vector<8x1x1xf32>
    %189 = vector.broadcast %188 : vector<8x1x1xf32> to vector<8x8x16xf32>
    %190 = arith.mulf %186, %189 : vector<8x8x16xf32>
    %191 = arith.addf %185, %190 : vector<8x8x16xf32>
    %192 = vector.extract_strided_slice %66 {offsets = [0, 4, 0], sizes = [8, 8, 20], strides = [1, 1, 1]} : vector<8x12x20xf32> to vector<8x8x20xf32>
    %193 = vector.extract_strided_slice %192 {offsets = [0, 0, 0], sizes = [8, 8, 16], strides = [1, 1, 1]} : vector<8x8x20xf32> to vector<8x8x16xf32>
    %c4_124 = arith.constant 4 : index
    %c0_125 = arith.constant 0 : index
    %c0_126 = arith.constant 0 : index
    %c0_127 = arith.constant 0 : index
    %c0_128 = arith.constant 0 : index
    %194 = vector.load %arg6[%c4_124, %c0_125, %c0_126, %c0_127, %c0_128] : memref<5x5x8x1x1xf32, #tpu.memory_space<vmem>>, vector<1x1x8x1x1xf32>
    %195 = vector.shape_cast %194 : vector<1x1x8x1x1xf32> to vector<8x1x1xf32>
    %196 = vector.broadcast %195 : vector<8x1x1xf32> to vector<8x8x16xf32>
    %197 = arith.mulf %193, %196 : vector<8x8x16xf32>
    %198 = arith.addf %191, %197 : vector<8x8x16xf32>
    %199 = vector.extract_strided_slice %192 {offsets = [0, 0, 1], sizes = [8, 8, 16], strides = [1, 1, 1]} : vector<8x8x20xf32> to vector<8x8x16xf32>
    %c4_129 = arith.constant 4 : index
    %c1_130 = arith.constant 1 : index
    %c0_131 = arith.constant 0 : index
    %c0_132 = arith.constant 0 : index
    %c0_133 = arith.constant 0 : index
    %200 = vector.load %arg6[%c4_129, %c1_130, %c0_131, %c0_132, %c0_133] : memref<5x5x8x1x1xf32, #tpu.memory_space<vmem>>, vector<1x1x8x1x1xf32>
    %201 = vector.shape_cast %200 : vector<1x1x8x1x1xf32> to vector<8x1x1xf32>
    %202 = vector.broadcast %201 : vector<8x1x1xf32> to vector<8x8x16xf32>
    %203 = arith.mulf %199, %202 : vector<8x8x16xf32>
    %204 = arith.addf %198, %203 : vector<8x8x16xf32>
    %205 = vector.extract_strided_slice %192 {offsets = [0, 0, 2], sizes = [8, 8, 16], strides = [1, 1, 1]} : vector<8x8x20xf32> to vector<8x8x16xf32>
    %c4_134 = arith.constant 4 : index
    %c2_135 = arith.constant 2 : index
    %c0_136 = arith.constant 0 : index
    %c0_137 = arith.constant 0 : index
    %c0_138 = arith.constant 0 : index
    %206 = vector.load %arg6[%c4_134, %c2_135, %c0_136, %c0_137, %c0_138] : memref<5x5x8x1x1xf32, #tpu.memory_space<vmem>>, vector<1x1x8x1x1xf32>
    %207 = vector.shape_cast %206 : vector<1x1x8x1x1xf32> to vector<8x1x1xf32>
    %208 = vector.broadcast %207 : vector<8x1x1xf32> to vector<8x8x16xf32>
    %209 = arith.mulf %205, %208 : vector<8x8x16xf32>
    %210 = arith.addf %204, %209 : vector<8x8x16xf32>
    %211 = vector.extract_strided_slice %192 {offsets = [0, 0, 3], sizes = [8, 8, 16], strides = [1, 1, 1]} : vector<8x8x20xf32> to vector<8x8x16xf32>
    %c4_139 = arith.constant 4 : index
    %c3_140 = arith.constant 3 : index
    %c0_141 = arith.constant 0 : index
    %c0_142 = arith.constant 0 : index
    %c0_143 = arith.constant 0 : index
    %212 = vector.load %arg6[%c4_139, %c3_140, %c0_141, %c0_142, %c0_143] : memref<5x5x8x1x1xf32, #tpu.memory_space<vmem>>, vector<1x1x8x1x1xf32>
    %213 = vector.shape_cast %212 : vector<1x1x8x1x1xf32> to vector<8x1x1xf32>
    %214 = vector.broadcast %213 : vector<8x1x1xf32> to vector<8x8x16xf32>
    %215 = arith.mulf %211, %214 : vector<8x8x16xf32>
    %216 = arith.addf %210, %215 : vector<8x8x16xf32>
    %217 = vector.extract_strided_slice %192 {offsets = [0, 0, 4], sizes = [8, 8, 16], strides = [1, 1, 1]} : vector<8x8x20xf32> to vector<8x8x16xf32>
    %c4_144 = arith.constant 4 : index
    %c4_145 = arith.constant 4 : index
    %c0_146 = arith.constant 0 : index
    %c0_147 = arith.constant 0 : index
    %c0_148 = arith.constant 0 : index
    %218 = vector.load %arg6[%c4_144, %c4_145, %c0_146, %c0_147, %c0_148] : memref<5x5x8x1x1xf32, #tpu.memory_space<vmem>>, vector<1x1x8x1x1xf32>
    %219 = vector.shape_cast %218 : vector<1x1x8x1x1xf32> to vector<8x1x1xf32>
    %220 = vector.broadcast %219 : vector<8x1x1xf32> to vector<8x8x16xf32>
    %221 = arith.mulf %217, %220 : vector<8x8x16xf32>
    %222 = arith.addf %216, %221 : vector<8x8x16xf32>
    %c0_149 = arith.constant 0 : index
    %c0_150 = arith.constant 0 : index
    %c0_151 = arith.constant 0 : index
    %223 = vector.load %arg7[%c0_149, %c0_150, %c0_151] : memref<8x1x1xf32, #tpu.memory_space<vmem>>, vector<8x1x1xf32>
    %224 = vector.broadcast %223 : vector<8x1x1xf32> to vector<8x8x16xf32>
    %225 = arith.mulf %222, %224 : vector<8x8x16xf32>
    %c0_152 = arith.constant 0 : index
    %c0_153 = arith.constant 0 : index
    %c0_154 = arith.constant 0 : index
    %226 = vector.load %arg8[%c0_152, %c0_153, %c0_154] : memref<8x1x1xf32, #tpu.memory_space<vmem>>, vector<8x1x1xf32>
    %227 = vector.broadcast %226 : vector<8x1x1xf32> to vector<8x8x16xf32>
    %228 = arith.addf %225, %227 : vector<8x8x16xf32>
    %cst_155 = arith.constant 0.000000e+00 : f32
    %229 = vector.broadcast %cst_155 : f32 to vector<8x8x16xf32>
    %230 = arith.maximumf %228, %229 : vector<8x8x16xf32>
    %231 = vector.extract_strided_slice %230 {offsets = [0, 0, 0], sizes = [1, 8, 16], strides = [1, 1, 1]} : vector<8x8x16xf32> to vector<1x8x16xf32>
    %232 = vector.shape_cast %231 : vector<1x8x16xf32> to vector<8x16xf32>
    %c0_156 = arith.constant 0 : index
    %c0_157 = arith.constant 0 : index
    %c0_158 = arith.constant 0 : index
    %c0_159 = arith.constant 0 : index
    %233 = vector.load %arg9[%c0_156, %c0_157, %c0_158, %c0_159] : memref<8x4x1x1xf32, #tpu.memory_space<vmem>>, vector<1x4x1x1xf32>
    %234 = vector.shape_cast %233 : vector<1x4x1x1xf32> to vector<4x1x1xf32>
    %235 = vector.shape_cast %232 : vector<8x16xf32> to vector<1x8x16xf32>
    %236 = vector.broadcast %235 : vector<1x8x16xf32> to vector<4x8x16xf32>
    %237 = vector.broadcast %234 : vector<4x1x1xf32> to vector<4x8x16xf32>
    %238 = arith.mulf %236, %237 : vector<4x8x16xf32>
    %239 = vector.extract_strided_slice %230 {offsets = [1, 0, 0], sizes = [1, 8, 16], strides = [1, 1, 1]} : vector<8x8x16xf32> to vector<1x8x16xf32>
    %240 = vector.shape_cast %239 : vector<1x8x16xf32> to vector<8x16xf32>
    %c1_160 = arith.constant 1 : index
    %c0_161 = arith.constant 0 : index
    %c0_162 = arith.constant 0 : index
    %c0_163 = arith.constant 0 : index
    %241 = vector.load %arg9[%c1_160, %c0_161, %c0_162, %c0_163] : memref<8x4x1x1xf32, #tpu.memory_space<vmem>>, vector<1x4x1x1xf32>
    %242 = vector.shape_cast %241 : vector<1x4x1x1xf32> to vector<4x1x1xf32>
    %243 = vector.shape_cast %240 : vector<8x16xf32> to vector<1x8x16xf32>
    %244 = vector.broadcast %243 : vector<1x8x16xf32> to vector<4x8x16xf32>
    %245 = vector.broadcast %242 : vector<4x1x1xf32> to vector<4x8x16xf32>
    %246 = arith.mulf %244, %245 : vector<4x8x16xf32>
    %247 = arith.addf %238, %246 : vector<4x8x16xf32>
    %248 = vector.extract_strided_slice %230 {offsets = [2, 0, 0], sizes = [1, 8, 16], strides = [1, 1, 1]} : vector<8x8x16xf32> to vector<1x8x16xf32>
    %249 = vector.shape_cast %248 : vector<1x8x16xf32> to vector<8x16xf32>
    %c2_164 = arith.constant 2 : index
    %c0_165 = arith.constant 0 : index
    %c0_166 = arith.constant 0 : index
    %c0_167 = arith.constant 0 : index
    %250 = vector.load %arg9[%c2_164, %c0_165, %c0_166, %c0_167] : memref<8x4x1x1xf32, #tpu.memory_space<vmem>>, vector<1x4x1x1xf32>
    %251 = vector.shape_cast %250 : vector<1x4x1x1xf32> to vector<4x1x1xf32>
    %252 = vector.shape_cast %249 : vector<8x16xf32> to vector<1x8x16xf32>
    %253 = vector.broadcast %252 : vector<1x8x16xf32> to vector<4x8x16xf32>
    %254 = vector.broadcast %251 : vector<4x1x1xf32> to vector<4x8x16xf32>
    %255 = arith.mulf %253, %254 : vector<4x8x16xf32>
    %256 = arith.addf %247, %255 : vector<4x8x16xf32>
    %257 = vector.extract_strided_slice %230 {offsets = [3, 0, 0], sizes = [1, 8, 16], strides = [1, 1, 1]} : vector<8x8x16xf32> to vector<1x8x16xf32>
    %258 = vector.shape_cast %257 : vector<1x8x16xf32> to vector<8x16xf32>
    %c3_168 = arith.constant 3 : index
    %c0_169 = arith.constant 0 : index
    %c0_170 = arith.constant 0 : index
    %c0_171 = arith.constant 0 : index
    %259 = vector.load %arg9[%c3_168, %c0_169, %c0_170, %c0_171] : memref<8x4x1x1xf32, #tpu.memory_space<vmem>>, vector<1x4x1x1xf32>
    %260 = vector.shape_cast %259 : vector<1x4x1x1xf32> to vector<4x1x1xf32>
    %261 = vector.shape_cast %258 : vector<8x16xf32> to vector<1x8x16xf32>
    %262 = vector.broadcast %261 : vector<1x8x16xf32> to vector<4x8x16xf32>
    %263 = vector.broadcast %260 : vector<4x1x1xf32> to vector<4x8x16xf32>
    %264 = arith.mulf %262, %263 : vector<4x8x16xf32>
    %265 = arith.addf %256, %264 : vector<4x8x16xf32>
    %266 = vector.extract_strided_slice %230 {offsets = [4, 0, 0], sizes = [1, 8, 16], strides = [1, 1, 1]} : vector<8x8x16xf32> to vector<1x8x16xf32>
    %267 = vector.shape_cast %266 : vector<1x8x16xf32> to vector<8x16xf32>
    %c4_172 = arith.constant 4 : index
    %c0_173 = arith.constant 0 : index
    %c0_174 = arith.constant 0 : index
    %c0_175 = arith.constant 0 : index
    %268 = vector.load %arg9[%c4_172, %c0_173, %c0_174, %c0_175] : memref<8x4x1x1xf32, #tpu.memory_space<vmem>>, vector<1x4x1x1xf32>
    %269 = vector.shape_cast %268 : vector<1x4x1x1xf32> to vector<4x1x1xf32>
    %270 = vector.shape_cast %267 : vector<8x16xf32> to vector<1x8x16xf32>
    %271 = vector.broadcast %270 : vector<1x8x16xf32> to vector<4x8x16xf32>
    %272 = vector.broadcast %269 : vector<4x1x1xf32> to vector<4x8x16xf32>
    %273 = arith.mulf %271, %272 : vector<4x8x16xf32>
    %274 = arith.addf %265, %273 : vector<4x8x16xf32>
    %275 = vector.extract_strided_slice %230 {offsets = [5, 0, 0], sizes = [1, 8, 16], strides = [1, 1, 1]} : vector<8x8x16xf32> to vector<1x8x16xf32>
    %276 = vector.shape_cast %275 : vector<1x8x16xf32> to vector<8x16xf32>
    %c5 = arith.constant 5 : index
    %c0_176 = arith.constant 0 : index
    %c0_177 = arith.constant 0 : index
    %c0_178 = arith.constant 0 : index
    %277 = vector.load %arg9[%c5, %c0_176, %c0_177, %c0_178] : memref<8x4x1x1xf32, #tpu.memory_space<vmem>>, vector<1x4x1x1xf32>
    %278 = vector.shape_cast %277 : vector<1x4x1x1xf32> to vector<4x1x1xf32>
    %279 = vector.shape_cast %276 : vector<8x16xf32> to vector<1x8x16xf32>
    %280 = vector.broadcast %279 : vector<1x8x16xf32> to vector<4x8x16xf32>
    %281 = vector.broadcast %278 : vector<4x1x1xf32> to vector<4x8x16xf32>
    %282 = arith.mulf %280, %281 : vector<4x8x16xf32>
    %283 = arith.addf %274, %282 : vector<4x8x16xf32>
    %284 = vector.extract_strided_slice %230 {offsets = [6, 0, 0], sizes = [1, 8, 16], strides = [1, 1, 1]} : vector<8x8x16xf32> to vector<1x8x16xf32>
    %285 = vector.shape_cast %284 : vector<1x8x16xf32> to vector<8x16xf32>
    %c6 = arith.constant 6 : index
    %c0_179 = arith.constant 0 : index
    %c0_180 = arith.constant 0 : index
    %c0_181 = arith.constant 0 : index
    %286 = vector.load %arg9[%c6, %c0_179, %c0_180, %c0_181] : memref<8x4x1x1xf32, #tpu.memory_space<vmem>>, vector<1x4x1x1xf32>
    %287 = vector.shape_cast %286 : vector<1x4x1x1xf32> to vector<4x1x1xf32>
    %288 = vector.shape_cast %285 : vector<8x16xf32> to vector<1x8x16xf32>
    %289 = vector.broadcast %288 : vector<1x8x16xf32> to vector<4x8x16xf32>
    %290 = vector.broadcast %287 : vector<4x1x1xf32> to vector<4x8x16xf32>
    %291 = arith.mulf %289, %290 : vector<4x8x16xf32>
    %292 = arith.addf %283, %291 : vector<4x8x16xf32>
    %293 = vector.extract_strided_slice %230 {offsets = [7, 0, 0], sizes = [1, 8, 16], strides = [1, 1, 1]} : vector<8x8x16xf32> to vector<1x8x16xf32>
    %294 = vector.shape_cast %293 : vector<1x8x16xf32> to vector<8x16xf32>
    %c7 = arith.constant 7 : index
    %c0_182 = arith.constant 0 : index
    %c0_183 = arith.constant 0 : index
    %c0_184 = arith.constant 0 : index
    %295 = vector.load %arg9[%c7, %c0_182, %c0_183, %c0_184] : memref<8x4x1x1xf32, #tpu.memory_space<vmem>>, vector<1x4x1x1xf32>
    %296 = vector.shape_cast %295 : vector<1x4x1x1xf32> to vector<4x1x1xf32>
    %297 = vector.shape_cast %294 : vector<8x16xf32> to vector<1x8x16xf32>
    %298 = vector.broadcast %297 : vector<1x8x16xf32> to vector<4x8x16xf32>
    %299 = vector.broadcast %296 : vector<4x1x1xf32> to vector<4x8x16xf32>
    %300 = arith.mulf %298, %299 : vector<4x8x16xf32>
    %301 = arith.addf %292, %300 : vector<4x8x16xf32>
    %c0_185 = arith.constant 0 : index
    %c0_186 = arith.constant 0 : index
    %c0_187 = arith.constant 0 : index
    %302 = vector.load %arg10[%c0_185, %c0_186, %c0_187] : memref<4x1x1xf32, #tpu.memory_space<vmem>>, vector<4x1x1xf32>
    %303 = vector.broadcast %302 : vector<4x1x1xf32> to vector<4x8x16xf32>
    %304 = arith.mulf %301, %303 : vector<4x8x16xf32>
    %c0_188 = arith.constant 0 : index
    %c0_189 = arith.constant 0 : index
    %c0_190 = arith.constant 0 : index
    %305 = vector.load %arg11[%c0_188, %c0_189, %c0_190] : memref<4x1x1xf32, #tpu.memory_space<vmem>>, vector<4x1x1xf32>
    %306 = vector.broadcast %305 : vector<4x1x1xf32> to vector<4x8x16xf32>
    %307 = arith.addf %304, %306 : vector<4x8x16xf32>
    %c8_i32_191 = arith.constant 8 : i32
    %308 = arith.muli %arg1, %c8_i32_191 : i32
    %c2_i32_192 = arith.constant 2 : i32
    %309 = arith.addi %c2_i32_192, %308 : i32
    %c0_193 = arith.constant 0 : index
    %c0_194 = arith.constant 0 : index
    %310 = arith.index_cast %309 : i32 to index
    %c2_195 = arith.constant 2 : index
    %311 = vector.load %arg2[%c0_193, %c0_194, %310, %c2_195] : memref<1x4x20x20xf32, #tpu.memory_space<vmem>>, vector<1x4x8x16xf32>
    %312 = vector.shape_cast %311 : vector<1x4x8x16xf32> to vector<4x8x16xf32>
    %313 = arith.addf %307, %312 : vector<4x8x16xf32>
    %314 = vector.extract_strided_slice %313 {offsets = [0, 0, 0], sizes = [4, 1, 16], strides = [1, 1, 1]} : vector<4x8x16xf32> to vector<4x1x16xf32>
    %315 = vector.shape_cast %314 : vector<4x1x16xf32> to vector<4x16xf32>
    %c0_196 = arith.constant 0 : index
    %c0_197 = arith.constant 0 : index
    %c0_198 = arith.constant 0 : index
    %316 = vector.load %arg12[%c0_196, %c0_197, %c0_198] : memref<1x4x128xf32, #tpu.memory_space<vmem>>, vector<1x4x16xf32>
    %317 = vector.shape_cast %316 : vector<1x4x16xf32> to vector<4x16xf32>
    %318 = vector.shape_cast %315 : vector<4x16xf32> to vector<1x4x16xf32>
    tpu.vector_store %arg12[%c0_196, %c0_197, %c0_198], %318 {strides = array<i32>} : memref<1x4x128xf32, #tpu.memory_space<vmem>>, vector<1x4x16xf32>,
    %319 = vector.extract_strided_slice %313 {offsets = [0, 1, 0], sizes = [4, 1, 16], strides = [1, 1, 1]} : vector<4x8x16xf32> to vector<4x1x16xf32>
    %320 = vector.shape_cast %319 : vector<4x1x16xf32> to vector<4x16xf32>
    %c0_199 = arith.constant 0 : index
    %c0_200 = arith.constant 0 : index
    %c16 = arith.constant 16 : index
    %321 = vector.load %arg12[%c0_199, %c0_200, %c16] : memref<1x4x128xf32, #tpu.memory_space<vmem>>, vector<1x4x16xf32>
    %322 = vector.shape_cast %321 : vector<1x4x16xf32> to vector<4x16xf32>
    %323 = vector.shape_cast %320 : vector<4x16xf32> to vector<1x4x16xf32>
    tpu.vector_store %arg12[%c0_199, %c0_200, %c16], %323 {strides = array<i32>} : memref<1x4x128xf32, #tpu.memory_space<vmem>>, vector<1x4x16xf32>,
    %324 = vector.extract_strided_slice %313 {offsets = [0, 2, 0], sizes = [4, 1, 16], strides = [1, 1, 1]} : vector<4x8x16xf32> to vector<4x1x16xf32>
    %325 = vector.shape_cast %324 : vector<4x1x16xf32> to vector<4x16xf32>
    %c0_201 = arith.constant 0 : index
    %c0_202 = arith.constant 0 : index
    %c32 = arith.constant 32 : index
    %326 = vector.load %arg12[%c0_201, %c0_202, %c32] : memref<1x4x128xf32, #tpu.memory_space<vmem>>, vector<1x4x16xf32>
    %327 = vector.shape_cast %326 : vector<1x4x16xf32> to vector<4x16xf32>
    %328 = vector.shape_cast %325 : vector<4x16xf32> to vector<1x4x16xf32>
    tpu.vector_store %arg12[%c0_201, %c0_202, %c32], %328 {strides = array<i32>} : memref<1x4x128xf32, #tpu.memory_space<vmem>>, vector<1x4x16xf32>,
    %329 = vector.extract_strided_slice %313 {offsets = [0, 3, 0], sizes = [4, 1, 16], strides = [1, 1, 1]} : vector<4x8x16xf32> to vector<4x1x16xf32>
    %330 = vector.shape_cast %329 : vector<4x1x16xf32> to vector<4x16xf32>
    %c0_203 = arith.constant 0 : index
    %c0_204 = arith.constant 0 : index
    %c48 = arith.constant 48 : index
    %331 = vector.load %arg12[%c0_203, %c0_204, %c48] : memref<1x4x128xf32, #tpu.memory_space<vmem>>, vector<1x4x16xf32>
    %332 = vector.shape_cast %331 : vector<1x4x16xf32> to vector<4x16xf32>
    %333 = vector.shape_cast %330 : vector<4x16xf32> to vector<1x4x16xf32>
    tpu.vector_store %arg12[%c0_203, %c0_204, %c48], %333 {strides = array<i32>} : memref<1x4x128xf32, #tpu.memory_space<vmem>>, vector<1x4x16xf32>,
    %334 = vector.extract_strided_slice %313 {offsets = [0, 4, 0], sizes = [4, 1, 16], strides = [1, 1, 1]} : vector<4x8x16xf32> to vector<4x1x16xf32>
    %335 = vector.shape_cast %334 : vector<4x1x16xf32> to vector<4x16xf32>
    %c0_205 = arith.constant 0 : index
    %c0_206 = arith.constant 0 : index
    %c64 = arith.constant 64 : index
    %336 = vector.load %arg12[%c0_205, %c0_206, %c64] : memref<1x4x128xf32, #tpu.memory_space<vmem>>, vector<1x4x16xf32>
    %337 = vector.shape_cast %336 : vector<1x4x16xf32> to vector<4x16xf32>
    %338 = vector.shape_cast %335 : vector<4x16xf32> to vector<1x4x16xf32>
    tpu.vector_store %arg12[%c0_205, %c0_206, %c64], %338 {strides = array<i32>} : memref<1x4x128xf32, #tpu.memory_space<vmem>>, vector<1x4x16xf32>,
    %339 = vector.extract_strided_slice %313 {offsets = [0, 5, 0], sizes = [4, 1, 16], strides = [1, 1, 1]} : vector<4x8x16xf32> to vector<4x1x16xf32>
    %340 = vector.shape_cast %339 : vector<4x1x16xf32> to vector<4x16xf32>
    %c0_207 = arith.constant 0 : index
    %c0_208 = arith.constant 0 : index
    %c80 = arith.constant 80 : index
    %341 = vector.load %arg12[%c0_207, %c0_208, %c80] : memref<1x4x128xf32, #tpu.memory_space<vmem>>, vector<1x4x16xf32>
    %342 = vector.shape_cast %341 : vector<1x4x16xf32> to vector<4x16xf32>
    %343 = vector.shape_cast %340 : vector<4x16xf32> to vector<1x4x16xf32>
    tpu.vector_store %arg12[%c0_207, %c0_208, %c80], %343 {strides = array<i32>} : memref<1x4x128xf32, #tpu.memory_space<vmem>>, vector<1x4x16xf32>,
    %344 = vector.extract_strided_slice %313 {offsets = [0, 6, 0], sizes = [4, 1, 16], strides = [1, 1, 1]} : vector<4x8x16xf32> to vector<4x1x16xf32>
    %345 = vector.shape_cast %344 : vector<4x1x16xf32> to vector<4x16xf32>
    %c0_209 = arith.constant 0 : index
    %c0_210 = arith.constant 0 : index
    %c96 = arith.constant 96 : index
    %346 = vector.load %arg12[%c0_209, %c0_210, %c96] : memref<1x4x128xf32, #tpu.memory_space<vmem>>, vector<1x4x16xf32>
    %347 = vector.shape_cast %346 : vector<1x4x16xf32> to vector<4x16xf32>
    %348 = vector.shape_cast %345 : vector<4x16xf32> to vector<1x4x16xf32>
    tpu.vector_store %arg12[%c0_209, %c0_210, %c96], %348 {strides = array<i32>} : memref<1x4x128xf32, #tpu.memory_space<vmem>>, vector<1x4x16xf32>,
    %349 = vector.extract_strided_slice %313 {offsets = [0, 7, 0], sizes = [4, 1, 16], strides = [1, 1, 1]} : vector<4x8x16xf32> to vector<4x1x16xf32>
    %350 = vector.shape_cast %349 : vector<4x1x16xf32> to vector<4x16xf32>
    %c0_211 = arith.constant 0 : index
    %c0_212 = arith.constant 0 : index
    %c112 = arith.constant 112 : index
    %351 = vector.load %arg12[%c0_211, %c0_212, %c112] : memref<1x4x128xf32, #tpu.memory_space<vmem>>, vector<1x4x16xf32>
    %352 = vector.shape_cast %351 : vector<1x4x16xf32> to vector<4x16xf32>
    %353 = vector.shape_cast %350 : vector<4x16xf32> to vector<1x4x16xf32>
    tpu.vector_store %arg12[%c0_211, %c0_212, %c112], %353 {strides = array<i32>} : memref<1x4x128xf32, #tpu.memory_space<vmem>>, vector<1x4x16xf32>,
    return
  }
  func.func @transform_0(%arg0: i32, %arg1: i32) -> (i32, i32, i32, i32) {
    %c0_i32 = arith.constant 0 : i32
    %c0_i32_0 = arith.constant 0 : i32
    %c0_i32_1 = arith.constant 0 : i32
    %c0_i32_2 = arith.constant 0 : i32
    return %arg0, %c0_i32, %c0_i32_0, %c0_i32_1 : i32, i32, i32, i32
  }
  func.func @transform_1(%arg0: i32, %arg1: i32) -> (i32, i32, i32, i32) {
    %c0_i32 = arith.constant 0 : i32
    %c0_i32_0 = arith.constant 0 : i32
    %c0_i32_1 = arith.constant 0 : i32
    %c0_i32_2 = arith.constant 0 : i32
    %c0_i32_3 = arith.constant 0 : i32
    return %c0_i32, %c0_i32_0, %c0_i32_1, %c0_i32_2 : i32, i32, i32, i32
  }
  func.func @transform_2(%arg0: i32, %arg1: i32) -> (i32, i32, i32) {
    %c0_i32 = arith.constant 0 : i32
    %c0_i32_0 = arith.constant 0 : i32
    %c0_i32_1 = arith.constant 0 : i32
    %c0_i32_2 = arith.constant 0 : i32
    return %c0_i32, %c0_i32_0, %c0_i32_1 : i32, i32, i32
  }
  func.func @transform_3(%arg0: i32, %arg1: i32) -> (i32, i32, i32) {
    %c0_i32 = arith.constant 0 : i32
    %c0_i32_0 = arith.constant 0 : i32
    %c0_i32_1 = arith.constant 0 : i32
    %c0_i32_2 = arith.constant 0 : i32
    return %c0_i32, %c0_i32_0, %c0_i32_1 : i32, i32, i32
  }
  func.func @transform_4(%arg0: i32, %arg1: i32) -> (i32, i32, i32, i32, i32) {
    %c0_i32 = arith.constant 0 : i32
    %c0_i32_0 = arith.constant 0 : i32
    %c0_i32_1 = arith.constant 0 : i32
    %c0_i32_2 = arith.constant 0 : i32
    %c0_i32_3 = arith.constant 0 : i32
    %c0_i32_4 = arith.constant 0 : i32
    return %c0_i32, %c0_i32_0, %c0_i32_1, %c0_i32_2, %c0_i32_3 : i32, i32, i32, i32, i32
  }
  func.func @transform_5(%arg0: i32, %arg1: i32) -> (i32, i32, i32) {
    %c0_i32 = arith.constant 0 : i32
    %c0_i32_0 = arith.constant 0 : i32
    %c0_i32_1 = arith.constant 0 : i32
    %c0_i32_2 = arith.constant 0 : i32
    return %c0_i32, %c0_i32_0, %c0_i32_1 : i32, i32, i32
  }
  func.func @transform_6(%arg0: i32, %arg1: i32) -> (i32, i32, i32) {
    %c0_i32 = arith.constant 0 : i32
    %c0_i32_0 = arith.constant 0 : i32
    %c0_i32_1 = arith.constant 0 : i32
    %c0_i32_2 = arith.constant 0 : i32
    return %c0_i32, %c0_i32_0, %c0_i32_1 : i32, i32, i32
  }
  func.func @transform_7(%arg0: i32, %arg1: i32) -> (i32, i32, i32, i32) {
    %c0_i32 = arith.constant 0 : i32
    %c0_i32_0 = arith.constant 0 : i32
    %c0_i32_1 = arith.constant 0 : i32
    %c0_i32_2 = arith.constant 0 : i32
    %c0_i32_3 = arith.constant 0 : i32
    return %c0_i32, %c0_i32_0, %c0_i32_1, %c0_i32_2 : i32, i32, i32, i32
  }
  func.func @transform_8(%arg0: i32, %arg1: i32) -> (i32, i32, i32) {
    %c0_i32 = arith.constant 0 : i32
    %c0_i32_0 = arith.constant 0 : i32
    %c0_i32_1 = arith.constant 0 : i32
    %c0_i32_2 = arith.constant 0 : i32
    return %c0_i32, %c0_i32_0, %c0_i32_1 : i32, i32, i32
  }
  func.func @transform_9(%arg0: i32, %arg1: i32) -> (i32, i32, i32) {
    %c0_i32 = arith.constant 0 : i32
    %c0_i32_0 = arith.constant 0 : i32
    %c0_i32_1 = arith.constant 0 : i32
    %c0_i32_2 = arith.constant 0 : i32
    return %c0_i32, %c0_i32_0, %c0_i32_1 : i32, i32, i32
  }
  func.func @transform_10(%arg0: i32, %arg1: i32) -> (i32, i32, i32) {
    %c0_i32 = arith.constant 0 : i32
    %c0_i32_0 = arith.constant 0 : i32
    return %arg0, %c0_i32, %arg1 : i32, i32, i32
  }
}

</mosaic_0001>

<llo_original>
// kernel: tpu_custom_call.1
$region0: #{tpu_custom_call.1}
  #allocation0 [shape = 'u32[]', space=smem, size = 0x4, offset = 0x4, fixed_abs, tag = 'smem constant byte address 0x4 - core index']
  #allocation1 [shape = 'u32[72,128]{1,0:T(1,128)}', space=vmem, size = 0x9000, scoped, tag = 'internal scratch']
  %s0 = inlined_call_operand.vmem [shape: f32[2,4,20,20], index: 0, kind: input, shape index: {}]
  %s1 = inlined_call_operand.vmem [shape: f32[4,8,1,1], index: 1, kind: input, shape index: {}]
  %s2 = inlined_call_operand.vmem [shape: f32[8,1,1], index: 2, kind: input, shape index: {}]
  %s3 = inlined_call_operand.vmem [shape: f32[8,1,1], index: 3, kind: input, shape index: {}]
  %s4 = inlined_call_operand.vmem [shape: f32[5,5,8,1,1], index: 4, kind: input, shape index: {}]
  %s5 = inlined_call_operand.vmem [shape: f32[8,1,1], index: 5, kind: input, shape index: {}]
  %s6 = inlined_call_operand.vmem [shape: f32[8,1,1], index: 6, kind: input, shape index: {}]
  %s7 = inlined_call_operand.vmem [shape: f32[8,4,1,1], index: 7, kind: input, shape index: {}]
  %s8 = inlined_call_operand.vmem [shape: f32[4,1,1], index: 8, kind: input, shape index: {}]
  %s9 = inlined_call_operand.vmem [shape: f32[4,1,1], index: 9, kind: input, shape index: {}]
  %s10 = inlined_call_operand.hbm [shape: f32[2,4,256], index: 10, kind: output, shape index: {}]
  %s11 = sld [smem:[#allocation0]]
  $region73: #{tpu_custom_call.1} parent=0
    _
  %s13 = ssub.s32 1, %s11
  %s14 = scalar_select 0, %s13, %s11
  $region1: #{tpu_custom_call.1} parent=0
    #allocation2 [shape = 'u8[4096]{0}', space=vmem, size = 0x1000, scoped, tag = 'output window, operand 0']
    #allocation3 [shape = 's32[2]{0}', space=sflag, size = 0x8, scoped, tag = 'scoped memory for tpu_custom_call.1']
    %15 = vsyncpa [#allocation3], 0
    %s16 = scalar_lea.sflag [#allocation3], 1
    %17 = vsyncpa %s16, 0
    loop: start=0, step=1, limit=6
    $region2: #{tpu_custom_call.1} parent=1 // loop_pre_header
      _
    $region3: #{tpu_custom_call.1} parent=1 // loop_header
      %s19 = sphi 0, %s23
      %p20 = scmp.ge.s32.totalorder %s19, 6
      %s26 = sphi 0, %s38
      %s27 = sphi 0, %s34
      %s28 = sphi 0, %s26
      %s29 = sphi 0, %s27
      %s30 = sphi 0, %s28
      %s31 = sphi 0, %s29
      %s41 = sphi 0, %s43
      %s44 = sphi 0, %s41
      %s45 = sphi 0, %s44
      %s61 = sphi 0, %s45
      %s65 = sphi 0, %s65
      %s67 = sphi 0, %s65
      %s68 = sphi 0, %s67
      %s82 = sphi 0, %s68
      %s86 = sphi 0, %s86
      %s88 = sphi 0, %s86
      %s89 = sphi 0, %s88
      %s103 = sphi 0, %s89
      %s107 = sphi 0, %s107
      %s109 = sphi 0, %s107
      %s110 = sphi 0, %s109
      %s124 = sphi 0, %s110
      %s128 = sphi 0, %s128
      %s130 = sphi 0, %s128
      %s131 = sphi 0, %s130
      %s145 = sphi 0, %s131
      %s149 = sphi 0, %s149
      %s151 = sphi 0, %s149
      %s152 = sphi 0, %s151
      %s166 = sphi 0, %s152
      %s170 = sphi 0, %s170
      %s172 = sphi 0, %s170
      %s173 = sphi 0, %s172
      %s187 = sphi 0, %s173
      %s191 = sphi 0, %s191
      %s193 = sphi 0, %s191
      %s194 = sphi 0, %s193
      %s208 = sphi 0, %s194
      %s212 = sphi 0, %s212
      %s214 = sphi 0, %s212
      %s215 = sphi 0, %s214
      %s229 = sphi 0, %s215
      %s233 = sphi 0, %s233
      %s235 = sphi 0, %s233
      %s236 = sphi 0, %s235
      %s250 = sphi 0, %s236
      %s258 = sphi 0, %s260
      %s261 = sphi 0, %s258
      %s262 = sphi 0, %s261
      %s278 = sphi 0, %s262
    $region4: #{tpu_custom_call.1} parent=1 // loop_header_branch
      %22 = sbr.rel (%p20) target = $region8
    $region5: #{tpu_custom_call.1} parent=1 // loop_body
      %s24 = ssub.s32 %s19, 1
      %s25 = ssub.s32 %s19, 2
      %s32 = sadd.s32 1, %s27
      %p33 = scmp.ge.s32.totalorder %s32, 2
      %s34 = scalar_select %p33, 0, %s32
      %s35 = sadd.s32 1, %s26
      %s36 = scalar_select %p33, %s35, %s26
      %p37 = scmp.ge.s32.totalorder %s36, 2
      %s38 = scalar_select %p37, 0, %s36
      %s39 = ssub.s32 %s26, %s38
      %p40 = scmp.eq.s32.totalorder %s39, 0
      %s42 = sadd.s32 %s41, 1
      %s43 = scalar_select %p40, %s41, %s42
      %p46 = pneg %p40
      %p47 = scmp.eq.s32.totalorder %s19, 3
      %p48 = por %p46, %p47
      %p49 = scmp.ne.s32.totalorder %s41, %s44
      %p50 = scmp.eq.s32.totalorder %s19, 0
      %p51 = por %p49, %p50
      %p52 = scmp.ne.s32.totalorder %s41, %s44
      %p53 = scmp.eq.s32.totalorder %s24, 3
      %p54 = por %p52, %p53
      %p55 = scmp.ne.s32.totalorder %s44, %s45
      %p56 = scmp.eq.s32.totalorder %s24, 0
      %p57 = por %p55, %p56
      %p58 = scmp.ne.s32.totalorder %s44, %s45
      %p59 = scmp.eq.s32.totalorder %s25, 3
      %p60 = por %p58, %p59
      %p62 = scmp.ne.s32.totalorder %s45, %s61
      %p63 = scmp.eq.s32.totalorder %s25, 0
      %p64 = por %p62, %p63
      %s66 = sadd.s32 %s65, 1
      %p69 = scmp.eq.s32.totalorder %s19, 3
      %p70 = scmp.ne.s32.totalorder %s65, %s67
      %p71 = scmp.eq.s32.totalorder %s19, 0
      %p72 = por %p70, %p71
      %p73 = scmp.ne.s32.totalorder %s65, %s67
      %p74 = scmp.eq.s32.totalorder %s24, 3
      %p75 = por %p73, %p74
      %p76 = scmp.ne.s32.totalorder %s67, %s68
      %p77 = scmp.eq.s32.totalorder %s24, 0
      %p78 = por %p76, %p77
      %p79 = scmp.ne.s32.totalorder %s67, %s68
      %p80 = scmp.eq.s32.totalorder %s25, 3
      %p81 = por %p79, %p80
      %p83 = scmp.ne.s32.totalorder %s68, %s82
      %p84 = scmp.eq.s32.totalorder %s25, 0
      %p85 = por %p83, %p84
      %s87 = sadd.s32 %s86, 1
      %p90 = scmp.eq.s32.totalorder %s19, 3
      %p91 = scmp.ne.s32.totalorder %s86, %s88
      %p92 = scmp.eq.s32.totalorder %s19, 0
      %p93 = por %p91, %p92
      %p94 = scmp.ne.s32.totalorder %s86, %s88
      %p95 = scmp.eq.s32.totalorder %s24, 3
      %p96 = por %p94, %p95
      %p97 = scmp.ne.s32.totalorder %s88, %s89
      %p98 = scmp.eq.s32.totalorder %s24, 0
      %p99 = por %p97, %p98
      %p100 = scmp.ne.s32.totalorder %s88, %s89
      %p101 = scmp.eq.s32.totalorder %s25, 3
      %p102 = por %p100, %p101
      %p104 = scmp.ne.s32.totalorder %s89, %s103
      %p105 = scmp.eq.s32.totalorder %s25, 0
      %p106 = por %p104, %p105
      %s108 = sadd.s32 %s107, 1
      %p111 = scmp.eq.s32.totalorder %s19, 3
      %p112 = scmp.ne.s32.totalorder %s107, %s109
      %p113 = scmp.eq.s32.totalorder %s19, 0
      %p114 = por %p112, %p113
      %p115 = scmp.ne.s32.totalorder %s107, %s109
      %p116 = scmp.eq.s32.totalorder %s24, 3
      %p117 = por %p115, %p116
      %p118 = scmp.ne.s32.totalorder %s109, %s110
      %p119 = scmp.eq.s32.totalorder %s24, 0
      %p120 = por %p118, %p119
      %p121 = scmp.ne.s32.totalorder %s109, %s110
      %p122 = scmp.eq.s32.totalorder %s25, 3
      %p123 = por %p121, %p122
      %p125 = scmp.ne.s32.totalorder %s110, %s124
      %p126 = scmp.eq.s32.totalorder %s25, 0
      %p127 = por %p125, %p126
      %s129 = sadd.s32 %s128, 1
      %p132 = scmp.eq.s32.totalorder %s19, 3
      %p133 = scmp.ne.s32.totalorder %s128, %s130
      %p134 = scmp.eq.s32.totalorder %s19, 0
      %p135 = por %p133, %p134
      %p136 = scmp.ne.s32.totalorder %s128, %s130
      %p137 = scmp.eq.s32.totalorder %s24, 3
      %p138 = por %p136, %p137
      %p139 = scmp.ne.s32.totalorder %s130, %s131
      %p140 = scmp.eq.s32.totalorder %s24, 0
      %p141 = por %p139, %p140
      %p142 = scmp.ne.s32.totalorder %s130, %s131
      %p143 = scmp.eq.s32.totalorder %s25, 3
      %p144 = por %p142, %p143
      %p146 = scmp.ne.s32.totalorder %s131, %s145
      %p147 = scmp.eq.s32.totalorder %s25, 0
      %p148 = por %p146, %p147
      %s150 = sadd.s32 %s149, 1
      %p153 = scmp.eq.s32.totalorder %s19, 3
      %p154 = scmp.ne.s32.totalorder %s149, %s151
      %p155 = scmp.eq.s32.totalorder %s19, 0
      %p156 = por %p154, %p155
      %p157 = scmp.ne.s32.totalorder %s149, %s151
      %p158 = scmp.eq.s32.totalorder %s24, 3
      %p159 = por %p157, %p158
      %p160 = scmp.ne.s32.totalorder %s151, %s152
      %p161 = scmp.eq.s32.totalorder %s24, 0
      %p162 = por %p160, %p161
      %p163 = scmp.ne.s32.totalorder %s151, %s152
      %p164 = scmp.eq.s32.totalorder %s25, 3
      %p165 = por %p163, %p164
      %p167 = scmp.ne.s32.totalorder %s152, %s166
      %p168 = scmp.eq.s32.totalorder %s25, 0
      %p169 = por %p167, %p168
      %s171 = sadd.s32 %s170, 1
      %p174 = scmp.eq.s32.totalorder %s19, 3
      %p175 = scmp.ne.s32.totalorder %s170, %s172
      %p176 = scmp.eq.s32.totalorder %s19, 0
      %p177 = por %p175, %p176
      %p178 = scmp.ne.s32.totalorder %s170, %s172
      %p179 = scmp.eq.s32.totalorder %s24, 3
      %p180 = por %p178, %p179
      %p181 = scmp.ne.s32.totalorder %s172, %s173
      %p182 = scmp.eq.s32.totalorder %s24, 0
      %p183 = por %p181, %p182
      %p184 = scmp.ne.s32.totalorder %s172, %s173
      %p185 = scmp.eq.s32.totalorder %s25, 3
      %p186 = por %p184, %p185
      %p188 = scmp.ne.s32.totalorder %s173, %s187
      %p189 = scmp.eq.s32.totalorder %s25, 0
      %p190 = por %p188, %p189
      %s192 = sadd.s32 %s191, 1
      %p195 = scmp.eq.s32.totalorder %s19, 3
      %p196 = scmp.ne.s32.totalorder %s191, %s193
      %p197 = scmp.eq.s32.totalorder %s19, 0
      %p198 = por %p196, %p197
      %p199 = scmp.ne.s32.totalorder %s191, %s193
      %p200 = scmp.eq.s32.totalorder %s24, 3
      %p201 = por %p199, %p200
      %p202 = scmp.ne.s32.totalorder %s193, %s194
      %p203 = scmp.eq.s32.totalorder %s24, 0
      %p204 = por %p202, %p203
      %p205 = scmp.ne.s32.totalorder %s193, %s194
      %p206 = scmp.eq.s32.totalorder %s25, 3
      %p207 = por %p205, %p206
      %p209 = scmp.ne.s32.totalorder %s194, %s208
      %p210 = scmp.eq.s32.totalorder %s25, 0
      %p211 = por %p209, %p210
      %s213 = sadd.s32 %s212, 1
      %p216 = scmp.eq.s32.totalorder %s19, 3
      %p217 = scmp.ne.s32.totalorder %s212, %s214
      %p218 = scmp.eq.s32.totalorder %s19, 0
      %p219 = por %p217, %p218
      %p220 = scmp.ne.s32.totalorder %s212, %s214
      %p221 = scmp.eq.s32.totalorder %s24, 3
      %p222 = por %p220, %p221
      %p223 = scmp.ne.s32.totalorder %s214, %s215
      %p224 = scmp.eq.s32.totalorder %s24, 0
      %p225 = por %p223, %p224
      %p226 = scmp.ne.s32.totalorder %s214, %s215
      %p227 = scmp.eq.s32.totalorder %s25, 3
      %p228 = por %p226, %p227
      %p230 = scmp.ne.s32.totalorder %s215, %s229
      %p231 = scmp.eq.s32.totalorder %s25, 0
      %p232 = por %p230, %p231
      %s234 = sadd.s32 %s233, 1
      %p237 = scmp.eq.s32.totalorder %s19, 3
      %p238 = scmp.ne.s32.totalorder %s233, %s235
      %p239 = scmp.eq.s32.totalorder %s19, 0
      %p240 = por %p238, %p239
      %p241 = scmp.ne.s32.totalorder %s233, %s235
      %p242 = scmp.eq.s32.totalorder %s24, 3
      %p243 = por %p241, %p242
      %p244 = scmp.ne.s32.totalorder %s235, %s236
      %p245 = scmp.eq.s32.totalorder %s24, 0
      %p246 = por %p244, %p245
      %p247 = scmp.ne.s32.totalorder %s235, %s236
      %p248 = scmp.eq.s32.totalorder %s25, 3
      %p249 = por %p247, %p248
      %p251 = scmp.ne.s32.totalorder %s236, %s250
      %p252 = scmp.eq.s32.totalorder %s25, 0
      %p253 = por %p251, %p252
      %s254 = ssub.s32 %s26, %s38
      %s255 = ssub.s32 %s27, %s34
      %s256 = sor.u32 %s254, %s255
      %p257 = scmp.eq.s32.totalorder %s256, 0
      %s259 = sadd.s32 %s258, 1
      %s260 = scalar_select %p257, %s258, %s259
      %p263 = pneg %p257
      %p264 = scmp.eq.s32.totalorder %s19, 3
      %p265 = por %p263, %p264
      %p266 = scmp.ne.s32.totalorder %s258, %s261
      %p267 = scmp.eq.s32.totalorder %s19, 0
      %p268 = por %p266, %p267
      %p269 = scmp.ne.s32.totalorder %s258, %s261
      %p270 = scmp.eq.s32.totalorder %s24, 3
      %p271 = por %p269, %p270
      %p272 = scmp.ne.s32.totalorder %s261, %s262
      %p273 = scmp.eq.s32.totalorder %s24, 0
      %p274 = por %p272, %p273
      %p275 = scmp.ne.s32.totalorder %s261, %s262
      %p276 = scmp.eq.s32.totalorder %s25, 3
      %p277 = por %p275, %p276
      %p279 = scmp.ne.s32.totalorder %s262, %s278
      %p280 = scmp.eq.s32.totalorder %s25, 0
      %p281 = por %p279, %p280
      %p282 = scmp.le.s32.totalorder 1, %s19
      %p283 = scmp.lt.s32.totalorder %s19, 5
      %p284 = pnand %p282, %p283
      %p285 = pneg %p284
      // Predicated region
      $region9: #{tpu_custom_call.1} parent=5 // pred_check
        _
      $region10: #{tpu_custom_call.1} parent=5 // pred_check_branch
        %287 = sbr.rel (%p284) target = $region12
      $region11: #{tpu_custom_call.1} parent=5 // pred_region
        %s288 = ssub.s32 %s19, 1
        // Predicated region
        $region13: #{tpu_custom_call.1} parent=11 // pred_check
          %p289 = pneg %p78
        $region14: #{tpu_custom_call.1} parent=11 // pred_check_branch
          %291 = sbr.rel (%p289) target = $region16
        $region15: #{tpu_custom_call.1} parent=11 // pred_region
          _
        $region16: #{tpu_custom_call.1} parent=11 // pred_fallthru
          _
        // Predicated region
        $region17: #{tpu_custom_call.1} parent=11 // pred_check
          %p292 = pneg %p99
        $region18: #{tpu_custom_call.1} parent=11 // pred_check_branch
          %294 = sbr.rel (%p292) target = $region20
        $region19: #{tpu_custom_call.1} parent=11 // pred_region
          _
        $region20: #{tpu_custom_call.1} parent=11 // pred_fallthru
          _
        // Predicated region
        $region21: #{tpu_custom_call.1} parent=11 // pred_check
          %p295 = pneg %p120
        $region22: #{tpu_custom_call.1} parent=11 // pred_check_branch
          %297 = sbr.rel (%p295) target = $region24
        $region23: #{tpu_custom_call.1} parent=11 // pred_region
          _
        $region24: #{tpu_custom_call.1} parent=11 // pred_fallthru
          _
        // Predicated region
        $region25: #{tpu_custom_call.1} parent=11 // pred_check
          %p298 = pneg %p141
        $region26: #{tpu_custom_call.1} parent=11 // pred_check_branch
          %300 = sbr.rel (%p298) target = $region28
        $region27: #{tpu_custom_call.1} parent=11 // pred_region
          _
        $region28: #{tpu_custom_call.1} parent=11 // pred_fallthru
          _
        // Predicated region
        $region29: #{tpu_custom_call.1} parent=11 // pred_check
          %p301 = pneg %p162
        $region30: #{tpu_custom_call.1} parent=11 // pred_check_branch
          %303 = sbr.rel (%p301) target = $region32
        $region31: #{tpu_custom_call.1} parent=11 // pred_region
          _
        $region32: #{tpu_custom_call.1} parent=11 // pred_fallthru
          _
        // Predicated region
        $region33: #{tpu_custom_call.1} parent=11 // pred_check
          %p304 = pneg %p183
        $region34: #{tpu_custom_call.1} parent=11 // pred_check_branch
          %306 = sbr.rel (%p304) target = $region36
        $region35: #{tpu_custom_call.1} parent=11 // pred_region
          _
        $region36: #{tpu_custom_call.1} parent=11 // pred_fallthru
          _
        // Predicated region
        $region37: #{tpu_custom_call.1} parent=11 // pred_check
          %p307 = pneg %p204
        $region38: #{tpu_custom_call.1} parent=11 // pred_check_branch
          %309 = sbr.rel (%p307) target = $region40
        $region39: #{tpu_custom_call.1} parent=11 // pred_region
          _
        $region40: #{tpu_custom_call.1} parent=11 // pred_fallthru
          _
        // Predicated region
        $region41: #{tpu_custom_call.1} parent=11 // pred_check
          %p310 = pneg %p225
        $region42: #{tpu_custom_call.1} parent=11 // pred_check_branch
          %312 = sbr.rel (%p310) target = $region44
        $region43: #{tpu_custom_call.1} parent=11 // pred_region
          _
        $region44: #{tpu_custom_call.1} parent=11 // pred_fallthru
          _
        // Predicated region
        $region45: #{tpu_custom_call.1} parent=11 // pred_check
          %p313 = pneg %p246
        $region46: #{tpu_custom_call.1} parent=11 // pred_check_branch
          %315 = sbr.rel (%p313) target = $region48
        $region47: #{tpu_custom_call.1} parent=11 // pred_region
          _
        $region48: #{tpu_custom_call.1} parent=11 // pred_fallthru
          _
      $region12: #{tpu_custom_call.1} parent=5 // pred_fallthru
        _
      %p316 = scmp.lt.s32.totalorder %s19, 4
      // Predicated region
      $region49: #{tpu_custom_call.1} parent=5 // pred_check
        %p317 = pneg %p316
      $region50: #{tpu_custom_call.1} parent=5 // pred_check_branch
        %319 = sbr.rel (%p317) target = $region52
      $region51: #{tpu_custom_call.1} parent=5 // pred_region
        // Predicated region
        $region53: #{tpu_custom_call.1} parent=51 // pred_check
          %p320 = pneg %p51
        $region54: #{tpu_custom_call.1} parent=51 // pred_check_branch
          %322 = sbr.rel (%p320) target = $region56
        $region55: #{tpu_custom_call.1} parent=51 // pred_region
          %p323 = scmp.lt.s32.totalorder %s26, 1
          %s324 = scalar_select %p323, %s26, 1
          %s325 = smul.addr %s324, 12
          %s326 = smul.addr %s325, 8
          %s327 = scalar_lea.vmem %s0, %s326
        $region56: #{tpu_custom_call.1} parent=51 // pred_fallthru
          _
      $region52: #{tpu_custom_call.1} parent=5 // pred_fallthru
        _
      %p328 = scmp.le.s32.totalorder 1, %s19
      %p329 = scmp.lt.s32.totalorder %s19, 5
      %p330 = pnand %p328, %p329
      %p331 = pneg %p330
      // Predicated region
      $region57: #{tpu_custom_call.1} parent=5 // pred_check
        _
      $region58: #{tpu_custom_call.1} parent=5 // pred_check_branch
        %333 = sbr.rel (%p330) target = $region60
      $region59: #{tpu_custom_call.1} parent=5 // pred_region
        %s334 = ssub.s32 %s19, 1
        %p335 = scmp.lt.s32.totalorder %s28, 1
        %s336 = scalar_select %p335, %s28, 1
        %s337 = smul.addr %s336, 12
        %s338 = smul.addr %s337, 8
        %s339 = scalar_lea.vmem %s0, %s338
        %p340 = pneg %p57
        %p341 = pneg %p54
        %p342 = pneg %p78
        %p343 = pneg %p75
        %p344 = pneg %p99
        %p345 = pneg %p96
        %p346 = pneg %p120
        %p347 = pneg %p117
        %p348 = pneg %p141
        %p349 = pneg %p138
        %p350 = pneg %p162
        %p351 = pneg %p159
        %p352 = pneg %p183
        %p353 = pneg %p180
        %p354 = pneg %p204
        %p355 = pneg %p201
        %p356 = pneg %p225
        %p357 = pneg %p222
        %p358 = pneg %p246
        %p359 = pneg %p243
        %p360 = pneg %p274
        %p361 = pneg %p271
        %s362 = sand.u32 %s261, 1
        %s363 = scalar_lea.sflag [#allocation3], %s362
        %s364 = sand.u32 %s261, 1
        %s365 = smul.addr %s364, 4
        %s366 = scalar_lea.vmem [#allocation2], %s365
        %p367 = scmp.lt.s32.totalorder %s28, 1
        %s368 = scalar_select %p367, %s28, 1
        %s369 = smul.addr %s368, 12
        %s370 = smul.addr %s369, 8
        %s371 = scalar_lea.vmem %s0, %s370
        %s372 = smul.u32 %s29, 8
        %s373 = scalar_lea.vmem %s371, %s372
        %v374 = vld [vmem:[%s373] sm:$0xff]
        %v375 = vld [vmem:[%s373 + $0x8] sm:$0xf]
        %v376 = vld [vmem:[%s373 + $0x18] sm:$0xff]
        %v377 = vld [vmem:[%s373 + $0x20] sm:$0xf]
        %v378 = vld [vmem:[%s373 + $0x30] sm:$0xff]
        %v379 = vld [vmem:[%s373 + $0x38] sm:$0xf]
        %v380 = vld [vmem:[%s373 + $0x48] sm:$0xff]
        %v381 = vld [vmem:[%s373 + $0x50] sm:$0xf]
        %v382 = vld [vmem:[%s1] sm:$0x1]
        %v383 = vld [vmem:[%s1 + $0x1] sm:$0x1]
        %v384 = vld [vmem:[%s1 + $0x2] sm:$0x1]
        %v385 = vld [vmem:[%s1 + $0x3] sm:$0x1]
        %v386 = vld [vmem:[%s1 + $0x4] sm:$0x1]
        %v387 = vld [vmem:[%s1 + $0x5] sm:$0x1]
        %v388 = vld [vmem:[%s1 + $0x6] sm:$0x1]
        %v389 = vld [vmem:[%s1 + $0x7] sm:$0x1]
        %v398 = vperm.slane %v382, 0
        %v399 = vperm.slane %v383, 0
        %v400 = vperm.slane %v384, 0
        %v401 = vperm.slane %v385, 0
        %v402 = vperm.slane %v386, 0
        %v403 = vperm.slane %v387, 0
        %v404 = vperm.slane %v388, 0
        %v405 = vperm.slane %v389, 0
        %406 = vset.pattern.permute.xlu0 0
        %407 = vperm.xlu0 %406, %v398
        %v408 = vpop.permute.xlu0 %407
        %410 = vset.pattern.permute.xlu0 0
        %411 = vperm.xlu0 %410, %v399
        %v412 = vpop.permute.xlu0 %411
        %414 = vset.pattern.permute.xlu0 0
        %415 = vperm.xlu0 %414, %v400
        %v416 = vpop.permute.xlu0 %415
        %418 = vset.pattern.permute.xlu0 0
        %419 = vperm.xlu0 %418, %v401
        %v420 = vpop.permute.xlu0 %419
        %422 = vset.pattern.permute.xlu0 0
        %423 = vperm.xlu0 %422, %v402
        %v424 = vpop.permute.xlu0 %423
        %426 = vset.pattern.permute.xlu0 0
        %427 = vperm.xlu0 %426, %v403
        %v428 = vpop.permute.xlu0 %427
        %430 = vset.pattern.permute.xlu0 0
        %431 = vperm.xlu0 %430, %v404
        %v432 = vpop.permute.xlu0 %431
        %434 = vset.pattern.permute.xlu0 0
        %435 = vperm.xlu0 %434, %v405
        %v436 = vpop.permute.xlu0 %435
        %v438 = vmul.f32 %v374, %v408
        %v439 = vmul.f32 %v375, %v408
        %v440 = vmul.f32 %v374, %v412
        %v441 = vmul.f32 %v375, %v412
        %v442 = vmul.f32 %v374, %v416
        %v443 = vmul.f32 %v375, %v416
        %v444 = vmul.f32 %v374, %v420
        %v445 = vmul.f32 %v375, %v420
        %v446 = vmul.f32 %v374, %v424
        %v447 = vmul.f32 %v375, %v424
        %v448 = vmul.f32 %v374, %v428
        %v449 = vmul.f32 %v375, %v428
        %v450 = vmul.f32 %v374, %v432
        %v451 = vmul.f32 %v375, %v432
        %v452 = vmul.f32 %v374, %v436
        %v453 = vmul.f32 %v375, %v436
        %s454 = scalar_lea.vmem %s1, 8
        %v455 = vld [vmem:[%s454] sm:$0x1]
        %v456 = vld [vmem:[%s454 + $0x1] sm:$0x1]
        %v457 = vld [vmem:[%s454 + $0x2] sm:$0x1]
        %v458 = vld [vmem:[%s454 + $0x3] sm:$0x1]
        %v459 = vld [vmem:[%s454 + $0x4] sm:$0x1]
        %v460 = vld [vmem:[%s454 + $0x5] sm:$0x1]
        %v461 = vld [vmem:[%s454 + $0x6] sm:$0x1]
        %v462 = vld [vmem:[%s454 + $0x7] sm:$0x1]
        %v471 = vperm.slane %v455, 0
        %v472 = vperm.slane %v456, 0
        %v473 = vperm.slane %v457, 0
        %v474 = vperm.slane %v458, 0
        %v475 = vperm.slane %v459, 0
        %v476 = vperm.slane %v460, 0
        %v477 = vperm.slane %v461, 0
        %v478 = vperm.slane %v462, 0
        %479 = vset.pattern.permute.xlu0 0
        %480 = vperm.xlu0 %479, %v471
        %v481 = vpop.permute.xlu0 %480
        %483 = vset.pattern.permute.xlu0 0
        %484 = vperm.xlu0 %483, %v472
        %v485 = vpop.permute.xlu0 %484
        %487 = vset.pattern.permute.xlu0 0
        %488 = vperm.xlu0 %487, %v473
        %v489 = vpop.permute.xlu0 %488
        %491 = vset.pattern.permute.xlu0 0
        %492 = vperm.xlu0 %491, %v474
        %v493 = vpop.permute.xlu0 %492
        %495 = vset.pattern.permute.xlu0 0
        %496 = vperm.xlu0 %495, %v475
        %v497 = vpop.permute.xlu0 %496
        %499 = vset.pattern.permute.xlu0 0
        %500 = vperm.xlu0 %499, %v476
        %v501 = vpop.permute.xlu0 %500
        %503 = vset.pattern.permute.xlu0 0
        %504 = vperm.xlu0 %503, %v477
        %v505 = vpop.permute.xlu0 %504
        %507 = vset.pattern.permute.xlu0 0
        %508 = vperm.xlu0 %507, %v478
        %v509 = vpop.permute.xlu0 %508
        %v511 = vmul.f32 %v376, %v481
        %v512 = vmul.f32 %v377, %v481
        %v513 = vmul.f32 %v376, %v485
        %v514 = vmul.f32 %v377, %v485
        %v515 = vmul.f32 %v376, %v489
        %v516 = vmul.f32 %v377, %v489
        %v517 = vmul.f32 %v376, %v493
        %v518 = vmul.f32 %v377, %v493
        %v519 = vmul.f32 %v376, %v497
        %v520 = vmul.f32 %v377, %v497
        %v521 = vmul.f32 %v376, %v501
        %v522 = vmul.f32 %v377, %v501
        %v523 = vmul.f32 %v376, %v505
        %v524 = vmul.f32 %v377, %v505
        %v525 = vmul.f32 %v376, %v509
        %v526 = vmul.f32 %v377, %v509
        %v527 = vadd.f32 %v438, %v511
        %v528 = vadd.f32 %v439, %v512
        %v529 = vadd.f32 %v440, %v513
        %v530 = vadd.f32 %v441, %v514
        %v531 = vadd.f32 %v442, %v515
        %v532 = vadd.f32 %v443, %v516
        %v533 = vadd.f32 %v444, %v517
        %v534 = vadd.f32 %v445, %v518
        %v535 = vadd.f32 %v446, %v519
        %v536 = vadd.f32 %v447, %v520
        %v537 = vadd.f32 %v448, %v521
        %v538 = vadd.f32 %v449, %v522
        %v539 = vadd.f32 %v450, %v523
        %v540 = vadd.f32 %v451, %v524
        %v541 = vadd.f32 %v452, %v525
        %v542 = vadd.f32 %v453, %v526
        %s543 = scalar_lea.vmem %s1, 16
        %v544 = vld [vmem:[%s543] sm:$0x1]
        %v545 = vld [vmem:[%s543 + $0x1] sm:$0x1]
        %v546 = vld [vmem:[%s543 + $0x2] sm:$0x1]
        %v547 = vld [vmem:[%s543 + $0x3] sm:$0x1]
        %v548 = vld [vmem:[%s543 + $0x4] sm:$0x1]
        %v549 = vld [vmem:[%s543 + $0x5] sm:$0x1]
        %v550 = vld [vmem:[%s543 + $0x6] sm:$0x1]
        %v551 = vld [vmem:[%s543 + $0x7] sm:$0x1]
        %v560 = vperm.slane %v544, 0
        %v561 = vperm.slane %v545, 0
        %v562 = vperm.slane %v546, 0
        %v563 = vperm.slane %v547, 0
        %v564 = vperm.slane %v548, 0
        %v565 = vperm.slane %v549, 0
        %v566 = vperm.slane %v550, 0
        %v567 = vperm.slane %v551, 0
        %568 = vset.pattern.permute.xlu0 0
        %569 = vperm.xlu0 %568, %v560
        %v570 = vpop.permute.xlu0 %569
        %572 = vset.pattern.permute.xlu0 0
        %573 = vperm.xlu0 %572, %v561
        %v574 = vpop.permute.xlu0 %573
        %576 = vset.pattern.permute.xlu0 0
        %577 = vperm.xlu0 %576, %v562
        %v578 = vpop.permute.xlu0 %577
        %580 = vset.pattern.permute.xlu0 0
        %581 = vperm.xlu0 %580, %v563
        %v582 = vpop.permute.xlu0 %581
        %584 = vset.pattern.permute.xlu0 0
        %585 = vperm.xlu0 %584, %v564
        %v586 = vpop.permute.xlu0 %585
        %588 = vset.pattern.permute.xlu0 0
        %589 = vperm.xlu0 %588, %v565
        %v590 = vpop.permute.xlu0 %589
        %592 = vset.pattern.permute.xlu0 0
        %593 = vperm.xlu0 %592, %v566
        %v594 = vpop.permute.xlu0 %593
        %596 = vset.pattern.permute.xlu0 0
        %597 = vperm.xlu0 %596, %v567
        %v598 = vpop.permute.xlu0 %597
        %v600 = vmul.f32 %v378, %v570
        %v601 = vmul.f32 %v379, %v570
        %v602 = vmul.f32 %v378, %v574
        %v603 = vmul.f32 %v379, %v574
        %v604 = vmul.f32 %v378, %v578
        %v605 = vmul.f32 %v379, %v578
        %v606 = vmul.f32 %v378, %v582
        %v607 = vmul.f32 %v379, %v582
        %v608 = vmul.f32 %v378, %v586
        %v609 = vmul.f32 %v379, %v586
        %v610 = vmul.f32 %v378, %v590
        %v611 = vmul.f32 %v379, %v590
        %v612 = vmul.f32 %v378, %v594
        %v613 = vmul.f32 %v379, %v594
        %v614 = vmul.f32 %v378, %v598
        %v615 = vmul.f32 %v379, %v598
        %v616 = vadd.f32 %v527, %v600
        %v617 = vadd.f32 %v528, %v601
        %v618 = vadd.f32 %v529, %v602
        %v619 = vadd.f32 %v530, %v603
        %v620 = vadd.f32 %v531, %v604
        %v621 = vadd.f32 %v532, %v605
        %v622 = vadd.f32 %v533, %v606
        %v623 = vadd.f32 %v534, %v607
        %v624 = vadd.f32 %v535, %v608
        %v625 = vadd.f32 %v536, %v609
        %v626 = vadd.f32 %v537, %v610
        %v627 = vadd.f32 %v538, %v611
        %v628 = vadd.f32 %v539, %v612
        %v629 = vadd.f32 %v540, %v613
        %v630 = vadd.f32 %v541, %v614
        %v631 = vadd.f32 %v542, %v615
        %s632 = scalar_lea.vmem %s1, 24
        %v633 = vld [vmem:[%s632] sm:$0x1]
        %v634 = vld [vmem:[%s632 + $0x1] sm:$0x1]
        %v635 = vld [vmem:[%s632 + $0x2] sm:$0x1]
        %v636 = vld [vmem:[%s632 + $0x3] sm:$0x1]
        %v637 = vld [vmem:[%s632 + $0x4] sm:$0x1]
        %v638 = vld [vmem:[%s632 + $0x5] sm:$0x1]
        %v639 = vld [vmem:[%s632 + $0x6] sm:$0x1]
        %v640 = vld [vmem:[%s632 + $0x7] sm:$0x1]
        %v649 = vperm.slane %v633, 0
        %v650 = vperm.slane %v634, 0
        %v651 = vperm.slane %v635, 0
        %v652 = vperm.slane %v636, 0
        %v653 = vperm.slane %v637, 0
        %v654 = vperm.slane %v638, 0
        %v655 = vperm.slane %v639, 0
        %v656 = vperm.slane %v640, 0
        %657 = vset.pattern.permute.xlu0 0
        %658 = vperm.xlu0 %657, %v649
        %v659 = vpop.permute.xlu0 %658
        %661 = vset.pattern.permute.xlu0 0
        %662 = vperm.xlu0 %661, %v650
        %v663 = vpop.permute.xlu0 %662
        %665 = vset.pattern.permute.xlu0 0
        %666 = vperm.xlu0 %665, %v651
        %v667 = vpop.permute.xlu0 %666
        %669 = vset.pattern.permute.xlu0 0
        %670 = vperm.xlu0 %669, %v652
        %v671 = vpop.permute.xlu0 %670
        %673 = vset.pattern.permute.xlu0 0
        %674 = vperm.xlu0 %673, %v653
        %v675 = vpop.permute.xlu0 %674
        %677 = vset.pattern.permute.xlu0 0
        %678 = vperm.xlu0 %677, %v654
        %v679 = vpop.permute.xlu0 %678
        %681 = vset.pattern.permute.xlu0 0
        %682 = vperm.xlu0 %681, %v655
        %v683 = vpop.permute.xlu0 %682
        %685 = vset.pattern.permute.xlu0 0
        %686 = vperm.xlu0 %685, %v656
        %v687 = vpop.permute.xlu0 %686
        %v689 = vmul.f32 %v380, %v659
        %v690 = vmul.f32 %v381, %v659
        %v691 = vmul.f32 %v380, %v663
        %v692 = vmul.f32 %v381, %v663
        %v693 = vmul.f32 %v380, %v667
        %v694 = vmul.f32 %v381, %v667
        %v695 = vmul.f32 %v380, %v671
        %v696 = vmul.f32 %v381, %v671
        %v697 = vmul.f32 %v380, %v675
        %v698 = vmul.f32 %v381, %v675
        %v699 = vmul.f32 %v380, %v679
        %v700 = vmul.f32 %v381, %v679
        %v701 = vmul.f32 %v380, %v683
        %v702 = vmul.f32 %v381, %v683
        %v703 = vmul.f32 %v380, %v687
        %v704 = vmul.f32 %v381, %v687
        %v705 = vadd.f32 %v616, %v689
        %v706 = vadd.f32 %v617, %v690
        %v707 = vadd.f32 %v618, %v691
        %v708 = vadd.f32 %v619, %v692
        %v709 = vadd.f32 %v620, %v693
        %v710 = vadd.f32 %v621, %v694
        %v711 = vadd.f32 %v622, %v695
        %v712 = vadd.f32 %v623, %v696
        %v713 = vadd.f32 %v624, %v697
        %v714 = vadd.f32 %v625, %v698
        %v715 = vadd.f32 %v626, %v699
        %v716 = vadd.f32 %v627, %v700
        %v717 = vadd.f32 %v628, %v701
        %v718 = vadd.f32 %v629, %v702
        %v719 = vadd.f32 %v630, %v703
        %v720 = vadd.f32 %v631, %v704
        %v721 = vld [vmem:[%s2] sm:$0x1]
        %v722 = vld [vmem:[%s2 + $0x1] sm:$0x1]
        %v723 = vld [vmem:[%s2 + $0x2] sm:$0x1]
        %v724 = vld [vmem:[%s2 + $0x3] sm:$0x1]
        %v725 = vld [vmem:[%s2 + $0x4] sm:$0x1]
        %v726 = vld [vmem:[%s2 + $0x5] sm:$0x1]
        %v727 = vld [vmem:[%s2 + $0x6] sm:$0x1]
        %v728 = vld [vmem:[%s2 + $0x7] sm:$0x1]
        %v737 = vperm.slane %v721, 0
        %v738 = vperm.slane %v722, 0
        %v739 = vperm.slane %v723, 0
        %v740 = vperm.slane %v724, 0
        %v741 = vperm.slane %v725, 0
        %v742 = vperm.slane %v726, 0
        %v743 = vperm.slane %v727, 0
        %v744 = vperm.slane %v728, 0
        %745 = vset.pattern.permute.xlu0 0
        %746 = vperm.xlu0 %745, %v737
        %v747 = vpop.permute.xlu0 %746
        %749 = vset.pattern.permute.xlu0 0
        %750 = vperm.xlu0 %749, %v738
        %v751 = vpop.permute.xlu0 %750
        %753 = vset.pattern.permute.xlu0 0
        %754 = vperm.xlu0 %753, %v739
        %v755 = vpop.permute.xlu0 %754
        %757 = vset.pattern.permute.xlu0 0
        %758 = vperm.xlu0 %757, %v740
        %v759 = vpop.permute.xlu0 %758
        %761 = vset.pattern.permute.xlu0 0
        %762 = vperm.xlu0 %761, %v741
        %v763 = vpop.permute.xlu0 %762
        %765 = vset.pattern.permute.xlu0 0
        %766 = vperm.xlu0 %765, %v742
        %v767 = vpop.permute.xlu0 %766
        %769 = vset.pattern.permute.xlu0 0
        %770 = vperm.xlu0 %769, %v743
        %v771 = vpop.permute.xlu0 %770
        %773 = vset.pattern.permute.xlu0 0
        %774 = vperm.xlu0 %773, %v744
        %v775 = vpop.permute.xlu0 %774
        %v777 = vmul.f32 %v705, %v747
        %v778 = vmul.f32 %v706, %v747
        %v779 = vmul.f32 %v707, %v751
        %v780 = vmul.f32 %v708, %v751
        %v781 = vmul.f32 %v709, %v755
        %v782 = vmul.f32 %v710, %v755
        %v783 = vmul.f32 %v711, %v759
        %v784 = vmul.f32 %v712, %v759
        %v785 = vmul.f32 %v713, %v763
        %v786 = vmul.f32 %v714, %v763
        %v787 = vmul.f32 %v715, %v767
        %v788 = vmul.f32 %v716, %v767
        %v789 = vmul.f32 %v717, %v771
        %v790 = vmul.f32 %v718, %v771
        %v791 = vmul.f32 %v719, %v775
        %v792 = vmul.f32 %v720, %v775
        %v793 = vld [vmem:[%s3] sm:$0x1]
        %v794 = vld [vmem:[%s3 + $0x1] sm:$0x1]
        %v795 = vld [vmem:[%s3 + $0x2] sm:$0x1]
        %v796 = vld [vmem:[%s3 + $0x3] sm:$0x1]
        %v797 = vld [vmem:[%s3 + $0x4] sm:$0x1]
        %v798 = vld [vmem:[%s3 + $0x5] sm:$0x1]
        %v799 = vld [vmem:[%s3 + $0x6] sm:$0x1]
        %v800 = vld [vmem:[%s3 + $0x7] sm:$0x1]
        %v809 = vperm.slane %v793, 0
        %v810 = vperm.slane %v794, 0
        %v811 = vperm.slane %v795, 0
        %v812 = vperm.slane %v796, 0
        %v813 = vperm.slane %v797, 0
        %v814 = vperm.slane %v798, 0
        %v815 = vperm.slane %v799, 0
        %v816 = vperm.slane %v800, 0
        %817 = vset.pattern.permute.xlu0 0
        %818 = vperm.xlu0 %817, %v809
        %v819 = vpop.permute.xlu0 %818
        %821 = vset.pattern.permute.xlu0 0
        %822 = vperm.xlu0 %821, %v810
        %v823 = vpop.permute.xlu0 %822
        %825 = vset.pattern.permute.xlu0 0
        %826 = vperm.xlu0 %825, %v811
        %v827 = vpop.permute.xlu0 %826
        %829 = vset.pattern.permute.xlu0 0
        %830 = vperm.xlu0 %829, %v812
        %v831 = vpop.permute.xlu0 %830
        %833 = vset.pattern.permute.xlu0 0
        %834 = vperm.xlu0 %833, %v813
        %v835 = vpop.permute.xlu0 %834
        %837 = vset.pattern.permute.xlu0 0
        %838 = vperm.xlu0 %837, %v814
        %v839 = vpop.permute.xlu0 %838
        %841 = vset.pattern.permute.xlu0 0
        %842 = vperm.xlu0 %841, %v815
        %v843 = vpop.permute.xlu0 %842
        %845 = vset.pattern.permute.xlu0 0
        %846 = vperm.xlu0 %845, %v816
        %v847 = vpop.permute.xlu0 %846
        %v849 = vadd.f32 %v777, %v819
        %v850 = vadd.f32 %v778, %v819
        %v851 = vadd.f32 %v779, %v823
        %v852 = vadd.f32 %v780, %v823
        %v853 = vadd.f32 %v781, %v827
        %v854 = vadd.f32 %v782, %v827
        %v855 = vadd.f32 %v783, %v831
        %v856 = vadd.f32 %v784, %v831
        %v857 = vadd.f32 %v785, %v835
        %v858 = vadd.f32 %v786, %v835
        %v859 = vadd.f32 %v787, %v839
        %v860 = vadd.f32 %v788, %v839
        %v861 = vadd.f32 %v789, %v843
        %v862 = vadd.f32 %v790, %v843
        %v863 = vadd.f32 %v791, %v847
        %v864 = vadd.f32 %v792, %v847
        %v865 = vmax.f32 %v849, 0.0
        %v866 = vmax.f32 %v850, 0.0
        %v867 = vmax.f32 %v851, 0.0
        %v868 = vmax.f32 %v852, 0.0
        %v869 = vmax.f32 %v853, 0.0
        %v870 = vmax.f32 %v854, 0.0
        %v871 = vmax.f32 %v855, 0.0
        %v872 = vmax.f32 %v856, 0.0
        %v873 = vmax.f32 %v857, 0.0
        %v874 = vmax.f32 %v858, 0.0
        %v875 = vmax.f32 %v859, 0.0
        %v876 = vmax.f32 %v860, 0.0
        %v877 = vmax.f32 %v861, 0.0
        %v878 = vmax.f32 %v862, 0.0
        %v879 = vmax.f32 %v863, 0.0
        %v880 = vmax.f32 %v864, 0.0
        %v881 = vlaneseq
        %v882 = vshrl.u32 %v881, 7
        %v883 = vadd.s32 %v882, 8
        %v884 = vstv %s372
        %v885 = vadd.s32 %v884, %v882
        %v886 = vadd.s32 %v884, %v883
        %v887 = vlaneseq
        %v888 = vand.u32 %v887, 127
        %vm889 = vcmp.ge.s32.totalorder %v885, 2
        %vm890 = vcmp.ge.s32.totalorder %v886, 2
        %vm891 = vcmp.lt.s32.totalorder %v885, 18
        %vm892 = vcmp.lt.s32.totalorder %v886, 18
        %vm893 = vmand %vm889, %vm891
        %vm894 = vmand %vm890, %vm892
        %vm895 = vcmp.ge.s32.totalorder %v888, 2
        %vm896 = vmand %vm893, %vm895
        %vm897 = vmand %vm894, %vm895
        %vm898 = vcmp.lt.s32.totalorder %v888, 18
        %vm899 = vmand %vm896, %vm898
        %vm900 = vmand %vm897, %vm898
        %v901 = vsel %vm899, 1, 0
        %v902 = vsel %vm900, 1, 0
        %vm903 = vcmp.eq.s32.totalorder %v901, 1
        %vm904 = vcmp.eq.s32.totalorder %v902, 1
        %v905 = vsel %vm903, %v865, 0.0
        %v906 = vsel %vm904, %v866, 0.0
        %v907 = vsel %vm903, %v867, 0.0
        %v908 = vsel %vm904, %v868, 0.0
        %v909 = vsel %vm903, %v869, 0.0
        %v910 = vsel %vm904, %v870, 0.0
        %v911 = vsel %vm903, %v871, 0.0
        %v912 = vsel %vm904, %v872, 0.0
        %v913 = vsel %vm903, %v873, 0.0
        %v914 = vsel %vm904, %v874, 0.0
        %v915 = vsel %vm903, %v875, 0.0
        %v916 = vsel %vm904, %v876, 0.0
        %v917 = vsel %vm903, %v877, 0.0
        %v918 = vsel %vm904, %v878, 0.0
        %v919 = vsel %vm903, %v879, 0.0
        %v920 = vsel %vm904, %v880, 0.0
        %v921 = vld [vmem:[%s4] sm:$0x1]
        %v922 = vld [vmem:[%s4 + $0x1] sm:$0x1]
        %v923 = vld [vmem:[%s4 + $0x2] sm:$0x1]
        %v924 = vld [vmem:[%s4 + $0x3] sm:$0x1]
        %v925 = vld [vmem:[%s4 + $0x4] sm:$0x1]
        %v926 = vld [vmem:[%s4 + $0x5] sm:$0x1]
        %v927 = vld [vmem:[%s4 + $0x6] sm:$0x1]
        %v928 = vld [vmem:[%s4 + $0x7] sm:$0x1]
        %v937 = vperm.slane %v921, 0
        %v938 = vperm.slane %v922, 0
        %v939 = vperm.slane %v923, 0
        %v940 = vperm.slane %v924, 0
        %v941 = vperm.slane %v925, 0
        %v942 = vperm.slane %v926, 0
        %v943 = vperm.slane %v927, 0
        %v944 = vperm.slane %v928, 0
        %945 = vset.pattern.permute.xlu0 0
        %946 = vperm.xlu0 %945, %v937
        %v947 = vpop.permute.xlu0 %946
        %949 = vset.pattern.permute.xlu0 0
        %950 = vperm.xlu0 %949, %v938
        %v951 = vpop.permute.xlu0 %950
        %953 = vset.pattern.permute.xlu0 0
        %954 = vperm.xlu0 %953, %v939
        %v955 = vpop.permute.xlu0 %954
        %957 = vset.pattern.permute.xlu0 0
        %958 = vperm.xlu0 %957, %v940
        %v959 = vpop.permute.xlu0 %958
        %961 = vset.pattern.permute.xlu0 0
        %962 = vperm.xlu0 %961, %v941
        %v963 = vpop.permute.xlu0 %962
        %965 = vset.pattern.permute.xlu0 0
        %966 = vperm.xlu0 %965, %v942
        %v967 = vpop.permute.xlu0 %966
        %969 = vset.pattern.permute.xlu0 0
        %970 = vperm.xlu0 %969, %v943
        %v971 = vpop.permute.xlu0 %970
        %973 = vset.pattern.permute.xlu0 0
        %974 = vperm.xlu0 %973, %v944
        %v975 = vpop.permute.xlu0 %974
        %v977 = vmul.f32 %v905, %v947
        %v978 = vmul.f32 %v907, %v951
        %v979 = vmul.f32 %v909, %v955
        %v980 = vmul.f32 %v911, %v959
        %v981 = vmul.f32 %v913, %v963
        %v982 = vmul.f32 %v915, %v967
        %v983 = vmul.f32 %v917, %v971
        %v984 = vmul.f32 %v919, %v975
        %v985 = vadd.f32 %v977, 0.0
        %v986 = vadd.f32 %v978, 0.0
        %v987 = vadd.f32 %v979, 0.0
        %v988 = vadd.f32 %v980, 0.0
        %v989 = vadd.f32 %v981, 0.0
        %v990 = vadd.f32 %v982, 0.0
        %v991 = vadd.f32 %v983, 0.0
        %v992 = vadd.f32 %v984, 0.0
        %s993 = scalar_lea.vmem %s4, 8
        %v994 = vld [vmem:[%s993] sm:$0x1]
        %v995 = vld [vmem:[%s993 + $0x1] sm:$0x1]
        %v996 = vld [vmem:[%s993 + $0x2] sm:$0x1]
        %v997 = vld [vmem:[%s993 + $0x3] sm:$0x1]
        %v998 = vld [vmem:[%s993 + $0x4] sm:$0x1]
        %v999 = vld [vmem:[%s993 + $0x5] sm:$0x1]
        %v1000 = vld [vmem:[%s993 + $0x6] sm:$0x1]
        %v1001 = vld [vmem:[%s993 + $0x7] sm:$0x1]
        %v1010 = vperm.slane %v994, 0
        %v1011 = vperm.slane %v995, 0
        %v1012 = vperm.slane %v996, 0
        %v1013 = vperm.slane %v997, 0
        %v1014 = vperm.slane %v998, 0
        %v1015 = vperm.slane %v999, 0
        %v1016 = vperm.slane %v1000, 0
        %v1017 = vperm.slane %v1001, 0
        %1018 = vset.pattern.permute.xlu0 0
        %1019 = vperm.xlu0 %1018, %v1010
        %v1020 = vpop.permute.xlu0 %1019
        %1022 = vset.pattern.permute.xlu0 0
        %1023 = vperm.xlu0 %1022, %v1011
        %v1024 = vpop.permute.xlu0 %1023
        %1026 = vset.pattern.permute.xlu0 0
        %1027 = vperm.xlu0 %1026, %v1012
        %v1028 = vpop.permute.xlu0 %1027
        %1030 = vset.pattern.permute.xlu0 0
        %1031 = vperm.xlu0 %1030, %v1013
        %v1032 = vpop.permute.xlu0 %1031
        %1034 = vset.pattern.permute.xlu0 0
        %1035 = vperm.xlu0 %1034, %v1014
        %v1036 = vpop.permute.xlu0 %1035
        %1038 = vset.pattern.permute.xlu0 0
        %1039 = vperm.xlu0 %1038, %v1015
        %v1040 = vpop.permute.xlu0 %1039
        %1042 = vset.pattern.permute.xlu0 0
        %1043 = vperm.xlu0 %1042, %v1016
        %v1044 = vpop.permute.xlu0 %1043
        %1046 = vset.pattern.permute.xlu0 0
        %1047 = vperm.xlu0 %1046, %v1017
        %v1048 = vpop.permute.xlu0 %1047
        %v1050 = vmul.f32 %v905, %v1020
        %v1051 = vmul.f32 %v907, %v1024
        %v1052 = vmul.f32 %v909, %v1028
        %v1053 = vmul.f32 %v911, %v1032
        %v1054 = vmul.f32 %v913, %v1036
        %v1055 = vmul.f32 %v915, %v1040
        %v1056 = vmul.f32 %v917, %v1044
        %v1057 = vmul.f32 %v919, %v1048
        %1066 = vrot.lane.b32.xlu0 %v1050, 127
        %v1067 = vpop.permute.xlu0 %1066
        %1068 = vrot.lane.b32.xlu0 %v1051, 127
        %v1069 = vpop.permute.xlu0 %1068
        %1070 = vrot.lane.b32.xlu0 %v1052, 127
        %v1071 = vpop.permute.xlu0 %1070
        %1072 = vrot.lane.b32.xlu0 %v1053, 127
        %v1073 = vpop.permute.xlu0 %1072
        %1074 = vrot.lane.b32.xlu0 %v1054, 127
        %v1075 = vpop.permute.xlu0 %1074
        %1076 = vrot.lane.b32.xlu0 %v1055, 127
        %v1077 = vpop.permute.xlu0 %1076
        %1078 = vrot.lane.b32.xlu0 %v1056, 127
        %v1079 = vpop.permute.xlu0 %1078
        %1080 = vrot.lane.b32.xlu0 %v1057, 127
        %v1081 = vpop.permute.xlu0 %1080
        %v1090 = vadd.f32 %v985, %v1067
        %v1091 = vadd.f32 %v986, %v1069
        %v1092 = vadd.f32 %v987, %v1071
        %v1093 = vadd.f32 %v988, %v1073
        %v1094 = vadd.f32 %v989, %v1075
        %v1095 = vadd.f32 %v990, %v1077
        %v1096 = vadd.f32 %v991, %v1079
        %v1097 = vadd.f32 %v992, %v1081
        %s1098 = scalar_lea.vmem %s4, 16
        %v1099 = vld [vmem:[%s1098] sm:$0x1]
        %v1100 = vld [vmem:[%s1098 + $0x1] sm:$0x1]
        %v1101 = vld [vmem:[%s1098 + $0x2] sm:$0x1]
        %v1102 = vld [vmem:[%s1098 + $0x3] sm:$0x1]
        %v1103 = vld [vmem:[%s1098 + $0x4] sm:$0x1]
        %v1104 = vld [vmem:[%s1098 + $0x5] sm:$0x1]
        %v1105 = vld [vmem:[%s1098 + $0x6] sm:$0x1]
        %v1106 = vld [vmem:[%s1098 + $0x7] sm:$0x1]
        %v1115 = vperm.slane %v1099, 0
        %v1116 = vperm.slane %v1100, 0
        %v1117 = vperm.slane %v1101, 0
        %v1118 = vperm.slane %v1102, 0
        %v1119 = vperm.slane %v1103, 0
        %v1120 = vperm.slane %v1104, 0
        %v1121 = vperm.slane %v1105, 0
        %v1122 = vperm.slane %v1106, 0
        %1123 = vset.pattern.permute.xlu0 0
        %1124 = vperm.xlu0 %1123, %v1115
        %v1125 = vpop.permute.xlu0 %1124
        %1127 = vset.pattern.permute.xlu0 0
        %1128 = vperm.xlu0 %1127, %v1116
        %v1129 = vpop.permute.xlu0 %1128
        %1131 = vset.pattern.permute.xlu0 0
        %1132 = vperm.xlu0 %1131, %v1117
        %v1133 = vpop.permute.xlu0 %1132
        %1135 = vset.pattern.permute.xlu0 0
        %1136 = vperm.xlu0 %1135, %v1118
        %v1137 = vpop.permute.xlu0 %1136
        %1139 = vset.pattern.permute.xlu0 0
        %1140 = vperm.xlu0 %1139, %v1119
        %v1141 = vpop.permute.xlu0 %1140
        %1143 = vset.pattern.permute.xlu0 0
        %1144 = vperm.xlu0 %1143, %v1120
        %v1145 = vpop.permute.xlu0 %1144
        %1147 = vset.pattern.permute.xlu0 0
        %1148 = vperm.xlu0 %1147, %v1121
        %v1149 = vpop.permute.xlu0 %1148
        %1151 = vset.pattern.permute.xlu0 0
        %1152 = vperm.xlu0 %1151, %v1122
        %v1153 = vpop.permute.xlu0 %1152
        %v1155 = vmul.f32 %v905, %v1125
        %v1156 = vmul.f32 %v907, %v1129
        %v1157 = vmul.f32 %v909, %v1133
        %v1158 = vmul.f32 %v911, %v1137
        %v1159 = vmul.f32 %v913, %v1141
        %v1160 = vmul.f32 %v915, %v1145
        %v1161 = vmul.f32 %v917, %v1149
        %v1162 = vmul.f32 %v919, %v1153
        %1171 = vrot.lane.b32.xlu0 %v1155, 126
        %v1172 = vpop.permute.xlu0 %1171
        %1173 = vrot.lane.b32.xlu0 %v1156, 126
        %v1174 = vpop.permute.xlu0 %1173
        %1175 = vrot.lane.b32.xlu0 %v1157, 126
        %v1176 = vpop.permute.xlu0 %1175
        %1177 = vrot.lane.b32.xlu0 %v1158, 126
        %v1178 = vpop.permute.xlu0 %1177
        %1179 = vrot.lane.b32.xlu0 %v1159, 126
        %v1180 = vpop.permute.xlu0 %1179
        %1181 = vrot.lane.b32.xlu0 %v1160, 126
        %v1182 = vpop.permute.xlu0 %1181
        %1183 = vrot.lane.b32.xlu0 %v1161, 126
        %v1184 = vpop.permute.xlu0 %1183
        %1185 = vrot.lane.b32.xlu0 %v1162, 126
        %v1186 = vpop.permute.xlu0 %1185
        %v1195 = vadd.f32 %v1090, %v1172
        %v1196 = vadd.f32 %v1091, %v1174
        %v1197 = vadd.f32 %v1092, %v1176
        %v1198 = vadd.f32 %v1093, %v1178
        %v1199 = vadd.f32 %v1094, %v1180
        %v1200 = vadd.f32 %v1095, %v1182
        %v1201 = vadd.f32 %v1096, %v1184
        %v1202 = vadd.f32 %v1097, %v1186
        %s1203 = scalar_lea.vmem %s4, 24
        %v1204 = vld [vmem:[%s1203] sm:$0x1]
        %v1205 = vld [vmem:[%s1203 + $0x1] sm:$0x1]
        %v1206 = vld [vmem:[%s1203 + $0x2] sm:$0x1]
        %v1207 = vld [vmem:[%s1203 + $0x3] sm:$0x1]
        %v1208 = vld [vmem:[%s1203 + $0x4] sm:$0x1]
        %v1209 = vld [vmem:[%s1203 + $0x5] sm:$0x1]
        %v1210 = vld [vmem:[%s1203 + $0x6] sm:$0x1]
        %v1211 = vld [vmem:[%s1203 + $0x7] sm:$0x1]
        %v1220 = vperm.slane %v1204, 0
        %v1221 = vperm.slane %v1205, 0
        %v1222 = vperm.slane %v1206, 0
        %v1223 = vperm.slane %v1207, 0
        %v1224 = vperm.slane %v1208, 0
        %v1225 = vperm.slane %v1209, 0
        %v1226 = vperm.slane %v1210, 0
        %v1227 = vperm.slane %v1211, 0
        %1228 = vset.pattern.permute.xlu0 0
        %1229 = vperm.xlu0 %1228, %v1220
        %v1230 = vpop.permute.xlu0 %1229
        %1232 = vset.pattern.permute.xlu0 0
        %1233 = vperm.xlu0 %1232, %v1221
        %v1234 = vpop.permute.xlu0 %1233
        %1236 = vset.pattern.permute.xlu0 0
        %1237 = vperm.xlu0 %1236, %v1222
        %v1238 = vpop.permute.xlu0 %1237
        %1240 = vset.pattern.permute.xlu0 0
        %1241 = vperm.xlu0 %1240, %v1223
        %v1242 = vpop.permute.xlu0 %1241
        %1244 = vset.pattern.permute.xlu0 0
        %1245 = vperm.xlu0 %1244, %v1224
        %v1246 = vpop.permute.xlu0 %1245
        %1248 = vset.pattern.permute.xlu0 0
        %1249 = vperm.xlu0 %1248, %v1225
        %v1250 = vpop.permute.xlu0 %1249
        %1252 = vset.pattern.permute.xlu0 0
        %1253 = vperm.xlu0 %1252, %v1226
        %v1254 = vpop.permute.xlu0 %1253
        %1256 = vset.pattern.permute.xlu0 0
        %1257 = vperm.xlu0 %1256, %v1227
        %v1258 = vpop.permute.xlu0 %1257
        %v1260 = vmul.f32 %v905, %v1230
        %v1261 = vmul.f32 %v907, %v1234
        %v1262 = vmul.f32 %v909, %v1238
        %v1263 = vmul.f32 %v911, %v1242
        %v1264 = vmul.f32 %v913, %v1246
        %v1265 = vmul.f32 %v915, %v1250
        %v1266 = vmul.f32 %v917, %v1254
        %v1267 = vmul.f32 %v919, %v1258
        %1276 = vrot.lane.b32.xlu0 %v1260, 125
        %v1277 = vpop.permute.xlu0 %1276
        %1278 = vrot.lane.b32.xlu0 %v1261, 125
        %v1279 = vpop.permute.xlu0 %1278
        %1280 = vrot.lane.b32.xlu0 %v1262, 125
        %v1281 = vpop.permute.xlu0 %1280
        %1282 = vrot.lane.b32.xlu0 %v1263, 125
        %v1283 = vpop.permute.xlu0 %1282
        %1284 = vrot.lane.b32.xlu0 %v1264, 125
        %v1285 = vpop.permute.xlu0 %1284
        %1286 = vrot.lane.b32.xlu0 %v1265, 125
        %v1287 = vpop.permute.xlu0 %1286
        %1288 = vrot.lane.b32.xlu0 %v1266, 125
        %v1289 = vpop.permute.xlu0 %1288
        %1290 = vrot.lane.b32.xlu0 %v1267, 125
        %v1291 = vpop.permute.xlu0 %1290
        %v1300 = vadd.f32 %v1195, %v1277
        %v1301 = vadd.f32 %v1196, %v1279
        %v1302 = vadd.f32 %v1197, %v1281
        %v1303 = vadd.f32 %v1198, %v1283
        %v1304 = vadd.f32 %v1199, %v1285
        %v1305 = vadd.f32 %v1200, %v1287
        %v1306 = vadd.f32 %v1201, %v1289
        %v1307 = vadd.f32 %v1202, %v1291
        %s1308 = scalar_lea.vmem %s4, 32
        %v1309 = vld [vmem:[%s1308] sm:$0x1]
        %v1310 = vld [vmem:[%s1308 + $0x1] sm:$0x1]
        %v1311 = vld [vmem:[%s1308 + $0x2] sm:$0x1]
        %v1312 = vld [vmem:[%s1308 + $0x3] sm:$0x1]
        %v1313 = vld [vmem:[%s1308 + $0x4] sm:$0x1]
        %v1314 = vld [vmem:[%s1308 + $0x5] sm:$0x1]
        %v1315 = vld [vmem:[%s1308 + $0x6] sm:$0x1]
        %v1316 = vld [vmem:[%s1308 + $0x7] sm:$0x1]
        %v1325 = vperm.slane %v1309, 0
        %v1326 = vperm.slane %v1310, 0
        %v1327 = vperm.slane %v1311, 0
        %v1328 = vperm.slane %v1312, 0
        %v1329 = vperm.slane %v1313, 0
        %v1330 = vperm.slane %v1314, 0
        %v1331 = vperm.slane %v1315, 0
        %v1332 = vperm.slane %v1316, 0
        %1333 = vset.pattern.permute.xlu0 0
        %1334 = vperm.xlu0 %1333, %v1325
        %v1335 = vpop.permute.xlu0 %1334
        %1337 = vset.pattern.permute.xlu0 0
        %1338 = vperm.xlu0 %1337, %v1326
        %v1339 = vpop.permute.xlu0 %1338
        %1341 = vset.pattern.permute.xlu0 0
        %1342 = vperm.xlu0 %1341, %v1327
        %v1343 = vpop.permute.xlu0 %1342
        %1345 = vset.pattern.permute.xlu0 0
        %1346 = vperm.xlu0 %1345, %v1328
        %v1347 = vpop.permute.xlu0 %1346
        %1349 = vset.pattern.permute.xlu0 0
        %1350 = vperm.xlu0 %1349, %v1329
        %v1351 = vpop.permute.xlu0 %1350
        %1353 = vset.pattern.permute.xlu0 0
        %1354 = vperm.xlu0 %1353, %v1330
        %v1355 = vpop.permute.xlu0 %1354
        %1357 = vset.pattern.permute.xlu0 0
        %1358 = vperm.xlu0 %1357, %v1331
        %v1359 = vpop.permute.xlu0 %1358
        %1361 = vset.pattern.permute.xlu0 0
        %1362 = vperm.xlu0 %1361, %v1332
        %v1363 = vpop.permute.xlu0 %1362
        %v1365 = vmul.f32 %v905, %v1335
        %v1366 = vmul.f32 %v907, %v1339
        %v1367 = vmul.f32 %v909, %v1343
        %v1368 = vmul.f32 %v911, %v1347
        %v1369 = vmul.f32 %v913, %v1351
        %v1370 = vmul.f32 %v915, %v1355
        %v1371 = vmul.f32 %v917, %v1359
        %v1372 = vmul.f32 %v919, %v1363
        %1381 = vrot.lane.b32.xlu0 %v1365, 124
        %v1382 = vpop.permute.xlu0 %1381
        %1383 = vrot.lane.b32.xlu0 %v1366, 124
        %v1384 = vpop.permute.xlu0 %1383
        %1385 = vrot.lane.b32.xlu0 %v1367, 124
        %v1386 = vpop.permute.xlu0 %1385
        %1387 = vrot.lane.b32.xlu0 %v1368, 124
        %v1388 = vpop.permute.xlu0 %1387
        %1389 = vrot.lane.b32.xlu0 %v1369, 124
        %v1390 = vpop.permute.xlu0 %1389
        %1391 = vrot.lane.b32.xlu0 %v1370, 124
        %v1392 = vpop.permute.xlu0 %1391
        %1393 = vrot.lane.b32.xlu0 %v1371, 124
        %v1394 = vpop.permute.xlu0 %1393
        %1395 = vrot.lane.b32.xlu0 %v1372, 124
        %v1396 = vpop.permute.xlu0 %1395
        %v1405 = vadd.f32 %v1300, %v1382
        %v1406 = vadd.f32 %v1301, %v1384
        %v1407 = vadd.f32 %v1302, %v1386
        %v1408 = vadd.f32 %v1303, %v1388
        %v1409 = vadd.f32 %v1304, %v1390
        %v1410 = vadd.f32 %v1305, %v1392
        %v1411 = vadd.f32 %v1306, %v1394
        %v1412 = vadd.f32 %v1307, %v1396
        %s1413 = scalar_lea.vmem %s4, 40
        %v1414 = vld [vmem:[%s1413] sm:$0x1]
        %v1415 = vld [vmem:[%s1413 + $0x1] sm:$0x1]
        %v1416 = vld [vmem:[%s1413 + $0x2] sm:$0x1]
        %v1417 = vld [vmem:[%s1413 + $0x3] sm:$0x1]
        %v1418 = vld [vmem:[%s1413 + $0x4] sm:$0x1]
        %v1419 = vld [vmem:[%s1413 + $0x5] sm:$0x1]
        %v1420 = vld [vmem:[%s1413 + $0x6] sm:$0x1]
        %v1421 = vld [vmem:[%s1413 + $0x7] sm:$0x1]
        %v1430 = vperm.slane %v1414, 0
        %v1431 = vperm.slane %v1415, 0
        %v1432 = vperm.slane %v1416, 0
        %v1433 = vperm.slane %v1417, 0
        %v1434 = vperm.slane %v1418, 0
        %v1435 = vperm.slane %v1419, 0
        %v1436 = vperm.slane %v1420, 0
        %v1437 = vperm.slane %v1421, 0
        %1438 = vset.pattern.permute.xlu0 0
        %1439 = vperm.xlu0 %1438, %v1430
        %v1440 = vpop.permute.xlu0 %1439
        %1442 = vset.pattern.permute.xlu0 0
        %1443 = vperm.xlu0 %1442, %v1431
        %v1444 = vpop.permute.xlu0 %1443
        %1446 = vset.pattern.permute.xlu0 0
        %1447 = vperm.xlu0 %1446, %v1432
        %v1448 = vpop.permute.xlu0 %1447
        %1450 = vset.pattern.permute.xlu0 0
        %1451 = vperm.xlu0 %1450, %v1433
        %v1452 = vpop.permute.xlu0 %1451
        %1454 = vset.pattern.permute.xlu0 0
        %1455 = vperm.xlu0 %1454, %v1434
        %v1456 = vpop.permute.xlu0 %1455
        %1458 = vset.pattern.permute.xlu0 0
        %1459 = vperm.xlu0 %1458, %v1435
        %v1460 = vpop.permute.xlu0 %1459
        %1462 = vset.pattern.permute.xlu0 0
        %1463 = vperm.xlu0 %1462, %v1436
        %v1464 = vpop.permute.xlu0 %1463
        %1466 = vset.pattern.permute.xlu0 0
        %1467 = vperm.xlu0 %1466, %v1437
        %v1468 = vpop.permute.xlu0 %1467
        %v1470 = vmul.f32 %v905, %v1440
        %v1471 = vmul.f32 %v906, %v1440
        %v1472 = vmul.f32 %v907, %v1444
        %v1473 = vmul.f32 %v908, %v1444
        %v1474 = vmul.f32 %v909, %v1448
        %v1475 = vmul.f32 %v910, %v1448
        %v1476 = vmul.f32 %v911, %v1452
        %v1477 = vmul.f32 %v912, %v1452
        %v1478 = vmul.f32 %v913, %v1456
        %v1479 = vmul.f32 %v914, %v1456
        %v1480 = vmul.f32 %v915, %v1460
        %v1481 = vmul.f32 %v916, %v1460
        %v1482 = vmul.f32 %v917, %v1464
        %v1483 = vmul.f32 %v918, %v1464
        %v1484 = vmul.f32 %v919, %v1468
        %v1485 = vmul.f32 %v920, %v1468
        %vm1502 = vcmask 1046528
        %v1503 = vrot.slane %v1470, 1
        %v1504 = vrot.slane %v1471, 1
        %v1505 = vsel %vm1502, %v1503, %v1504
        %v1506 = vrot.slane %v1472, 1
        %v1507 = vrot.slane %v1473, 1
        %v1508 = vsel %vm1502, %v1506, %v1507
        %v1509 = vrot.slane %v1474, 1
        %v1510 = vrot.slane %v1475, 1
        %v1511 = vsel %vm1502, %v1509, %v1510
        %v1512 = vrot.slane %v1476, 1
        %v1513 = vrot.slane %v1477, 1
        %v1514 = vsel %vm1502, %v1512, %v1513
        %v1515 = vrot.slane %v1478, 1
        %v1516 = vrot.slane %v1479, 1
        %v1517 = vsel %vm1502, %v1515, %v1516
        %v1518 = vrot.slane %v1480, 1
        %v1519 = vrot.slane %v1481, 1
        %v1520 = vsel %vm1502, %v1518, %v1519
        %v1521 = vrot.slane %v1482, 1
        %v1522 = vrot.slane %v1483, 1
        %v1523 = vsel %vm1502, %v1521, %v1522
        %v1524 = vrot.slane %v1484, 1
        %v1525 = vrot.slane %v1485, 1
        %v1526 = vsel %vm1502, %v1524, %v1525
        %v1535 = vadd.f32 %v1405, %v1505
        %v1536 = vadd.f32 %v1406, %v1508
        %v1537 = vadd.f32 %v1407, %v1511
        %v1538 = vadd.f32 %v1408, %v1514
        %v1539 = vadd.f32 %v1409, %v1517
        %v1540 = vadd.f32 %v1410, %v1520
        %v1541 = vadd.f32 %v1411, %v1523
        %v1542 = vadd.f32 %v1412, %v1526
        %s1543 = scalar_lea.vmem %s4, 48
        %v1544 = vld [vmem:[%s1543] sm:$0x1]
        %v1545 = vld [vmem:[%s1543 + $0x1] sm:$0x1]
        %v1546 = vld [vmem:[%s1543 + $0x2] sm:$0x1]
        %v1547 = vld [vmem:[%s1543 + $0x3] sm:$0x1]
        %v1548 = vld [vmem:[%s1543 + $0x4] sm:$0x1]
        %v1549 = vld [vmem:[%s1543 + $0x5] sm:$0x1]
        %v1550 = vld [vmem:[%s1543 + $0x6] sm:$0x1]
        %v1551 = vld [vmem:[%s1543 + $0x7] sm:$0x1]
        %v1560 = vperm.slane %v1544, 0
        %v1561 = vperm.slane %v1545, 0
        %v1562 = vperm.slane %v1546, 0
        %v1563 = vperm.slane %v1547, 0
        %v1564 = vperm.slane %v1548, 0
        %v1565 = vperm.slane %v1549, 0
        %v1566 = vperm.slane %v1550, 0
        %v1567 = vperm.slane %v1551, 0
        %1568 = vset.pattern.permute.xlu0 0
        %1569 = vperm.xlu0 %1568, %v1560
        %v1570 = vpop.permute.xlu0 %1569
        %1572 = vset.pattern.permute.xlu0 0
        %1573 = vperm.xlu0 %1572, %v1561
        %v1574 = vpop.permute.xlu0 %1573
        %1576 = vset.pattern.permute.xlu0 0
        %1577 = vperm.xlu0 %1576, %v1562
        %v1578 = vpop.permute.xlu0 %1577
        %1580 = vset.pattern.permute.xlu0 0
        %1581 = vperm.xlu0 %1580, %v1563
        %v1582 = vpop.permute.xlu0 %1581
        %1584 = vset.pattern.permute.xlu0 0
        %1585 = vperm.xlu0 %1584, %v1564
        %v1586 = vpop.permute.xlu0 %1585
        %1588 = vset.pattern.permute.xlu0 0
        %1589 = vperm.xlu0 %1588, %v1565
        %v1590 = vpop.permute.xlu0 %1589
        %1592 = vset.pattern.permute.xlu0 0
        %1593 = vperm.xlu0 %1592, %v1566
        %v1594 = vpop.permute.xlu0 %1593
        %1596 = vset.pattern.permute.xlu0 0
        %1597 = vperm.xlu0 %1596, %v1567
        %v1598 = vpop.permute.xlu0 %1597
        %v1600 = vmul.f32 %v905, %v1570
        %v1601 = vmul.f32 %v906, %v1570
        %v1602 = vmul.f32 %v907, %v1574
        %v1603 = vmul.f32 %v908, %v1574
        %v1604 = vmul.f32 %v909, %v1578
        %v1605 = vmul.f32 %v910, %v1578
        %v1606 = vmul.f32 %v911, %v1582
        %v1607 = vmul.f32 %v912, %v1582
        %v1608 = vmul.f32 %v913, %v1586
        %v1609 = vmul.f32 %v914, %v1586
        %v1610 = vmul.f32 %v915, %v1590
        %v1611 = vmul.f32 %v916, %v1590
        %v1612 = vmul.f32 %v917, %v1594
        %v1613 = vmul.f32 %v918, %v1594
        %v1614 = vmul.f32 %v919, %v1598
        %v1615 = vmul.f32 %v920, %v1598
        %v1632 = vrot.slane %v1600, 1
        %v1633 = vrot.slane %v1601, 1
        %v1634 = vsel %vm1502, %v1632, %v1633
        %v1635 = vrot.slane %v1602, 1
        %v1636 = vrot.slane %v1603, 1
        %v1637 = vsel %vm1502, %v1635, %v1636
        %v1638 = vrot.slane %v1604, 1
        %v1639 = vrot.slane %v1605, 1
        %v1640 = vsel %vm1502, %v1638, %v1639
        %v1641 = vrot.slane %v1606, 1
        %v1642 = vrot.slane %v1607, 1
        %v1643 = vsel %vm1502, %v1641, %v1642
        %v1644 = vrot.slane %v1608, 1
        %v1645 = vrot.slane %v1609, 1
        %v1646 = vsel %vm1502, %v1644, %v1645
        %v1647 = vrot.slane %v1610, 1
        %v1648 = vrot.slane %v1611, 1
        %v1649 = vsel %vm1502, %v1647, %v1648
        %v1650 = vrot.slane %v1612, 1
        %v1651 = vrot.slane %v1613, 1
        %v1652 = vsel %vm1502, %v1650, %v1651
        %v1653 = vrot.slane %v1614, 1
        %v1654 = vrot.slane %v1615, 1
        %v1655 = vsel %vm1502, %v1653, %v1654
        %1656 = vrot.lane.b32.xlu0 %v1634, 127
        %v1657 = vpop.permute.xlu0 %1656
        %1658 = vrot.lane.b32.xlu0 %v1637, 127
        %v1659 = vpop.permute.xlu0 %1658
        %1660 = vrot.lane.b32.xlu0 %v1640, 127
        %v1661 = vpop.permute.xlu0 %1660
        %1662 = vrot.lane.b32.xlu0 %v1643, 127
        %v1663 = vpop.permute.xlu0 %1662
        %1664 = vrot.lane.b32.xlu0 %v1646, 127
        %v1665 = vpop.permute.xlu0 %1664
        %1666 = vrot.lane.b32.xlu0 %v1649, 127
        %v1667 = vpop.permute.xlu0 %1666
        %1668 = vrot.lane.b32.xlu0 %v1652, 127
        %v1669 = vpop.permute.xlu0 %1668
        %1670 = vrot.lane.b32.xlu0 %v1655, 127
        %v1671 = vpop.permute.xlu0 %1670
        %v1680 = vadd.f32 %v1535, %v1657
        %v1681 = vadd.f32 %v1536, %v1659
        %v1682 = vadd.f32 %v1537, %v1661
        %v1683 = vadd.f32 %v1538, %v1663
        %v1684 = vadd.f32 %v1539, %v1665
        %v1685 = vadd.f32 %v1540, %v1667
        %v1686 = vadd.f32 %v1541, %v1669
        %v1687 = vadd.f32 %v1542, %v1671
        %s1688 = scalar_lea.vmem %s4, 56
        %v1689 = vld [vmem:[%s1688] sm:$0x1]
        %v1690 = vld [vmem:[%s1688 + $0x1] sm:$0x1]
        %v1691 = vld [vmem:[%s1688 + $0x2] sm:$0x1]
        %v1692 = vld [vmem:[%s1688 + $0x3] sm:$0x1]
        %v1693 = vld [vmem:[%s1688 + $0x4] sm:$0x1]
        %v1694 = vld [vmem:[%s1688 + $0x5] sm:$0x1]
        %v1695 = vld [vmem:[%s1688 + $0x6] sm:$0x1]
        %v1696 = vld [vmem:[%s1688 + $0x7] sm:$0x1]
        %v1705 = vperm.slane %v1689, 0
        %v1706 = vperm.slane %v1690, 0
        %v1707 = vperm.slane %v1691, 0
        %v1708 = vperm.slane %v1692, 0
        %v1709 = vperm.slane %v1693, 0
        %v1710 = vperm.slane %v1694, 0
        %v1711 = vperm.slane %v1695, 0
        %v1712 = vperm.slane %v1696, 0
        %1713 = vset.pattern.permute.xlu0 0
        %1714 = vperm.xlu0 %1713, %v1705
        %v1715 = vpop.permute.xlu0 %1714
        %1717 = vset.pattern.permute.xlu0 0
        %1718 = vperm.xlu0 %1717, %v1706
        %v1719 = vpop.permute.xlu0 %1718
        %1721 = vset.pattern.permute.xlu0 0
        %1722 = vperm.xlu0 %1721, %v1707
        %v1723 = vpop.permute.xlu0 %1722
        %1725 = vset.pattern.permute.xlu0 0
        %1726 = vperm.xlu0 %1725, %v1708
        %v1727 = vpop.permute.xlu0 %1726
        %1729 = vset.pattern.permute.xlu0 0
        %1730 = vperm.xlu0 %1729, %v1709
        %v1731 = vpop.permute.xlu0 %1730
        %1733 = vset.pattern.permute.xlu0 0
        %1734 = vperm.xlu0 %1733, %v1710
        %v1735 = vpop.permute.xlu0 %1734
        %1737 = vset.pattern.permute.xlu0 0
        %1738 = vperm.xlu0 %1737, %v1711
        %v1739 = vpop.permute.xlu0 %1738
        %1741 = vset.pattern.permute.xlu0 0
        %1742 = vperm.xlu0 %1741, %v1712
        %v1743 = vpop.permute.xlu0 %1742
        %v1745 = vmul.f32 %v905, %v1715
        %v1746 = vmul.f32 %v906, %v1715
        %v1747 = vmul.f32 %v907, %v1719
        %v1748 = vmul.f32 %v908, %v1719
        %v1749 = vmul.f32 %v909, %v1723
        %v1750 = vmul.f32 %v910, %v1723
        %v1751 = vmul.f32 %v911, %v1727
        %v1752 = vmul.f32 %v912, %v1727
        %v1753 = vmul.f32 %v913, %v1731
        %v1754 = vmul.f32 %v914, %v1731
        %v1755 = vmul.f32 %v915, %v1735
        %v1756 = vmul.f32 %v916, %v1735
        %v1757 = vmul.f32 %v917, %v1739
        %v1758 = vmul.f32 %v918, %v1739
        %v1759 = vmul.f32 %v919, %v1743
        %v1760 = vmul.f32 %v920, %v1743
        %v1777 = vrot.slane %v1745, 1
        %v1778 = vrot.slane %v1746, 1
        %v1779 = vsel %vm1502, %v1777, %v1778
        %v1780 = vrot.slane %v1747, 1
        %v1781 = vrot.slane %v1748, 1
        %v1782 = vsel %vm1502, %v1780, %v1781
        %v1783 = vrot.slane %v1749, 1
        %v1784 = vrot.slane %v1750, 1
        %v1785 = vsel %vm1502, %v1783, %v1784
        %v1786 = vrot.slane %v1751, 1
        %v1787 = vrot.slane %v1752, 1
        %v1788 = vsel %vm1502, %v1786, %v1787
        %v1789 = vrot.slane %v1753, 1
        %v1790 = vrot.slane %v1754, 1
        %v1791 = vsel %vm1502, %v1789, %v1790
        %v1792 = vrot.slane %v1755, 1
        %v1793 = vrot.slane %v1756, 1
        %v1794 = vsel %vm1502, %v1792, %v1793
        %v1795 = vrot.slane %v1757, 1
        %v1796 = vrot.slane %v1758, 1
        %v1797 = vsel %vm1502, %v1795, %v1796
        %v1798 = vrot.slane %v1759, 1
        %v1799 = vrot.slane %v1760, 1
        %v1800 = vsel %vm1502, %v1798, %v1799
        %1801 = vrot.lane.b32.xlu0 %v1779, 126
        %v1802 = vpop.permute.xlu0 %1801
        %1803 = vrot.lane.b32.xlu0 %v1782, 126
        %v1804 = vpop.permute.xlu0 %1803
        %1805 = vrot.lane.b32.xlu0 %v1785, 126
        %v1806 = vpop.permute.xlu0 %1805
        %1807 = vrot.lane.b32.xlu0 %v1788, 126
        %v1808 = vpop.permute.xlu0 %1807
        %1809 = vrot.lane.b32.xlu0 %v1791, 126
        %v1810 = vpop.permute.xlu0 %1809
        %1811 = vrot.lane.b32.xlu0 %v1794, 126
        %v1812 = vpop.permute.xlu0 %1811
        %1813 = vrot.lane.b32.xlu0 %v1797, 126
        %v1814 = vpop.permute.xlu0 %1813
        %1815 = vrot.lane.b32.xlu0 %v1800, 126
        %v1816 = vpop.permute.xlu0 %1815
        %v1825 = vadd.f32 %v1680, %v1802
        %v1826 = vadd.f32 %v1681, %v1804
        %v1827 = vadd.f32 %v1682, %v1806
        %v1828 = vadd.f32 %v1683, %v1808
        %v1829 = vadd.f32 %v1684, %v1810
        %v1830 = vadd.f32 %v1685, %v1812
        %v1831 = vadd.f32 %v1686, %v1814
        %v1832 = vadd.f32 %v1687, %v1816
        %s1833 = scalar_lea.vmem %s4, 64
        %v1834 = vld [vmem:[%s1833] sm:$0x1]
        %v1835 = vld [vmem:[%s1833 + $0x1] sm:$0x1]
        %v1836 = vld [vmem:[%s1833 + $0x2] sm:$0x1]
        %v1837 = vld [vmem:[%s1833 + $0x3] sm:$0x1]
        %v1838 = vld [vmem:[%s1833 + $0x4] sm:$0x1]
        %v1839 = vld [vmem:[%s1833 + $0x5] sm:$0x1]
        %v1840 = vld [vmem:[%s1833 + $0x6] sm:$0x1]
        %v1841 = vld [vmem:[%s1833 + $0x7] sm:$0x1]
        %v1850 = vperm.slane %v1834, 0
        %v1851 = vperm.slane %v1835, 0
        %v1852 = vperm.slane %v1836, 0
        %v1853 = vperm.slane %v1837, 0
        %v1854 = vperm.slane %v1838, 0
        %v1855 = vperm.slane %v1839, 0
        %v1856 = vperm.slane %v1840, 0
        %v1857 = vperm.slane %v1841, 0
        %1858 = vset.pattern.permute.xlu0 0
        %1859 = vperm.xlu0 %1858, %v1850
        %v1860 = vpop.permute.xlu0 %1859
        %1862 = vset.pattern.permute.xlu0 0
        %1863 = vperm.xlu0 %1862, %v1851
        %v1864 = vpop.permute.xlu0 %1863
        %1866 = vset.pattern.permute.xlu0 0
        %1867 = vperm.xlu0 %1866, %v1852
        %v1868 = vpop.permute.xlu0 %1867
        %1870 = vset.pattern.permute.xlu0 0
        %1871 = vperm.xlu0 %1870, %v1853
        %v1872 = vpop.permute.xlu0 %1871
        %1874 = vset.pattern.permute.xlu0 0
        %1875 = vperm.xlu0 %1874, %v1854
        %v1876 = vpop.permute.xlu0 %1875
        %1878 = vset.pattern.permute.xlu0 0
        %1879 = vperm.xlu0 %1878, %v1855
        %v1880 = vpop.permute.xlu0 %1879
        %1882 = vset.pattern.permute.xlu0 0
        %1883 = vperm.xlu0 %1882, %v1856
        %v1884 = vpop.permute.xlu0 %1883
        %1886 = vset.pattern.permute.xlu0 0
        %1887 = vperm.xlu0 %1886, %v1857
        %v1888 = vpop.permute.xlu0 %1887
        %v1890 = vmul.f32 %v905, %v1860
        %v1891 = vmul.f32 %v906, %v1860
        %v1892 = vmul.f32 %v907, %v1864
        %v1893 = vmul.f32 %v908, %v1864
        %v1894 = vmul.f32 %v909, %v1868
        %v1895 = vmul.f32 %v910, %v1868
        %v1896 = vmul.f32 %v911, %v1872
        %v1897 = vmul.f32 %v912, %v1872
        %v1898 = vmul.f32 %v913, %v1876
        %v1899 = vmul.f32 %v914, %v1876
        %v1900 = vmul.f32 %v915, %v1880
        %v1901 = vmul.f32 %v916, %v1880
        %v1902 = vmul.f32 %v917, %v1884
        %v1903 = vmul.f32 %v918, %v1884
        %v1904 = vmul.f32 %v919, %v1888
        %v1905 = vmul.f32 %v920, %v1888
        %v1922 = vrot.slane %v1890, 1
        %v1923 = vrot.slane %v1891, 1
        %v1924 = vsel %vm1502, %v1922, %v1923
        %v1925 = vrot.slane %v1892, 1
        %v1926 = vrot.slane %v1893, 1
        %v1927 = vsel %vm1502, %v1925, %v1926
        %v1928 = vrot.slane %v1894, 1
        %v1929 = vrot.slane %v1895, 1
        %v1930 = vsel %vm1502, %v1928, %v1929
        %v1931 = vrot.slane %v1896, 1
        %v1932 = vrot.slane %v1897, 1
        %v1933 = vsel %vm1502, %v1931, %v1932
        %v1934 = vrot.slane %v1898, 1
        %v1935 = vrot.slane %v1899, 1
        %v1936 = vsel %vm1502, %v1934, %v1935
        %v1937 = vrot.slane %v1900, 1
        %v1938 = vrot.slane %v1901, 1
        %v1939 = vsel %vm1502, %v1937, %v1938
        %v1940 = vrot.slane %v1902, 1
        %v1941 = vrot.slane %v1903, 1
        %v1942 = vsel %vm1502, %v1940, %v1941
        %v1943 = vrot.slane %v1904, 1
        %v1944 = vrot.slane %v1905, 1
        %v1945 = vsel %vm1502, %v1943, %v1944
        %1946 = vrot.lane.b32.xlu0 %v1924, 125
        %v1947 = vpop.permute.xlu0 %1946
        %1948 = vrot.lane.b32.xlu0 %v1927, 125
        %v1949 = vpop.permute.xlu0 %1948
        %1950 = vrot.lane.b32.xlu0 %v1930, 125
        %v1951 = vpop.permute.xlu0 %1950
        %1952 = vrot.lane.b32.xlu0 %v1933, 125
        %v1953 = vpop.permute.xlu0 %1952
        %1954 = vrot.lane.b32.xlu0 %v1936, 125
        %v1955 = vpop.permute.xlu0 %1954
        %1956 = vrot.lane.b32.xlu0 %v1939, 125
        %v1957 = vpop.permute.xlu0 %1956
        %1958 = vrot.lane.b32.xlu0 %v1942, 125
        %v1959 = vpop.permute.xlu0 %1958
        %1960 = vrot.lane.b32.xlu0 %v1945, 125
        %v1961 = vpop.permute.xlu0 %1960
        %v1970 = vadd.f32 %v1825, %v1947
        %v1971 = vadd.f32 %v1826, %v1949
        %v1972 = vadd.f32 %v1827, %v1951
        %v1973 = vadd.f32 %v1828, %v1953
        %v1974 = vadd.f32 %v1829, %v1955
        %v1975 = vadd.f32 %v1830, %v1957
        %v1976 = vadd.f32 %v1831, %v1959
        %v1977 = vadd.f32 %v1832, %v1961
        %s1978 = scalar_lea.vmem %s4, 72
        %v1979 = vld [vmem:[%s1978] sm:$0x1]
        %v1980 = vld [vmem:[%s1978 + $0x1] sm:$0x1]
        %v1981 = vld [vmem:[%s1978 + $0x2] sm:$0x1]
        %v1982 = vld [vmem:[%s1978 + $0x3] sm:$0x1]
        %v1983 = vld [vmem:[%s1978 + $0x4] sm:$0x1]
        %v1984 = vld [vmem:[%s1978 + $0x5] sm:$0x1]
        %v1985 = vld [vmem:[%s1978 + $0x6] sm:$0x1]
        %v1986 = vld [vmem:[%s1978 + $0x7] sm:$0x1]
        %v1995 = vperm.slane %v1979, 0
        %v1996 = vperm.slane %v1980, 0
        %v1997 = vperm.slane %v1981, 0
        %v1998 = vperm.slane %v1982, 0
        %v1999 = vperm.slane %v1983, 0
        %v2000 = vperm.slane %v1984, 0
        %v2001 = vperm.slane %v1985, 0
        %v2002 = vperm.slane %v1986, 0
        %2003 = vset.pattern.permute.xlu0 0
        %2004 = vperm.xlu0 %2003, %v1995
        %v2005 = vpop.permute.xlu0 %2004
        %2007 = vset.pattern.permute.xlu0 0
        %2008 = vperm.xlu0 %2007, %v1996
        %v2009 = vpop.permute.xlu0 %2008
        %2011 = vset.pattern.permute.xlu0 0
        %2012 = vperm.xlu0 %2011, %v1997
        %v2013 = vpop.permute.xlu0 %2012
        %2015 = vset.pattern.permute.xlu0 0
        %2016 = vperm.xlu0 %2015, %v1998
        %v2017 = vpop.permute.xlu0 %2016
        %2019 = vset.pattern.permute.xlu0 0
        %2020 = vperm.xlu0 %2019, %v1999
        %v2021 = vpop.permute.xlu0 %2020
        %2023 = vset.pattern.permute.xlu0 0
        %2024 = vperm.xlu0 %2023, %v2000
        %v2025 = vpop.permute.xlu0 %2024
        %2027 = vset.pattern.permute.xlu0 0
        %2028 = vperm.xlu0 %2027, %v2001
        %v2029 = vpop.permute.xlu0 %2028
        %2031 = vset.pattern.permute.xlu0 0
        %2032 = vperm.xlu0 %2031, %v2002
        %v2033 = vpop.permute.xlu0 %2032
        %v2035 = vmul.f32 %v905, %v2005
        %v2036 = vmul.f32 %v906, %v2005
        %v2037 = vmul.f32 %v907, %v2009
        %v2038 = vmul.f32 %v908, %v2009
        %v2039 = vmul.f32 %v909, %v2013
        %v2040 = vmul.f32 %v910, %v2013
        %v2041 = vmul.f32 %v911, %v2017
        %v2042 = vmul.f32 %v912, %v2017
        %v2043 = vmul.f32 %v913, %v2021
        %v2044 = vmul.f32 %v914, %v2021
        %v2045 = vmul.f32 %v915, %v2025
        %v2046 = vmul.f32 %v916, %v2025
        %v2047 = vmul.f32 %v917, %v2029
        %v2048 = vmul.f32 %v918, %v2029
        %v2049 = vmul.f32 %v919, %v2033
        %v2050 = vmul.f32 %v920, %v2033
        %v2067 = vrot.slane %v2035, 1
        %v2068 = vrot.slane %v2036, 1
        %v2069 = vsel %vm1502, %v2067, %v2068
        %v2070 = vrot.slane %v2037, 1
        %v2071 = vrot.slane %v2038, 1
        %v2072 = vsel %vm1502, %v2070, %v2071
        %v2073 = vrot.slane %v2039, 1
        %v2074 = vrot.slane %v2040, 1
        %v2075 = vsel %vm1502, %v2073, %v2074
        %v2076 = vrot.slane %v2041, 1
        %v2077 = vrot.slane %v2042, 1
        %v2078 = vsel %vm1502, %v2076, %v2077
        %v2079 = vrot.slane %v2043, 1
        %v2080 = vrot.slane %v2044, 1
        %v2081 = vsel %vm1502, %v2079, %v2080
        %v2082 = vrot.slane %v2045, 1
        %v2083 = vrot.slane %v2046, 1
        %v2084 = vsel %vm1502, %v2082, %v2083
        %v2085 = vrot.slane %v2047, 1
        %v2086 = vrot.slane %v2048, 1
        %v2087 = vsel %vm1502, %v2085, %v2086
        %v2088 = vrot.slane %v2049, 1
        %v2089 = vrot.slane %v2050, 1
        %v2090 = vsel %vm1502, %v2088, %v2089
        %2091 = vrot.lane.b32.xlu0 %v2069, 124
        %v2092 = vpop.permute.xlu0 %2091
        %2093 = vrot.lane.b32.xlu0 %v2072, 124
        %v2094 = vpop.permute.xlu0 %2093
        %2095 = vrot.lane.b32.xlu0 %v2075, 124
        %v2096 = vpop.permute.xlu0 %2095
        %2097 = vrot.lane.b32.xlu0 %v2078, 124
        %v2098 = vpop.permute.xlu0 %2097
        %2099 = vrot.lane.b32.xlu0 %v2081, 124
        %v2100 = vpop.permute.xlu0 %2099
        %2101 = vrot.lane.b32.xlu0 %v2084, 124
        %v2102 = vpop.permute.xlu0 %2101
        %2103 = vrot.lane.b32.xlu0 %v2087, 124
        %v2104 = vpop.permute.xlu0 %2103
        %2105 = vrot.lane.b32.xlu0 %v2090, 124
        %v2106 = vpop.permute.xlu0 %2105
        %v2115 = vadd.f32 %v1970, %v2092
        %v2116 = vadd.f32 %v1971, %v2094
        %v2117 = vadd.f32 %v1972, %v2096
        %v2118 = vadd.f32 %v1973, %v2098
        %v2119 = vadd.f32 %v1974, %v2100
        %v2120 = vadd.f32 %v1975, %v2102
        %v2121 = vadd.f32 %v1976, %v2104
        %v2122 = vadd.f32 %v1977, %v2106
        %s2123 = scalar_lea.vmem %s4, 80
        %v2124 = vld [vmem:[%s2123] sm:$0x1]
        %v2125 = vld [vmem:[%s2123 + $0x1] sm:$0x1]
        %v2126 = vld [vmem:[%s2123 + $0x2] sm:$0x1]
        %v2127 = vld [vmem:[%s2123 + $0x3] sm:$0x1]
        %v2128 = vld [vmem:[%s2123 + $0x4] sm:$0x1]
        %v2129 = vld [vmem:[%s2123 + $0x5] sm:$0x1]
        %v2130 = vld [vmem:[%s2123 + $0x6] sm:$0x1]
        %v2131 = vld [vmem:[%s2123 + $0x7] sm:$0x1]
        %v2140 = vperm.slane %v2124, 0
        %v2141 = vperm.slane %v2125, 0
        %v2142 = vperm.slane %v2126, 0
        %v2143 = vperm.slane %v2127, 0
        %v2144 = vperm.slane %v2128, 0
        %v2145 = vperm.slane %v2129, 0
        %v2146 = vperm.slane %v2130, 0
        %v2147 = vperm.slane %v2131, 0
        %2148 = vset.pattern.permute.xlu0 0
        %2149 = vperm.xlu0 %2148, %v2140
        %v2150 = vpop.permute.xlu0 %2149
        %2152 = vset.pattern.permute.xlu0 0
        %2153 = vperm.xlu0 %2152, %v2141
        %v2154 = vpop.permute.xlu0 %2153
        %2156 = vset.pattern.permute.xlu0 0
        %2157 = vperm.xlu0 %2156, %v2142
        %v2158 = vpop.permute.xlu0 %2157
        %2160 = vset.pattern.permute.xlu0 0
        %2161 = vperm.xlu0 %2160, %v2143
        %v2162 = vpop.permute.xlu0 %2161
        %2164 = vset.pattern.permute.xlu0 0
        %2165 = vperm.xlu0 %2164, %v2144
        %v2166 = vpop.permute.xlu0 %2165
        %2168 = vset.pattern.permute.xlu0 0
        %2169 = vperm.xlu0 %2168, %v2145
        %v2170 = vpop.permute.xlu0 %2169
        %2172 = vset.pattern.permute.xlu0 0
        %2173 = vperm.xlu0 %2172, %v2146
        %v2174 = vpop.permute.xlu0 %2173
        %2176 = vset.pattern.permute.xlu0 0
        %2177 = vperm.xlu0 %2176, %v2147
        %v2178 = vpop.permute.xlu0 %2177
        %v2180 = vmul.f32 %v905, %v2150
        %v2181 = vmul.f32 %v906, %v2150
        %v2182 = vmul.f32 %v907, %v2154
        %v2183 = vmul.f32 %v908, %v2154
        %v2184 = vmul.f32 %v909, %v2158
        %v2185 = vmul.f32 %v910, %v2158
        %v2186 = vmul.f32 %v911, %v2162
        %v2187 = vmul.f32 %v912, %v2162
        %v2188 = vmul.f32 %v913, %v2166
        %v2189 = vmul.f32 %v914, %v2166
        %v2190 = vmul.f32 %v915, %v2170
        %v2191 = vmul.f32 %v916, %v2170
        %v2192 = vmul.f32 %v917, %v2174
        %v2193 = vmul.f32 %v918, %v2174
        %v2194 = vmul.f32 %v919, %v2178
        %v2195 = vmul.f32 %v920, %v2178
        %vm2212 = vcmask 1045504
        %v2213 = vrot.slane %v2180, 2
        %v2214 = vrot.slane %v2181, 2
        %v2215 = vsel %vm2212, %v2213, %v2214
        %v2216 = vrot.slane %v2182, 2
        %v2217 = vrot.slane %v2183, 2
        %v2218 = vsel %vm2212, %v2216, %v2217
        %v2219 = vrot.slane %v2184, 2
        %v2220 = vrot.slane %v2185, 2
        %v2221 = vsel %vm2212, %v2219, %v2220
        %v2222 = vrot.slane %v2186, 2
        %v2223 = vrot.slane %v2187, 2
        %v2224 = vsel %vm2212, %v2222, %v2223
        %v2225 = vrot.slane %v2188, 2
        %v2226 = vrot.slane %v2189, 2
        %v2227 = vsel %vm2212, %v2225, %v2226
        %v2228 = vrot.slane %v2190, 2
        %v2229 = vrot.slane %v2191, 2
        %v2230 = vsel %vm2212, %v2228, %v2229
        %v2231 = vrot.slane %v2192, 2
        %v2232 = vrot.slane %v2193, 2
        %v2233 = vsel %vm2212, %v2231, %v2232
        %v2234 = vrot.slane %v2194, 2
        %v2235 = vrot.slane %v2195, 2
        %v2236 = vsel %vm2212, %v2234, %v2235
        %v2245 = vadd.f32 %v2115, %v2215
        %v2246 = vadd.f32 %v2116, %v2218
        %v2247 = vadd.f32 %v2117, %v2221
        %v2248 = vadd.f32 %v2118, %v2224
        %v2249 = vadd.f32 %v2119, %v2227
        %v2250 = vadd.f32 %v2120, %v2230
        %v2251 = vadd.f32 %v2121, %v2233
        %v2252 = vadd.f32 %v2122, %v2236
        %s2253 = scalar_lea.vmem %s4, 88
        %v2254 = vld [vmem:[%s2253] sm:$0x1]
        %v2255 = vld [vmem:[%s2253 + $0x1] sm:$0x1]
        %v2256 = vld [vmem:[%s2253 + $0x2] sm:$0x1]
        %v2257 = vld [vmem:[%s2253 + $0x3] sm:$0x1]
        %v2258 = vld [vmem:[%s2253 + $0x4] sm:$0x1]
        %v2259 = vld [vmem:[%s2253 + $0x5] sm:$0x1]
        %v2260 = vld [vmem:[%s2253 + $0x6] sm:$0x1]
        %v2261 = vld [vmem:[%s2253 + $0x7] sm:$0x1]
        %v2270 = vperm.slane %v2254, 0
        %v2271 = vperm.slane %v2255, 0
        %v2272 = vperm.slane %v2256, 0
        %v2273 = vperm.slane %v2257, 0
        %v2274 = vperm.slane %v2258, 0
        %v2275 = vperm.slane %v2259, 0
        %v2276 = vperm.slane %v2260, 0
        %v2277 = vperm.slane %v2261, 0
        %2278 = vset.pattern.permute.xlu0 0
        %2279 = vperm.xlu0 %2278, %v2270
        %v2280 = vpop.permute.xlu0 %2279
        %2282 = vset.pattern.permute.xlu0 0
        %2283 = vperm.xlu0 %2282, %v2271
        %v2284 = vpop.permute.xlu0 %2283
        %2286 = vset.pattern.permute.xlu0 0
        %2287 = vperm.xlu0 %2286, %v2272
        %v2288 = vpop.permute.xlu0 %2287
        %2290 = vset.pattern.permute.xlu0 0
        %2291 = vperm.xlu0 %2290, %v2273
        %v2292 = vpop.permute.xlu0 %2291
        %2294 = vset.pattern.permute.xlu0 0
        %2295 = vperm.xlu0 %2294, %v2274
        %v2296 = vpop.permute.xlu0 %2295
        %2298 = vset.pattern.permute.xlu0 0
        %2299 = vperm.xlu0 %2298, %v2275
        %v2300 = vpop.permute.xlu0 %2299
        %2302 = vset.pattern.permute.xlu0 0
        %2303 = vperm.xlu0 %2302, %v2276
        %v2304 = vpop.permute.xlu0 %2303
        %2306 = vset.pattern.permute.xlu0 0
        %2307 = vperm.xlu0 %2306, %v2277
        %v2308 = vpop.permute.xlu0 %2307
        %v2310 = vmul.f32 %v905, %v2280
        %v2311 = vmul.f32 %v906, %v2280
        %v2312 = vmul.f32 %v907, %v2284
        %v2313 = vmul.f32 %v908, %v2284
        %v2314 = vmul.f32 %v909, %v2288
        %v2315 = vmul.f32 %v910, %v2288
        %v2316 = vmul.f32 %v911, %v2292
        %v2317 = vmul.f32 %v912, %v2292
        %v2318 = vmul.f32 %v913, %v2296
        %v2319 = vmul.f32 %v914, %v2296
        %v2320 = vmul.f32 %v915, %v2300
        %v2321 = vmul.f32 %v916, %v2300
        %v2322 = vmul.f32 %v917, %v2304
        %v2323 = vmul.f32 %v918, %v2304
        %v2324 = vmul.f32 %v919, %v2308
        %v2325 = vmul.f32 %v920, %v2308
        %v2342 = vrot.slane %v2310, 2
        %v2343 = vrot.slane %v2311, 2
        %v2344 = vsel %vm2212, %v2342, %v2343
        %v2345 = vrot.slane %v2312, 2
        %v2346 = vrot.slane %v2313, 2
        %v2347 = vsel %vm2212, %v2345, %v2346
        %v2348 = vrot.slane %v2314, 2
        %v2349 = vrot.slane %v2315, 2
        %v2350 = vsel %vm2212, %v2348, %v2349
        %v2351 = vrot.slane %v2316, 2
        %v2352 = vrot.slane %v2317, 2
        %v2353 = vsel %vm2212, %v2351, %v2352
        %v2354 = vrot.slane %v2318, 2
        %v2355 = vrot.slane %v2319, 2
        %v2356 = vsel %vm2212, %v2354, %v2355
        %v2357 = vrot.slane %v2320, 2
        %v2358 = vrot.slane %v2321, 2
        %v2359 = vsel %vm2212, %v2357, %v2358
        %v2360 = vrot.slane %v2322, 2
        %v2361 = vrot.slane %v2323, 2
        %v2362 = vsel %vm2212, %v2360, %v2361
        %v2363 = vrot.slane %v2324, 2
        %v2364 = vrot.slane %v2325, 2
        %v2365 = vsel %vm2212, %v2363, %v2364
        %2366 = vrot.lane.b32.xlu0 %v2344, 127
        %v2367 = vpop.permute.xlu0 %2366
        %2368 = vrot.lane.b32.xlu0 %v2347, 127
        %v2369 = vpop.permute.xlu0 %2368
        %2370 = vrot.lane.b32.xlu0 %v2350, 127
        %v2371 = vpop.permute.xlu0 %2370
        %2372 = vrot.lane.b32.xlu0 %v2353, 127
        %v2373 = vpop.permute.xlu0 %2372
        %2374 = vrot.lane.b32.xlu0 %v2356, 127
        %v2375 = vpop.permute.xlu0 %2374
        %2376 = vrot.lane.b32.xlu0 %v2359, 127
        %v2377 = vpop.permute.xlu0 %2376
        %2378 = vrot.lane.b32.xlu0 %v2362, 127
        %v2379 = vpop.permute.xlu0 %2378
        %2380 = vrot.lane.b32.xlu0 %v2365, 127
        %v2381 = vpop.permute.xlu0 %2380
        %v2390 = vadd.f32 %v2245, %v2367
        %v2391 = vadd.f32 %v2246, %v2369
        %v2392 = vadd.f32 %v2247, %v2371
        %v2393 = vadd.f32 %v2248, %v2373
        %v2394 = vadd.f32 %v2249, %v2375
        %v2395 = vadd.f32 %v2250, %v2377
        %v2396 = vadd.f32 %v2251, %v2379
        %v2397 = vadd.f32 %v2252, %v2381
        %s2398 = scalar_lea.vmem %s4, 96
        %v2399 = vld [vmem:[%s2398] sm:$0x1]
        %v2400 = vld [vmem:[%s2398 + $0x1] sm:$0x1]
        %v2401 = vld [vmem:[%s2398 + $0x2] sm:$0x1]
        %v2402 = vld [vmem:[%s2398 + $0x3] sm:$0x1]
        %v2403 = vld [vmem:[%s2398 + $0x4] sm:$0x1]
        %v2404 = vld [vmem:[%s2398 + $0x5] sm:$0x1]
        %v2405 = vld [vmem:[%s2398 + $0x6] sm:$0x1]
        %v2406 = vld [vmem:[%s2398 + $0x7] sm:$0x1]
        %v2415 = vperm.slane %v2399, 0
        %v2416 = vperm.slane %v2400, 0
        %v2417 = vperm.slane %v2401, 0
        %v2418 = vperm.slane %v2402, 0
        %v2419 = vperm.slane %v2403, 0
        %v2420 = vperm.slane %v2404, 0
        %v2421 = vperm.slane %v2405, 0
        %v2422 = vperm.slane %v2406, 0
        %2423 = vset.pattern.permute.xlu0 0
        %2424 = vperm.xlu0 %2423, %v2415
        %v2425 = vpop.permute.xlu0 %2424
        %2427 = vset.pattern.permute.xlu0 0
        %2428 = vperm.xlu0 %2427, %v2416
        %v2429 = vpop.permute.xlu0 %2428
        %2431 = vset.pattern.permute.xlu0 0
        %2432 = vperm.xlu0 %2431, %v2417
        %v2433 = vpop.permute.xlu0 %2432
        %2435 = vset.pattern.permute.xlu0 0
        %2436 = vperm.xlu0 %2435, %v2418
        %v2437 = vpop.permute.xlu0 %2436
        %2439 = vset.pattern.permute.xlu0 0
        %2440 = vperm.xlu0 %2439, %v2419
        %v2441 = vpop.permute.xlu0 %2440
        %2443 = vset.pattern.permute.xlu0 0
        %2444 = vperm.xlu0 %2443, %v2420
        %v2445 = vpop.permute.xlu0 %2444
        %2447 = vset.pattern.permute.xlu0 0
        %2448 = vperm.xlu0 %2447, %v2421
        %v2449 = vpop.permute.xlu0 %2448
        %2451 = vset.pattern.permute.xlu0 0
        %2452 = vperm.xlu0 %2451, %v2422
        %v2453 = vpop.permute.xlu0 %2452
        %v2455 = vmul.f32 %v905, %v2425
        %v2456 = vmul.f32 %v906, %v2425
        %v2457 = vmul.f32 %v907, %v2429
        %v2458 = vmul.f32 %v908, %v2429
        %v2459 = vmul.f32 %v909, %v2433
        %v2460 = vmul.f32 %v910, %v2433
        %v2461 = vmul.f32 %v911, %v2437
        %v2462 = vmul.f32 %v912, %v2437
        %v2463 = vmul.f32 %v913, %v2441
        %v2464 = vmul.f32 %v914, %v2441
        %v2465 = vmul.f32 %v915, %v2445
        %v2466 = vmul.f32 %v916, %v2445
        %v2467 = vmul.f32 %v917, %v2449
        %v2468 = vmul.f32 %v918, %v2449
        %v2469 = vmul.f32 %v919, %v2453
        %v2470 = vmul.f32 %v920, %v2453
        %v2487 = vrot.slane %v2455, 2
        %v2488 = vrot.slane %v2456, 2
        %v2489 = vsel %vm2212, %v2487, %v2488
        %v2490 = vrot.slane %v2457, 2
        %v2491 = vrot.slane %v2458, 2
        %v2492 = vsel %vm2212, %v2490, %v2491
        %v2493 = vrot.slane %v2459, 2
        %v2494 = vrot.slane %v2460, 2
        %v2495 = vsel %vm2212, %v2493, %v2494
        %v2496 = vrot.slane %v2461, 2
        %v2497 = vrot.slane %v2462, 2
        %v2498 = vsel %vm2212, %v2496, %v2497
        %v2499 = vrot.slane %v2463, 2
        %v2500 = vrot.slane %v2464, 2
        %v2501 = vsel %vm2212, %v2499, %v2500
        %v2502 = vrot.slane %v2465, 2
        %v2503 = vrot.slane %v2466, 2
        %v2504 = vsel %vm2212, %v2502, %v2503
        %v2505 = vrot.slane %v2467, 2
        %v2506 = vrot.slane %v2468, 2
        %v2507 = vsel %vm2212, %v2505, %v2506
        %v2508 = vrot.slane %v2469, 2
        %v2509 = vrot.slane %v2470, 2
        %v2510 = vsel %vm2212, %v2508, %v2509
        %2511 = vrot.lane.b32.xlu0 %v2489, 126
        %v2512 = vpop.permute.xlu0 %2511
        %2513 = vrot.lane.b32.xlu0 %v2492, 126
        %v2514 = vpop.permute.xlu0 %2513
        %2515 = vrot.lane.b32.xlu0 %v2495, 126
        %v2516 = vpop.permute.xlu0 %2515
        %2517 = vrot.lane.b32.xlu0 %v2498, 126
        %v2518 = vpop.permute.xlu0 %2517
        %2519 = vrot.lane.b32.xlu0 %v2501, 126
        %v2520 = vpop.permute.xlu0 %2519
        %2521 = vrot.lane.b32.xlu0 %v2504, 126
        %v2522 = vpop.permute.xlu0 %2521
        %2523 = vrot.lane.b32.xlu0 %v2507, 126
        %v2524 = vpop.permute.xlu0 %2523
        %2525 = vrot.lane.b32.xlu0 %v2510, 126
        %v2526 = vpop.permute.xlu0 %2525
        %v2535 = vadd.f32 %v2390, %v2512
        %v2536 = vadd.f32 %v2391, %v2514
        %v2537 = vadd.f32 %v2392, %v2516
        %v2538 = vadd.f32 %v2393, %v2518
        %v2539 = vadd.f32 %v2394, %v2520
        %v2540 = vadd.f32 %v2395, %v2522
        %v2541 = vadd.f32 %v2396, %v2524
        %v2542 = vadd.f32 %v2397, %v2526
        %s2543 = scalar_lea.vmem %s4, 104
        %v2544 = vld [vmem:[%s2543] sm:$0x1]
        %v2545 = vld [vmem:[%s2543 + $0x1] sm:$0x1]
        %v2546 = vld [vmem:[%s2543 + $0x2] sm:$0x1]
        %v2547 = vld [vmem:[%s2543 + $0x3] sm:$0x1]
        %v2548 = vld [vmem:[%s2543 + $0x4] sm:$0x1]
        %v2549 = vld [vmem:[%s2543 + $0x5] sm:$0x1]
        %v2550 = vld [vmem:[%s2543 + $0x6] sm:$0x1]
        %v2551 = vld [vmem:[%s2543 + $0x7] sm:$0x1]
        %v2560 = vperm.slane %v2544, 0
        %v2561 = vperm.slane %v2545, 0
        %v2562 = vperm.slane %v2546, 0
        %v2563 = vperm.slane %v2547, 0
        %v2564 = vperm.slane %v2548, 0
        %v2565 = vperm.slane %v2549, 0
        %v2566 = vperm.slane %v2550, 0
        %v2567 = vperm.slane %v2551, 0
        %2568 = vset.pattern.permute.xlu0 0
        %2569 = vperm.xlu0 %2568, %v2560
        %v2570 = vpop.permute.xlu0 %2569
        %2572 = vset.pattern.permute.xlu0 0
        %2573 = vperm.xlu0 %2572, %v2561
        %v2574 = vpop.permute.xlu0 %2573
        %2576 = vset.pattern.permute.xlu0 0
        %2577 = vperm.xlu0 %2576, %v2562
        %v2578 = vpop.permute.xlu0 %2577
        %2580 = vset.pattern.permute.xlu0 0
        %2581 = vperm.xlu0 %2580, %v2563
        %v2582 = vpop.permute.xlu0 %2581
        %2584 = vset.pattern.permute.xlu0 0
        %2585 = vperm.xlu0 %2584, %v2564
        %v2586 = vpop.permute.xlu0 %2585
        %2588 = vset.pattern.permute.xlu0 0
        %2589 = vperm.xlu0 %2588, %v2565
        %v2590 = vpop.permute.xlu0 %2589
        %2592 = vset.pattern.permute.xlu0 0
        %2593 = vperm.xlu0 %2592, %v2566
        %v2594 = vpop.permute.xlu0 %2593
        %2596 = vset.pattern.permute.xlu0 0
        %2597 = vperm.xlu0 %2596, %v2567
        %v2598 = vpop.permute.xlu0 %2597
        %v2600 = vmul.f32 %v905, %v2570
        %v2601 = vmul.f32 %v906, %v2570
        %v2602 = vmul.f32 %v907, %v2574
        %v2603 = vmul.f32 %v908, %v2574
        %v2604 = vmul.f32 %v909, %v2578
        %v2605 = vmul.f32 %v910, %v2578
        %v2606 = vmul.f32 %v911, %v2582
        %v2607 = vmul.f32 %v912, %v2582
        %v2608 = vmul.f32 %v913, %v2586
        %v2609 = vmul.f32 %v914, %v2586
        %v2610 = vmul.f32 %v915, %v2590
        %v2611 = vmul.f32 %v916, %v2590
        %v2612 = vmul.f32 %v917, %v2594
        %v2613 = vmul.f32 %v918, %v2594
        %v2614 = vmul.f32 %v919, %v2598
        %v2615 = vmul.f32 %v920, %v2598
        %v2632 = vrot.slane %v2600, 2
        %v2633 = vrot.slane %v2601, 2
        %v2634 = vsel %vm2212, %v2632, %v2633
        %v2635 = vrot.slane %v2602, 2
        %v2636 = vrot.slane %v2603, 2
        %v2637 = vsel %vm2212, %v2635, %v2636
        %v2638 = vrot.slane %v2604, 2
        %v2639 = vrot.slane %v2605, 2
        %v2640 = vsel %vm2212, %v2638, %v2639
        %v2641 = vrot.slane %v2606, 2
        %v2642 = vrot.slane %v2607, 2
        %v2643 = vsel %vm2212, %v2641, %v2642
        %v2644 = vrot.slane %v2608, 2
        %v2645 = vrot.slane %v2609, 2
        %v2646 = vsel %vm2212, %v2644, %v2645
        %v2647 = vrot.slane %v2610, 2
        %v2648 = vrot.slane %v2611, 2
        %v2649 = vsel %vm2212, %v2647, %v2648
        %v2650 = vrot.slane %v2612, 2
        %v2651 = vrot.slane %v2613, 2
        %v2652 = vsel %vm2212, %v2650, %v2651
        %v2653 = vrot.slane %v2614, 2
        %v2654 = vrot.slane %v2615, 2
        %v2655 = vsel %vm2212, %v2653, %v2654
        %2656 = vrot.lane.b32.xlu0 %v2634, 125
        %v2657 = vpop.permute.xlu0 %2656
        %2658 = vrot.lane.b32.xlu0 %v2637, 125
        %v2659 = vpop.permute.xlu0 %2658
        %2660 = vrot.lane.b32.xlu0 %v2640, 125
        %v2661 = vpop.permute.xlu0 %2660
        %2662 = vrot.lane.b32.xlu0 %v2643, 125
        %v2663 = vpop.permute.xlu0 %2662
        %2664 = vrot.lane.b32.xlu0 %v2646, 125
        %v2665 = vpop.permute.xlu0 %2664
        %2666 = vrot.lane.b32.xlu0 %v2649, 125
        %v2667 = vpop.permute.xlu0 %2666
        %2668 = vrot.lane.b32.xlu0 %v2652, 125
        %v2669 = vpop.permute.xlu0 %2668
        %2670 = vrot.lane.b32.xlu0 %v2655, 125
        %v2671 = vpop.permute.xlu0 %2670
        %v2680 = vadd.f32 %v2535, %v2657
        %v2681 = vadd.f32 %v2536, %v2659
        %v2682 = vadd.f32 %v2537, %v2661
        %v2683 = vadd.f32 %v2538, %v2663
        %v2684 = vadd.f32 %v2539, %v2665
        %v2685 = vadd.f32 %v2540, %v2667
        %v2686 = vadd.f32 %v2541, %v2669
        %v2687 = vadd.f32 %v2542, %v2671
        %s2688 = scalar_lea.vmem %s4, 112
        %v2689 = vld [vmem:[%s2688] sm:$0x1]
        %v2690 = vld [vmem:[%s2688 + $0x1] sm:$0x1]
        %v2691 = vld [vmem:[%s2688 + $0x2] sm:$0x1]
        %v2692 = vld [vmem:[%s2688 + $0x3] sm:$0x1]
        %v2693 = vld [vmem:[%s2688 + $0x4] sm:$0x1]
        %v2694 = vld [vmem:[%s2688 + $0x5] sm:$0x1]
        %v2695 = vld [vmem:[%s2688 + $0x6] sm:$0x1]
        %v2696 = vld [vmem:[%s2688 + $0x7] sm:$0x1]
        %v2705 = vperm.slane %v2689, 0
        %v2706 = vperm.slane %v2690, 0
        %v2707 = vperm.slane %v2691, 0
        %v2708 = vperm.slane %v2692, 0
        %v2709 = vperm.slane %v2693, 0
        %v2710 = vperm.slane %v2694, 0
        %v2711 = vperm.slane %v2695, 0
        %v2712 = vperm.slane %v2696, 0
        %2713 = vset.pattern.permute.xlu0 0
        %2714 = vperm.xlu0 %2713, %v2705
        %v2715 = vpop.permute.xlu0 %2714
        %2717 = vset.pattern.permute.xlu0 0
        %2718 = vperm.xlu0 %2717, %v2706
        %v2719 = vpop.permute.xlu0 %2718
        %2721 = vset.pattern.permute.xlu0 0
        %2722 = vperm.xlu0 %2721, %v2707
        %v2723 = vpop.permute.xlu0 %2722
        %2725 = vset.pattern.permute.xlu0 0
        %2726 = vperm.xlu0 %2725, %v2708
        %v2727 = vpop.permute.xlu0 %2726
        %2729 = vset.pattern.permute.xlu0 0
        %2730 = vperm.xlu0 %2729, %v2709
        %v2731 = vpop.permute.xlu0 %2730
        %2733 = vset.pattern.permute.xlu0 0
        %2734 = vperm.xlu0 %2733, %v2710
        %v2735 = vpop.permute.xlu0 %2734
        %2737 = vset.pattern.permute.xlu0 0
        %2738 = vperm.xlu0 %2737, %v2711
        %v2739 = vpop.permute.xlu0 %2738
        %2741 = vset.pattern.permute.xlu0 0
        %2742 = vperm.xlu0 %2741, %v2712
        %v2743 = vpop.permute.xlu0 %2742
        %v2745 = vmul.f32 %v905, %v2715
        %v2746 = vmul.f32 %v906, %v2715
        %v2747 = vmul.f32 %v907, %v2719
        %v2748 = vmul.f32 %v908, %v2719
        %v2749 = vmul.f32 %v909, %v2723
        %v2750 = vmul.f32 %v910, %v2723
        %v2751 = vmul.f32 %v911, %v2727
        %v2752 = vmul.f32 %v912, %v2727
        %v2753 = vmul.f32 %v913, %v2731
        %v2754 = vmul.f32 %v914, %v2731
        %v2755 = vmul.f32 %v915, %v2735
        %v2756 = vmul.f32 %v916, %v2735
        %v2757 = vmul.f32 %v917, %v2739
        %v2758 = vmul.f32 %v918, %v2739
        %v2759 = vmul.f32 %v919, %v2743
        %v2760 = vmul.f32 %v920, %v2743
        %v2777 = vrot.slane %v2745, 2
        %v2778 = vrot.slane %v2746, 2
        %v2779 = vsel %vm2212, %v2777, %v2778
        %v2780 = vrot.slane %v2747, 2
        %v2781 = vrot.slane %v2748, 2
        %v2782 = vsel %vm2212, %v2780, %v2781
        %v2783 = vrot.slane %v2749, 2
        %v2784 = vrot.slane %v2750, 2
        %v2785 = vsel %vm2212, %v2783, %v2784
        %v2786 = vrot.slane %v2751, 2
        %v2787 = vrot.slane %v2752, 2
        %v2788 = vsel %vm2212, %v2786, %v2787
        %v2789 = vrot.slane %v2753, 2
        %v2790 = vrot.slane %v2754, 2
        %v2791 = vsel %vm2212, %v2789, %v2790
        %v2792 = vrot.slane %v2755, 2
        %v2793 = vrot.slane %v2756, 2
        %v2794 = vsel %vm2212, %v2792, %v2793
        %v2795 = vrot.slane %v2757, 2
        %v2796 = vrot.slane %v2758, 2
        %v2797 = vsel %vm2212, %v2795, %v2796
        %v2798 = vrot.slane %v2759, 2
        %v2799 = vrot.slane %v2760, 2
        %v2800 = vsel %vm2212, %v2798, %v2799
        %2801 = vrot.lane.b32.xlu0 %v2779, 124
        %v2802 = vpop.permute.xlu0 %2801
        %2803 = vrot.lane.b32.xlu0 %v2782, 124
        %v2804 = vpop.permute.xlu0 %2803
        %2805 = vrot.lane.b32.xlu0 %v2785, 124
        %v2806 = vpop.permute.xlu0 %2805
        %2807 = vrot.lane.b32.xlu0 %v2788, 124
        %v2808 = vpop.permute.xlu0 %2807
        %2809 = vrot.lane.b32.xlu0 %v2791, 124
        %v2810 = vpop.permute.xlu0 %2809
        %2811 = vrot.lane.b32.xlu0 %v2794, 124
        %v2812 = vpop.permute.xlu0 %2811
        %2813 = vrot.lane.b32.xlu0 %v2797, 124
        %v2814 = vpop.permute.xlu0 %2813
        %2815 = vrot.lane.b32.xlu0 %v2800, 124
        %v2816 = vpop.permute.xlu0 %2815
        %v2825 = vadd.f32 %v2680, %v2802
        %v2826 = vadd.f32 %v2681, %v2804
        %v2827 = vadd.f32 %v2682, %v2806
        %v2828 = vadd.f32 %v2683, %v2808
        %v2829 = vadd.f32 %v2684, %v2810
        %v2830 = vadd.f32 %v2685, %v2812
        %v2831 = vadd.f32 %v2686, %v2814
        %v2832 = vadd.f32 %v2687, %v2816
        %s2833 = scalar_lea.vmem %s4, 120
        %v2834 = vld [vmem:[%s2833] sm:$0x1]
        %v2835 = vld [vmem:[%s2833 + $0x1] sm:$0x1]
        %v2836 = vld [vmem:[%s2833 + $0x2] sm:$0x1]
        %v2837 = vld [vmem:[%s2833 + $0x3] sm:$0x1]
        %v2838 = vld [vmem:[%s2833 + $0x4] sm:$0x1]
        %v2839 = vld [vmem:[%s2833 + $0x5] sm:$0x1]
        %v2840 = vld [vmem:[%s2833 + $0x6] sm:$0x1]
        %v2841 = vld [vmem:[%s2833 + $0x7] sm:$0x1]
        %v2850 = vperm.slane %v2834, 0
        %v2851 = vperm.slane %v2835, 0
        %v2852 = vperm.slane %v2836, 0
        %v2853 = vperm.slane %v2837, 0
        %v2854 = vperm.slane %v2838, 0
        %v2855 = vperm.slane %v2839, 0
        %v2856 = vperm.slane %v2840, 0
        %v2857 = vperm.slane %v2841, 0
        %2858 = vset.pattern.permute.xlu0 0
        %2859 = vperm.xlu0 %2858, %v2850
        %v2860 = vpop.permute.xlu0 %2859
        %2862 = vset.pattern.permute.xlu0 0
        %2863 = vperm.xlu0 %2862, %v2851
        %v2864 = vpop.permute.xlu0 %2863
        %2866 = vset.pattern.permute.xlu0 0
        %2867 = vperm.xlu0 %2866, %v2852
        %v2868 = vpop.permute.xlu0 %2867
        %2870 = vset.pattern.permute.xlu0 0
        %2871 = vperm.xlu0 %2870, %v2853
        %v2872 = vpop.permute.xlu0 %2871
        %2874 = vset.pattern.permute.xlu0 0
        %2875 = vperm.xlu0 %2874, %v2854
        %v2876 = vpop.permute.xlu0 %2875
        %2878 = vset.pattern.permute.xlu0 0
        %2879 = vperm.xlu0 %2878, %v2855
        %v2880 = vpop.permute.xlu0 %2879
        %2882 = vset.pattern.permute.xlu0 0
        %2883 = vperm.xlu0 %2882, %v2856
        %v2884 = vpop.permute.xlu0 %2883
        %2886 = vset.pattern.permute.xlu0 0
        %2887 = vperm.xlu0 %2886, %v2857
        %v2888 = vpop.permute.xlu0 %2887
        %v2890 = vmul.f32 %v905, %v2860
        %v2891 = vmul.f32 %v906, %v2860
        %v2892 = vmul.f32 %v907, %v2864
        %v2893 = vmul.f32 %v908, %v2864
        %v2894 = vmul.f32 %v909, %v2868
        %v2895 = vmul.f32 %v910, %v2868
        %v2896 = vmul.f32 %v911, %v2872
        %v2897 = vmul.f32 %v912, %v2872
        %v2898 = vmul.f32 %v913, %v2876
        %v2899 = vmul.f32 %v914, %v2876
        %v2900 = vmul.f32 %v915, %v2880
        %v2901 = vmul.f32 %v916, %v2880
        %v2902 = vmul.f32 %v917, %v2884
        %v2903 = vmul.f32 %v918, %v2884
        %v2904 = vmul.f32 %v919, %v2888
        %v2905 = vmul.f32 %v920, %v2888
        %vm2922 = vcmask 1044480
        %v2923 = vrot.slane %v2890, 3
        %v2924 = vrot.slane %v2891, 3
        %v2925 = vsel %vm2922, %v2923, %v2924
        %v2926 = vrot.slane %v2892, 3
        %v2927 = vrot.slane %v2893, 3
        %v2928 = vsel %vm2922, %v2926, %v2927
        %v2929 = vrot.slane %v2894, 3
        %v2930 = vrot.slane %v2895, 3
        %v2931 = vsel %vm2922, %v2929, %v2930
        %v2932 = vrot.slane %v2896, 3
        %v2933 = vrot.slane %v2897, 3
        %v2934 = vsel %vm2922, %v2932, %v2933
        %v2935 = vrot.slane %v2898, 3
        %v2936 = vrot.slane %v2899, 3
        %v2937 = vsel %vm2922, %v2935, %v2936
        %v2938 = vrot.slane %v2900, 3
        %v2939 = vrot.slane %v2901, 3
        %v2940 = vsel %vm2922, %v2938, %v2939
        %v2941 = vrot.slane %v2902, 3
        %v2942 = vrot.slane %v2903, 3
        %v2943 = vsel %vm2922, %v2941, %v2942
        %v2944 = vrot.slane %v2904, 3
        %v2945 = vrot.slane %v2905, 3
        %v2946 = vsel %vm2922, %v2944, %v2945
        %v2955 = vadd.f32 %v2825, %v2925
        %v2956 = vadd.f32 %v2826, %v2928
        %v2957 = vadd.f32 %v2827, %v2931
        %v2958 = vadd.f32 %v2828, %v2934
        %v2959 = vadd.f32 %v2829, %v2937
        %v2960 = vadd.f32 %v2830, %v2940
        %v2961 = vadd.f32 %v2831, %v2943
        %v2962 = vadd.f32 %v2832, %v2946
        %s2963 = scalar_lea.vmem %s4, 128
        %v2964 = vld [vmem:[%s2963] sm:$0x1]
        %v2965 = vld [vmem:[%s2963 + $0x1] sm:$0x1]
        %v2966 = vld [vmem:[%s2963 + $0x2] sm:$0x1]
        %v2967 = vld [vmem:[%s2963 + $0x3] sm:$0x1]
        %v2968 = vld [vmem:[%s2963 + $0x4] sm:$0x1]
        %v2969 = vld [vmem:[%s2963 + $0x5] sm:$0x1]
        %v2970 = vld [vmem:[%s2963 + $0x6] sm:$0x1]
        %v2971 = vld [vmem:[%s2963 + $0x7] sm:$0x1]
        %v2980 = vperm.slane %v2964, 0
        %v2981 = vperm.slane %v2965, 0
        %v2982 = vperm.slane %v2966, 0
        %v2983 = vperm.slane %v2967, 0
        %v2984 = vperm.slane %v2968, 0
        %v2985 = vperm.slane %v2969, 0
        %v2986 = vperm.slane %v2970, 0
        %v2987 = vperm.slane %v2971, 0
        %2988 = vset.pattern.permute.xlu0 0
        %2989 = vperm.xlu0 %2988, %v2980
        %v2990 = vpop.permute.xlu0 %2989
        %2992 = vset.pattern.permute.xlu0 0
        %2993 = vperm.xlu0 %2992, %v2981
        %v2994 = vpop.permute.xlu0 %2993
        %2996 = vset.pattern.permute.xlu0 0
        %2997 = vperm.xlu0 %2996, %v2982
        %v2998 = vpop.permute.xlu0 %2997
        %3000 = vset.pattern.permute.xlu0 0
        %3001 = vperm.xlu0 %3000, %v2983
        %v3002 = vpop.permute.xlu0 %3001
        %3004 = vset.pattern.permute.xlu0 0
        %3005 = vperm.xlu0 %3004, %v2984
        %v3006 = vpop.permute.xlu0 %3005
        %3008 = vset.pattern.permute.xlu0 0
        %3009 = vperm.xlu0 %3008, %v2985
        %v3010 = vpop.permute.xlu0 %3009
        %3012 = vset.pattern.permute.xlu0 0
        %3013 = vperm.xlu0 %3012, %v2986
        %v3014 = vpop.permute.xlu0 %3013
        %3016 = vset.pattern.permute.xlu0 0
        %3017 = vperm.xlu0 %3016, %v2987
        %v3018 = vpop.permute.xlu0 %3017
        %v3020 = vmul.f32 %v905, %v2990
        %v3021 = vmul.f32 %v906, %v2990
        %v3022 = vmul.f32 %v907, %v2994
        %v3023 = vmul.f32 %v908, %v2994
        %v3024 = vmul.f32 %v909, %v2998
        %v3025 = vmul.f32 %v910, %v2998
        %v3026 = vmul.f32 %v911, %v3002
        %v3027 = vmul.f32 %v912, %v3002
        %v3028 = vmul.f32 %v913, %v3006
        %v3029 = vmul.f32 %v914, %v3006
        %v3030 = vmul.f32 %v915, %v3010
        %v3031 = vmul.f32 %v916, %v3010
        %v3032 = vmul.f32 %v917, %v3014
        %v3033 = vmul.f32 %v918, %v3014
        %v3034 = vmul.f32 %v919, %v3018
        %v3035 = vmul.f32 %v920, %v3018
        %v3052 = vrot.slane %v3020, 3
        %v3053 = vrot.slane %v3021, 3
        %v3054 = vsel %vm2922, %v3052, %v3053
        %v3055 = vrot.slane %v3022, 3
        %v3056 = vrot.slane %v3023, 3
        %v3057 = vsel %vm2922, %v3055, %v3056
        %v3058 = vrot.slane %v3024, 3
        %v3059 = vrot.slane %v3025, 3
        %v3060 = vsel %vm2922, %v3058, %v3059
        %v3061 = vrot.slane %v3026, 3
        %v3062 = vrot.slane %v3027, 3
        %v3063 = vsel %vm2922, %v3061, %v3062
        %v3064 = vrot.slane %v3028, 3
        %v3065 = vrot.slane %v3029, 3
        %v3066 = vsel %vm2922, %v3064, %v3065
        %v3067 = vrot.slane %v3030, 3
        %v3068 = vrot.slane %v3031, 3
        %v3069 = vsel %vm2922, %v3067, %v3068
        %v3070 = vrot.slane %v3032, 3
        %v3071 = vrot.slane %v3033, 3
        %v3072 = vsel %vm2922, %v3070, %v3071
        %v3073 = vrot.slane %v3034, 3
        %v3074 = vrot.slane %v3035, 3
        %v3075 = vsel %vm2922, %v3073, %v3074
        %3076 = vrot.lane.b32.xlu0 %v3054, 127
        %v3077 = vpop.permute.xlu0 %3076
        %3078 = vrot.lane.b32.xlu0 %v3057, 127
        %v3079 = vpop.permute.xlu0 %3078
        %3080 = vrot.lane.b32.xlu0 %v3060, 127
        %v3081 = vpop.permute.xlu0 %3080
        %3082 = vrot.lane.b32.xlu0 %v3063, 127
        %v3083 = vpop.permute.xlu0 %3082
        %3084 = vrot.lane.b32.xlu0 %v3066, 127
        %v3085 = vpop.permute.xlu0 %3084
        %3086 = vrot.lane.b32.xlu0 %v3069, 127
        %v3087 = vpop.permute.xlu0 %3086
        %3088 = vrot.lane.b32.xlu0 %v3072, 127
        %v3089 = vpop.permute.xlu0 %3088
        %3090 = vrot.lane.b32.xlu0 %v3075, 127
        %v3091 = vpop.permute.xlu0 %3090
        %v3100 = vadd.f32 %v2955, %v3077
        %v3101 = vadd.f32 %v2956, %v3079
        %v3102 = vadd.f32 %v2957, %v3081
        %v3103 = vadd.f32 %v2958, %v3083
        %v3104 = vadd.f32 %v2959, %v3085
        %v3105 = vadd.f32 %v2960, %v3087
        %v3106 = vadd.f32 %v2961, %v3089
        %v3107 = vadd.f32 %v2962, %v3091
        %s3108 = scalar_lea.vmem %s4, 136
        %v3109 = vld [vmem:[%s3108] sm:$0x1]
        %v3110 = vld [vmem:[%s3108 + $0x1] sm:$0x1]
        %v3111 = vld [vmem:[%s3108 + $0x2] sm:$0x1]
        %v3112 = vld [vmem:[%s3108 + $0x3] sm:$0x1]
        %v3113 = vld [vmem:[%s3108 + $0x4] sm:$0x1]
        %v3114 = vld [vmem:[%s3108 + $0x5] sm:$0x1]
        %v3115 = vld [vmem:[%s3108 + $0x6] sm:$0x1]
        %v3116 = vld [vmem:[%s3108 + $0x7] sm:$0x1]
        %v3125 = vperm.slane %v3109, 0
        %v3126 = vperm.slane %v3110, 0
        %v3127 = vperm.slane %v3111, 0
        %v3128 = vperm.slane %v3112, 0
        %v3129 = vperm.slane %v3113, 0
        %v3130 = vperm.slane %v3114, 0
        %v3131 = vperm.slane %v3115, 0
        %v3132 = vperm.slane %v3116, 0
        %3133 = vset.pattern.permute.xlu0 0
        %3134 = vperm.xlu0 %3133, %v3125
        %v3135 = vpop.permute.xlu0 %3134
        %3137 = vset.pattern.permute.xlu0 0
        %3138 = vperm.xlu0 %3137, %v3126
        %v3139 = vpop.permute.xlu0 %3138
        %3141 = vset.pattern.permute.xlu0 0
        %3142 = vperm.xlu0 %3141, %v3127
        %v3143 = vpop.permute.xlu0 %3142
        %3145 = vset.pattern.permute.xlu0 0
        %3146 = vperm.xlu0 %3145, %v3128
        %v3147 = vpop.permute.xlu0 %3146
        %3149 = vset.pattern.permute.xlu0 0
        %3150 = vperm.xlu0 %3149, %v3129
        %v3151 = vpop.permute.xlu0 %3150
        %3153 = vset.pattern.permute.xlu0 0
        %3154 = vperm.xlu0 %3153, %v3130
        %v3155 = vpop.permute.xlu0 %3154
        %3157 = vset.pattern.permute.xlu0 0
        %3158 = vperm.xlu0 %3157, %v3131
        %v3159 = vpop.permute.xlu0 %3158
        %3161 = vset.pattern.permute.xlu0 0
        %3162 = vperm.xlu0 %3161, %v3132
        %v3163 = vpop.permute.xlu0 %3162
        %v3165 = vmul.f32 %v905, %v3135
        %v3166 = vmul.f32 %v906, %v3135
        %v3167 = vmul.f32 %v907, %v3139
        %v3168 = vmul.f32 %v908, %v3139
        %v3169 = vmul.f32 %v909, %v3143
        %v3170 = vmul.f32 %v910, %v3143
        %v3171 = vmul.f32 %v911, %v3147
        %v3172 = vmul.f32 %v912, %v3147
        %v3173 = vmul.f32 %v913, %v3151
        %v3174 = vmul.f32 %v914, %v3151
        %v3175 = vmul.f32 %v915, %v3155
        %v3176 = vmul.f32 %v916, %v3155
        %v3177 = vmul.f32 %v917, %v3159
        %v3178 = vmul.f32 %v918, %v3159
        %v3179 = vmul.f32 %v919, %v3163
        %v3180 = vmul.f32 %v920, %v3163
        %v3197 = vrot.slane %v3165, 3
        %v3198 = vrot.slane %v3166, 3
        %v3199 = vsel %vm2922, %v3197, %v3198
        %v3200 = vrot.slane %v3167, 3
        %v3201 = vrot.slane %v3168, 3
        %v3202 = vsel %vm2922, %v3200, %v3201
        %v3203 = vrot.slane %v3169, 3
        %v3204 = vrot.slane %v3170, 3
        %v3205 = vsel %vm2922, %v3203, %v3204
        %v3206 = vrot.slane %v3171, 3
        %v3207 = vrot.slane %v3172, 3
        %v3208 = vsel %vm2922, %v3206, %v3207
        %v3209 = vrot.slane %v3173, 3
        %v3210 = vrot.slane %v3174, 3
        %v3211 = vsel %vm2922, %v3209, %v3210
        %v3212 = vrot.slane %v3175, 3
        %v3213 = vrot.slane %v3176, 3
        %v3214 = vsel %vm2922, %v3212, %v3213
        %v3215 = vrot.slane %v3177, 3
        %v3216 = vrot.slane %v3178, 3
        %v3217 = vsel %vm2922, %v3215, %v3216
        %v3218 = vrot.slane %v3179, 3
        %v3219 = vrot.slane %v3180, 3
        %v3220 = vsel %vm2922, %v3218, %v3219
        %3221 = vrot.lane.b32.xlu0 %v3199, 126
        %v3222 = vpop.permute.xlu0 %3221
        %3223 = vrot.lane.b32.xlu0 %v3202, 126
        %v3224 = vpop.permute.xlu0 %3223
        %3225 = vrot.lane.b32.xlu0 %v3205, 126
        %v3226 = vpop.permute.xlu0 %3225
        %3227 = vrot.lane.b32.xlu0 %v3208, 126
        %v3228 = vpop.permute.xlu0 %3227
        %3229 = vrot.lane.b32.xlu0 %v3211, 126
        %v3230 = vpop.permute.xlu0 %3229
        %3231 = vrot.lane.b32.xlu0 %v3214, 126
        %v3232 = vpop.permute.xlu0 %3231
        %3233 = vrot.lane.b32.xlu0 %v3217, 126
        %v3234 = vpop.permute.xlu0 %3233
        %3235 = vrot.lane.b32.xlu0 %v3220, 126
        %v3236 = vpop.permute.xlu0 %3235
        %v3245 = vadd.f32 %v3100, %v3222
        %v3246 = vadd.f32 %v3101, %v3224
        %v3247 = vadd.f32 %v3102, %v3226
        %v3248 = vadd.f32 %v3103, %v3228
        %v3249 = vadd.f32 %v3104, %v3230
        %v3250 = vadd.f32 %v3105, %v3232
        %v3251 = vadd.f32 %v3106, %v3234
        %v3252 = vadd.f32 %v3107, %v3236
        %s3253 = scalar_lea.vmem %s4, 144
        %v3254 = vld [vmem:[%s3253] sm:$0x1]
        %v3255 = vld [vmem:[%s3253 + $0x1] sm:$0x1]
        %v3256 = vld [vmem:[%s3253 + $0x2] sm:$0x1]
        %v3257 = vld [vmem:[%s3253 + $0x3] sm:$0x1]
        %v3258 = vld [vmem:[%s3253 + $0x4] sm:$0x1]
        %v3259 = vld [vmem:[%s3253 + $0x5] sm:$0x1]
        %v3260 = vld [vmem:[%s3253 + $0x6] sm:$0x1]
        %v3261 = vld [vmem:[%s3253 + $0x7] sm:$0x1]
        %v3270 = vperm.slane %v3254, 0
        %v3271 = vperm.slane %v3255, 0
        %v3272 = vperm.slane %v3256, 0
        %v3273 = vperm.slane %v3257, 0
        %v3274 = vperm.slane %v3258, 0
        %v3275 = vperm.slane %v3259, 0
        %v3276 = vperm.slane %v3260, 0
        %v3277 = vperm.slane %v3261, 0
        %3278 = vset.pattern.permute.xlu0 0
        %3279 = vperm.xlu0 %3278, %v3270
        %v3280 = vpop.permute.xlu0 %3279
        %3282 = vset.pattern.permute.xlu0 0
        %3283 = vperm.xlu0 %3282, %v3271
        %v3284 = vpop.permute.xlu0 %3283
        %3286 = vset.pattern.permute.xlu0 0
        %3287 = vperm.xlu0 %3286, %v3272
        %v3288 = vpop.permute.xlu0 %3287
        %3290 = vset.pattern.permute.xlu0 0
        %3291 = vperm.xlu0 %3290, %v3273
        %v3292 = vpop.permute.xlu0 %3291
        %3294 = vset.pattern.permute.xlu0 0
        %3295 = vperm.xlu0 %3294, %v3274
        %v3296 = vpop.permute.xlu0 %3295
        %3298 = vset.pattern.permute.xlu0 0
        %3299 = vperm.xlu0 %3298, %v3275
        %v3300 = vpop.permute.xlu0 %3299
        %3302 = vset.pattern.permute.xlu0 0
        %3303 = vperm.xlu0 %3302, %v3276
        %v3304 = vpop.permute.xlu0 %3303
        %3306 = vset.pattern.permute.xlu0 0
        %3307 = vperm.xlu0 %3306, %v3277
        %v3308 = vpop.permute.xlu0 %3307
        %v3310 = vmul.f32 %v905, %v3280
        %v3311 = vmul.f32 %v906, %v3280
        %v3312 = vmul.f32 %v907, %v3284
        %v3313 = vmul.f32 %v908, %v3284
        %v3314 = vmul.f32 %v909, %v3288
        %v3315 = vmul.f32 %v910, %v3288
        %v3316 = vmul.f32 %v911, %v3292
        %v3317 = vmul.f32 %v912, %v3292
        %v3318 = vmul.f32 %v913, %v3296
        %v3319 = vmul.f32 %v914, %v3296
        %v3320 = vmul.f32 %v915, %v3300
        %v3321 = vmul.f32 %v916, %v3300
        %v3322 = vmul.f32 %v917, %v3304
        %v3323 = vmul.f32 %v918, %v3304
        %v3324 = vmul.f32 %v919, %v3308
        %v3325 = vmul.f32 %v920, %v3308
        %v3342 = vrot.slane %v3310, 3
        %v3343 = vrot.slane %v3311, 3
        %v3344 = vsel %vm2922, %v3342, %v3343
        %v3345 = vrot.slane %v3312, 3
        %v3346 = vrot.slane %v3313, 3
        %v3347 = vsel %vm2922, %v3345, %v3346
        %v3348 = vrot.slane %v3314, 3
        %v3349 = vrot.slane %v3315, 3
        %v3350 = vsel %vm2922, %v3348, %v3349
        %v3351 = vrot.slane %v3316, 3
        %v3352 = vrot.slane %v3317, 3
        %v3353 = vsel %vm2922, %v3351, %v3352
        %v3354 = vrot.slane %v3318, 3
        %v3355 = vrot.slane %v3319, 3
        %v3356 = vsel %vm2922, %v3354, %v3355
        %v3357 = vrot.slane %v3320, 3
        %v3358 = vrot.slane %v3321, 3
        %v3359 = vsel %vm2922, %v3357, %v3358
        %v3360 = vrot.slane %v3322, 3
        %v3361 = vrot.slane %v3323, 3
        %v3362 = vsel %vm2922, %v3360, %v3361
        %v3363 = vrot.slane %v3324, 3
        %v3364 = vrot.slane %v3325, 3
        %v3365 = vsel %vm2922, %v3363, %v3364
        %3366 = vrot.lane.b32.xlu0 %v3344, 125
        %v3367 = vpop.permute.xlu0 %3366
        %3368 = vrot.lane.b32.xlu0 %v3347, 125
        %v3369 = vpop.permute.xlu0 %3368
        %3370 = vrot.lane.b32.xlu0 %v3350, 125
        %v3371 = vpop.permute.xlu0 %3370
        %3372 = vrot.lane.b32.xlu0 %v3353, 125
        %v3373 = vpop.permute.xlu0 %3372
        %3374 = vrot.lane.b32.xlu0 %v3356, 125
        %v3375 = vpop.permute.xlu0 %3374
        %3376 = vrot.lane.b32.xlu0 %v3359, 125
        %v3377 = vpop.permute.xlu0 %3376
        %3378 = vrot.lane.b32.xlu0 %v3362, 125
        %v3379 = vpop.permute.xlu0 %3378
        %3380 = vrot.lane.b32.xlu0 %v3365, 125
        %v3381 = vpop.permute.xlu0 %3380
        %v3390 = vadd.f32 %v3245, %v3367
        %v3391 = vadd.f32 %v3246, %v3369
        %v3392 = vadd.f32 %v3247, %v3371
        %v3393 = vadd.f32 %v3248, %v3373
        %v3394 = vadd.f32 %v3249, %v3375
        %v3395 = vadd.f32 %v3250, %v3377
        %v3396 = vadd.f32 %v3251, %v3379
        %v3397 = vadd.f32 %v3252, %v3381
        %s3398 = scalar_lea.vmem %s4, 152
        %v3399 = vld [vmem:[%s3398] sm:$0x1]
        %v3400 = vld [vmem:[%s3398 + $0x1] sm:$0x1]
        %v3401 = vld [vmem:[%s3398 + $0x2] sm:$0x1]
        %v3402 = vld [vmem:[%s3398 + $0x3] sm:$0x1]
        %v3403 = vld [vmem:[%s3398 + $0x4] sm:$0x1]
        %v3404 = vld [vmem:[%s3398 + $0x5] sm:$0x1]
        %v3405 = vld [vmem:[%s3398 + $0x6] sm:$0x1]
        %v3406 = vld [vmem:[%s3398 + $0x7] sm:$0x1]
        %v3415 = vperm.slane %v3399, 0
        %v3416 = vperm.slane %v3400, 0
        %v3417 = vperm.slane %v3401, 0
        %v3418 = vperm.slane %v3402, 0
        %v3419 = vperm.slane %v3403, 0
        %v3420 = vperm.slane %v3404, 0
        %v3421 = vperm.slane %v3405, 0
        %v3422 = vperm.slane %v3406, 0
        %3423 = vset.pattern.permute.xlu0 0
        %3424 = vperm.xlu0 %3423, %v3415
        %v3425 = vpop.permute.xlu0 %3424
        %3427 = vset.pattern.permute.xlu0 0
        %3428 = vperm.xlu0 %3427, %v3416
        %v3429 = vpop.permute.xlu0 %3428
        %3431 = vset.pattern.permute.xlu0 0
        %3432 = vperm.xlu0 %3431, %v3417
        %v3433 = vpop.permute.xlu0 %3432
        %3435 = vset.pattern.permute.xlu0 0
        %3436 = vperm.xlu0 %3435, %v3418
        %v3437 = vpop.permute.xlu0 %3436
        %3439 = vset.pattern.permute.xlu0 0
        %3440 = vperm.xlu0 %3439, %v3419
        %v3441 = vpop.permute.xlu0 %3440
        %3443 = vset.pattern.permute.xlu0 0
        %3444 = vperm.xlu0 %3443, %v3420
        %v3445 = vpop.permute.xlu0 %3444
        %3447 = vset.pattern.permute.xlu0 0
        %3448 = vperm.xlu0 %3447, %v3421
        %v3449 = vpop.permute.xlu0 %3448
        %3451 = vset.pattern.permute.xlu0 0
        %3452 = vperm.xlu0 %3451, %v3422
        %v3453 = vpop.permute.xlu0 %3452
        %v3455 = vmul.f32 %v905, %v3425
        %v3456 = vmul.f32 %v906, %v3425
        %v3457 = vmul.f32 %v907, %v3429
        %v3458 = vmul.f32 %v908, %v3429
        %v3459 = vmul.f32 %v909, %v3433
        %v3460 = vmul.f32 %v910, %v3433
        %v3461 = vmul.f32 %v911, %v3437
        %v3462 = vmul.f32 %v912, %v3437
        %v3463 = vmul.f32 %v913, %v3441
        %v3464 = vmul.f32 %v914, %v3441
        %v3465 = vmul.f32 %v915, %v3445
        %v3466 = vmul.f32 %v916, %v3445
        %v3467 = vmul.f32 %v917, %v3449
        %v3468 = vmul.f32 %v918, %v3449
        %v3469 = vmul.f32 %v919, %v3453
        %v3470 = vmul.f32 %v920, %v3453
        %v3487 = vrot.slane %v3455, 3
        %v3488 = vrot.slane %v3456, 3
        %v3489 = vsel %vm2922, %v3487, %v3488
        %v3490 = vrot.slane %v3457, 3
        %v3491 = vrot.slane %v3458, 3
        %v3492 = vsel %vm2922, %v3490, %v3491
        %v3493 = vrot.slane %v3459, 3
        %v3494 = vrot.slane %v3460, 3
        %v3495 = vsel %vm2922, %v3493, %v3494
        %v3496 = vrot.slane %v3461, 3
        %v3497 = vrot.slane %v3462, 3
        %v3498 = vsel %vm2922, %v3496, %v3497
        %v3499 = vrot.slane %v3463, 3
        %v3500 = vrot.slane %v3464, 3
        %v3501 = vsel %vm2922, %v3499, %v3500
        %v3502 = vrot.slane %v3465, 3
        %v3503 = vrot.slane %v3466, 3
        %v3504 = vsel %vm2922, %v3502, %v3503
        %v3505 = vrot.slane %v3467, 3
        %v3506 = vrot.slane %v3468, 3
        %v3507 = vsel %vm2922, %v3505, %v3506
        %v3508 = vrot.slane %v3469, 3
        %v3509 = vrot.slane %v3470, 3
        %v3510 = vsel %vm2922, %v3508, %v3509
        %3511 = vrot.lane.b32.xlu0 %v3489, 124
        %v3512 = vpop.permute.xlu0 %3511
        %3513 = vrot.lane.b32.xlu0 %v3492, 124
        %v3514 = vpop.permute.xlu0 %3513
        %3515 = vrot.lane.b32.xlu0 %v3495, 124
        %v3516 = vpop.permute.xlu0 %3515
        %3517 = vrot.lane.b32.xlu0 %v3498, 124
        %v3518 = vpop.permute.xlu0 %3517
        %3519 = vrot.lane.b32.xlu0 %v3501, 124
        %v3520 = vpop.permute.xlu0 %3519
        %3521 = vrot.lane.b32.xlu0 %v3504, 124
        %v3522 = vpop.permute.xlu0 %3521
        %3523 = vrot.lane.b32.xlu0 %v3507, 124
        %v3524 = vpop.permute.xlu0 %3523
        %3525 = vrot.lane.b32.xlu0 %v3510, 124
        %v3526 = vpop.permute.xlu0 %3525
        %v3535 = vadd.f32 %v3390, %v3512
        %v3536 = vadd.f32 %v3391, %v3514
        %v3537 = vadd.f32 %v3392, %v3516
        %v3538 = vadd.f32 %v3393, %v3518
        %v3539 = vadd.f32 %v3394, %v3520
        %v3540 = vadd.f32 %v3395, %v3522
        %v3541 = vadd.f32 %v3396, %v3524
        %v3542 = vadd.f32 %v3397, %v3526
        %s3543 = scalar_lea.vmem %s4, 160
        %v3544 = vld [vmem:[%s3543] sm:$0x1]
        %v3545 = vld [vmem:[%s3543 + $0x1] sm:$0x1]
        %v3546 = vld [vmem:[%s3543 + $0x2] sm:$0x1]
        %v3547 = vld [vmem:[%s3543 + $0x3] sm:$0x1]
        %v3548 = vld [vmem:[%s3543 + $0x4] sm:$0x1]
        %v3549 = vld [vmem:[%s3543 + $0x5] sm:$0x1]
        %v3550 = vld [vmem:[%s3543 + $0x6] sm:$0x1]
        %v3551 = vld [vmem:[%s3543 + $0x7] sm:$0x1]
        %v3560 = vperm.slane %v3544, 0
        %v3561 = vperm.slane %v3545, 0
        %v3562 = vperm.slane %v3546, 0
        %v3563 = vperm.slane %v3547, 0
        %v3564 = vperm.slane %v3548, 0
        %v3565 = vperm.slane %v3549, 0
        %v3566 = vperm.slane %v3550, 0
        %v3567 = vperm.slane %v3551, 0
        %3568 = vset.pattern.permute.xlu0 0
        %3569 = vperm.xlu0 %3568, %v3560
        %v3570 = vpop.permute.xlu0 %3569
        %3572 = vset.pattern.permute.xlu0 0
        %3573 = vperm.xlu0 %3572, %v3561
        %v3574 = vpop.permute.xlu0 %3573
        %3576 = vset.pattern.permute.xlu0 0
        %3577 = vperm.xlu0 %3576, %v3562
        %v3578 = vpop.permute.xlu0 %3577
        %3580 = vset.pattern.permute.xlu0 0
        %3581 = vperm.xlu0 %3580, %v3563
        %v3582 = vpop.permute.xlu0 %3581
        %3584 = vset.pattern.permute.xlu0 0
        %3585 = vperm.xlu0 %3584, %v3564
        %v3586 = vpop.permute.xlu0 %3585
        %3588 = vset.pattern.permute.xlu0 0
        %3589 = vperm.xlu0 %3588, %v3565
        %v3590 = vpop.permute.xlu0 %3589
        %3592 = vset.pattern.permute.xlu0 0
        %3593 = vperm.xlu0 %3592, %v3566
        %v3594 = vpop.permute.xlu0 %3593
        %3596 = vset.pattern.permute.xlu0 0
        %3597 = vperm.xlu0 %3596, %v3567
        %v3598 = vpop.permute.xlu0 %3597
        %v3600 = vmul.f32 %v905, %v3570
        %v3601 = vmul.f32 %v906, %v3570
        %v3602 = vmul.f32 %v907, %v3574
        %v3603 = vmul.f32 %v908, %v3574
        %v3604 = vmul.f32 %v909, %v3578
        %v3605 = vmul.f32 %v910, %v3578
        %v3606 = vmul.f32 %v911, %v3582
        %v3607 = vmul.f32 %v912, %v3582
        %v3608 = vmul.f32 %v913, %v3586
        %v3609 = vmul.f32 %v914, %v3586
        %v3610 = vmul.f32 %v915, %v3590
        %v3611 = vmul.f32 %v916, %v3590
        %v3612 = vmul.f32 %v917, %v3594
        %v3613 = vmul.f32 %v918, %v3594
        %v3614 = vmul.f32 %v919, %v3598
        %v3615 = vmul.f32 %v920, %v3598
        %vm3632 = vcmask 1043456
        %v3633 = vrot.slane %v3600, 4
        %v3634 = vrot.slane %v3601, 4
        %v3635 = vsel %vm3632, %v3633, %v3634
        %v3636 = vrot.slane %v3602, 4
        %v3637 = vrot.slane %v3603, 4
        %v3638 = vsel %vm3632, %v3636, %v3637
        %v3639 = vrot.slane %v3604, 4
        %v3640 = vrot.slane %v3605, 4
        %v3641 = vsel %vm3632, %v3639, %v3640
        %v3642 = vrot.slane %v3606, 4
        %v3643 = vrot.slane %v3607, 4
        %v3644 = vsel %vm3632, %v3642, %v3643
        %v3645 = vrot.slane %v3608, 4
        %v3646 = vrot.slane %v3609, 4
        %v3647 = vsel %vm3632, %v3645, %v3646
        %v3648 = vrot.slane %v3610, 4
        %v3649 = vrot.slane %v3611, 4
        %v3650 = vsel %vm3632, %v3648, %v3649
        %v3651 = vrot.slane %v3612, 4
        %v3652 = vrot.slane %v3613, 4
        %v3653 = vsel %vm3632, %v3651, %v3652
        %v3654 = vrot.slane %v3614, 4
        %v3655 = vrot.slane %v3615, 4
        %v3656 = vsel %vm3632, %v3654, %v3655
        %v3665 = vadd.f32 %v3535, %v3635
        %v3666 = vadd.f32 %v3536, %v3638
        %v3667 = vadd.f32 %v3537, %v3641
        %v3668 = vadd.f32 %v3538, %v3644
        %v3669 = vadd.f32 %v3539, %v3647
        %v3670 = vadd.f32 %v3540, %v3650
        %v3671 = vadd.f32 %v3541, %v3653
        %v3672 = vadd.f32 %v3542, %v3656
        %s3673 = scalar_lea.vmem %s4, 168
        %v3674 = vld [vmem:[%s3673] sm:$0x1]
        %v3675 = vld [vmem:[%s3673 + $0x1] sm:$0x1]
        %v3676 = vld [vmem:[%s3673 + $0x2] sm:$0x1]
        %v3677 = vld [vmem:[%s3673 + $0x3] sm:$0x1]
        %v3678 = vld [vmem:[%s3673 + $0x4] sm:$0x1]
        %v3679 = vld [vmem:[%s3673 + $0x5] sm:$0x1]
        %v3680 = vld [vmem:[%s3673 + $0x6] sm:$0x1]
        %v3681 = vld [vmem:[%s3673 + $0x7] sm:$0x1]
        %v3690 = vperm.slane %v3674, 0
        %v3691 = vperm.slane %v3675, 0
        %v3692 = vperm.slane %v3676, 0
        %v3693 = vperm.slane %v3677, 0
        %v3694 = vperm.slane %v3678, 0
        %v3695 = vperm.slane %v3679, 0
        %v3696 = vperm.slane %v3680, 0
        %v3697 = vperm.slane %v3681, 0
        %3698 = vset.pattern.permute.xlu0 0
        %3699 = vperm.xlu0 %3698, %v3690
        %v3700 = vpop.permute.xlu0 %3699
        %3702 = vset.pattern.permute.xlu0 0
        %3703 = vperm.xlu0 %3702, %v3691
        %v3704 = vpop.permute.xlu0 %3703
        %3706 = vset.pattern.permute.xlu0 0
        %3707 = vperm.xlu0 %3706, %v3692
        %v3708 = vpop.permute.xlu0 %3707
        %3710 = vset.pattern.permute.xlu0 0
        %3711 = vperm.xlu0 %3710, %v3693
        %v3712 = vpop.permute.xlu0 %3711
        %3714 = vset.pattern.permute.xlu0 0
        %3715 = vperm.xlu0 %3714, %v3694
        %v3716 = vpop.permute.xlu0 %3715
        %3718 = vset.pattern.permute.xlu0 0
        %3719 = vperm.xlu0 %3718, %v3695
        %v3720 = vpop.permute.xlu0 %3719
        %3722 = vset.pattern.permute.xlu0 0
        %3723 = vperm.xlu0 %3722, %v3696
        %v3724 = vpop.permute.xlu0 %3723
        %3726 = vset.pattern.permute.xlu0 0
        %3727 = vperm.xlu0 %3726, %v3697
        %v3728 = vpop.permute.xlu0 %3727
        %v3730 = vmul.f32 %v905, %v3700
        %v3731 = vmul.f32 %v906, %v3700
        %v3732 = vmul.f32 %v907, %v3704
        %v3733 = vmul.f32 %v908, %v3704
        %v3734 = vmul.f32 %v909, %v3708
        %v3735 = vmul.f32 %v910, %v3708
        %v3736 = vmul.f32 %v911, %v3712
        %v3737 = vmul.f32 %v912, %v3712
        %v3738 = vmul.f32 %v913, %v3716
        %v3739 = vmul.f32 %v914, %v3716
        %v3740 = vmul.f32 %v915, %v3720
        %v3741 = vmul.f32 %v916, %v3720
        %v3742 = vmul.f32 %v917, %v3724
        %v3743 = vmul.f32 %v918, %v3724
        %v3744 = vmul.f32 %v919, %v3728
        %v3745 = vmul.f32 %v920, %v3728
        %v3762 = vrot.slane %v3730, 4
        %v3763 = vrot.slane %v3731, 4
        %v3764 = vsel %vm3632, %v3762, %v3763
        %v3765 = vrot.slane %v3732, 4
        %v3766 = vrot.slane %v3733, 4
        %v3767 = vsel %vm3632, %v3765, %v3766
        %v3768 = vrot.slane %v3734, 4
        %v3769 = vrot.slane %v3735, 4
        %v3770 = vsel %vm3632, %v3768, %v3769
        %v3771 = vrot.slane %v3736, 4
        %v3772 = vrot.slane %v3737, 4
        %v3773 = vsel %vm3632, %v3771, %v3772
        %v3774 = vrot.slane %v3738, 4
        %v3775 = vrot.slane %v3739, 4
        %v3776 = vsel %vm3632, %v3774, %v3775
        %v3777 = vrot.slane %v3740, 4
        %v3778 = vrot.slane %v3741, 4
        %v3779 = vsel %vm3632, %v3777, %v3778
        %v3780 = vrot.slane %v3742, 4
        %v3781 = vrot.slane %v3743, 4
        %v3782 = vsel %vm3632, %v3780, %v3781
        %v3783 = vrot.slane %v3744, 4
        %v3784 = vrot.slane %v3745, 4
        %v3785 = vsel %vm3632, %v3783, %v3784
        %3786 = vrot.lane.b32.xlu0 %v3764, 127
        %v3787 = vpop.permute.xlu0 %3786
        %3788 = vrot.lane.b32.xlu0 %v3767, 127
        %v3789 = vpop.permute.xlu0 %3788
        %3790 = vrot.lane.b32.xlu0 %v3770, 127
        %v3791 = vpop.permute.xlu0 %3790
        %3792 = vrot.lane.b32.xlu0 %v3773, 127
        %v3793 = vpop.permute.xlu0 %3792
        %3794 = vrot.lane.b32.xlu0 %v3776, 127
        %v3795 = vpop.permute.xlu0 %3794
        %3796 = vrot.lane.b32.xlu0 %v3779, 127
        %v3797 = vpop.permute.xlu0 %3796
        %3798 = vrot.lane.b32.xlu0 %v3782, 127
        %v3799 = vpop.permute.xlu0 %3798
        %3800 = vrot.lane.b32.xlu0 %v3785, 127
        %v3801 = vpop.permute.xlu0 %3800
        %v3810 = vadd.f32 %v3665, %v3787
        %v3811 = vadd.f32 %v3666, %v3789
        %v3812 = vadd.f32 %v3667, %v3791
        %v3813 = vadd.f32 %v3668, %v3793
        %v3814 = vadd.f32 %v3669, %v3795
        %v3815 = vadd.f32 %v3670, %v3797
        %v3816 = vadd.f32 %v3671, %v3799
        %v3817 = vadd.f32 %v3672, %v3801
        %s3818 = scalar_lea.vmem %s4, 176
        %v3819 = vld [vmem:[%s3818] sm:$0x1]
        %v3820 = vld [vmem:[%s3818 + $0x1] sm:$0x1]
        %v3821 = vld [vmem:[%s3818 + $0x2] sm:$0x1]
        %v3822 = vld [vmem:[%s3818 + $0x3] sm:$0x1]
        %v3823 = vld [vmem:[%s3818 + $0x4] sm:$0x1]
        %v3824 = vld [vmem:[%s3818 + $0x5] sm:$0x1]
        %v3825 = vld [vmem:[%s3818 + $0x6] sm:$0x1]
        %v3826 = vld [vmem:[%s3818 + $0x7] sm:$0x1]
        %v3835 = vperm.slane %v3819, 0
        %v3836 = vperm.slane %v3820, 0
        %v3837 = vperm.slane %v3821, 0
        %v3838 = vperm.slane %v3822, 0
        %v3839 = vperm.slane %v3823, 0
        %v3840 = vperm.slane %v3824, 0
        %v3841 = vperm.slane %v3825, 0
        %v3842 = vperm.slane %v3826, 0
        %3843 = vset.pattern.permute.xlu0 0
        %3844 = vperm.xlu0 %3843, %v3835
        %v3845 = vpop.permute.xlu0 %3844
        %3847 = vset.pattern.permute.xlu0 0
        %3848 = vperm.xlu0 %3847, %v3836
        %v3849 = vpop.permute.xlu0 %3848
        %3851 = vset.pattern.permute.xlu0 0
        %3852 = vperm.xlu0 %3851, %v3837
        %v3853 = vpop.permute.xlu0 %3852
        %3855 = vset.pattern.permute.xlu0 0
        %3856 = vperm.xlu0 %3855, %v3838
        %v3857 = vpop.permute.xlu0 %3856
        %3859 = vset.pattern.permute.xlu0 0
        %3860 = vperm.xlu0 %3859, %v3839
        %v3861 = vpop.permute.xlu0 %3860
        %3863 = vset.pattern.permute.xlu0 0
        %3864 = vperm.xlu0 %3863, %v3840
        %v3865 = vpop.permute.xlu0 %3864
        %3867 = vset.pattern.permute.xlu0 0
        %3868 = vperm.xlu0 %3867, %v3841
        %v3869 = vpop.permute.xlu0 %3868
        %3871 = vset.pattern.permute.xlu0 0
        %3872 = vperm.xlu0 %3871, %v3842
        %v3873 = vpop.permute.xlu0 %3872
        %v3875 = vmul.f32 %v905, %v3845
        %v3876 = vmul.f32 %v906, %v3845
        %v3877 = vmul.f32 %v907, %v3849
        %v3878 = vmul.f32 %v908, %v3849
        %v3879 = vmul.f32 %v909, %v3853
        %v3880 = vmul.f32 %v910, %v3853
        %v3881 = vmul.f32 %v911, %v3857
        %v3882 = vmul.f32 %v912, %v3857
        %v3883 = vmul.f32 %v913, %v3861
        %v3884 = vmul.f32 %v914, %v3861
        %v3885 = vmul.f32 %v915, %v3865
        %v3886 = vmul.f32 %v916, %v3865
        %v3887 = vmul.f32 %v917, %v3869
        %v3888 = vmul.f32 %v918, %v3869
        %v3889 = vmul.f32 %v919, %v3873
        %v3890 = vmul.f32 %v920, %v3873
        %v3907 = vrot.slane %v3875, 4
        %v3908 = vrot.slane %v3876, 4
        %v3909 = vsel %vm3632, %v3907, %v3908
        %v3910 = vrot.slane %v3877, 4
        %v3911 = vrot.slane %v3878, 4
        %v3912 = vsel %vm3632, %v3910, %v3911
        %v3913 = vrot.slane %v3879, 4
        %v3914 = vrot.slane %v3880, 4
        %v3915 = vsel %vm3632, %v3913, %v3914
        %v3916 = vrot.slane %v3881, 4
        %v3917 = vrot.slane %v3882, 4
        %v3918 = vsel %vm3632, %v3916, %v3917
        %v3919 = vrot.slane %v3883, 4
        %v3920 = vrot.slane %v3884, 4
        %v3921 = vsel %vm3632, %v3919, %v3920
        %v3922 = vrot.slane %v3885, 4
        %v3923 = vrot.slane %v3886, 4
        %v3924 = vsel %vm3632, %v3922, %v3923
        %v3925 = vrot.slane %v3887, 4
        %v3926 = vrot.slane %v3888, 4
        %v3927 = vsel %vm3632, %v3925, %v3926
        %v3928 = vrot.slane %v3889, 4
        %v3929 = vrot.slane %v3890, 4
        %v3930 = vsel %vm3632, %v3928, %v3929
        %3931 = vrot.lane.b32.xlu0 %v3909, 126
        %v3932 = vpop.permute.xlu0 %3931
        %3933 = vrot.lane.b32.xlu0 %v3912, 126
        %v3934 = vpop.permute.xlu0 %3933
        %3935 = vrot.lane.b32.xlu0 %v3915, 126
        %v3936 = vpop.permute.xlu0 %3935
        %3937 = vrot.lane.b32.xlu0 %v3918, 126
        %v3938 = vpop.permute.xlu0 %3937
        %3939 = vrot.lane.b32.xlu0 %v3921, 126
        %v3940 = vpop.permute.xlu0 %3939
        %3941 = vrot.lane.b32.xlu0 %v3924, 126
        %v3942 = vpop.permute.xlu0 %3941
        %3943 = vrot.lane.b32.xlu0 %v3927, 126
        %v3944 = vpop.permute.xlu0 %3943
        %3945 = vrot.lane.b32.xlu0 %v3930, 126
        %v3946 = vpop.permute.xlu0 %3945
        %v3955 = vadd.f32 %v3810, %v3932
        %v3956 = vadd.f32 %v3811, %v3934
        %v3957 = vadd.f32 %v3812, %v3936
        %v3958 = vadd.f32 %v3813, %v3938
        %v3959 = vadd.f32 %v3814, %v3940
        %v3960 = vadd.f32 %v3815, %v3942
        %v3961 = vadd.f32 %v3816, %v3944
        %v3962 = vadd.f32 %v3817, %v3946
        %s3963 = scalar_lea.vmem %s4, 184
        %v3964 = vld [vmem:[%s3963] sm:$0x1]
        %v3965 = vld [vmem:[%s3963 + $0x1] sm:$0x1]
        %v3966 = vld [vmem:[%s3963 + $0x2] sm:$0x1]
        %v3967 = vld [vmem:[%s3963 + $0x3] sm:$0x1]
        %v3968 = vld [vmem:[%s3963 + $0x4] sm:$0x1]
        %v3969 = vld [vmem:[%s3963 + $0x5] sm:$0x1]
        %v3970 = vld [vmem:[%s3963 + $0x6] sm:$0x1]
        %v3971 = vld [vmem:[%s3963 + $0x7] sm:$0x1]
        %v3980 = vperm.slane %v3964, 0
        %v3981 = vperm.slane %v3965, 0
        %v3982 = vperm.slane %v3966, 0
        %v3983 = vperm.slane %v3967, 0
        %v3984 = vperm.slane %v3968, 0
        %v3985 = vperm.slane %v3969, 0
        %v3986 = vperm.slane %v3970, 0
        %v3987 = vperm.slane %v3971, 0
        %3988 = vset.pattern.permute.xlu0 0
        %3989 = vperm.xlu0 %3988, %v3980
        %v3990 = vpop.permute.xlu0 %3989
        %3992 = vset.pattern.permute.xlu0 0
        %3993 = vperm.xlu0 %3992, %v3981
        %v3994 = vpop.permute.xlu0 %3993
        %3996 = vset.pattern.permute.xlu0 0
        %3997 = vperm.xlu0 %3996, %v3982
        %v3998 = vpop.permute.xlu0 %3997
        %4000 = vset.pattern.permute.xlu0 0
        %4001 = vperm.xlu0 %4000, %v3983
        %v4002 = vpop.permute.xlu0 %4001
        %4004 = vset.pattern.permute.xlu0 0
        %4005 = vperm.xlu0 %4004, %v3984
        %v4006 = vpop.permute.xlu0 %4005
        %4008 = vset.pattern.permute.xlu0 0
        %4009 = vperm.xlu0 %4008, %v3985
        %v4010 = vpop.permute.xlu0 %4009
        %4012 = vset.pattern.permute.xlu0 0
        %4013 = vperm.xlu0 %4012, %v3986
        %v4014 = vpop.permute.xlu0 %4013
        %4016 = vset.pattern.permute.xlu0 0
        %4017 = vperm.xlu0 %4016, %v3987
        %v4018 = vpop.permute.xlu0 %4017
        %v4020 = vmul.f32 %v905, %v3990
        %v4021 = vmul.f32 %v906, %v3990
        %v4022 = vmul.f32 %v907, %v3994
        %v4023 = vmul.f32 %v908, %v3994
        %v4024 = vmul.f32 %v909, %v3998
        %v4025 = vmul.f32 %v910, %v3998
        %v4026 = vmul.f32 %v911, %v4002
        %v4027 = vmul.f32 %v912, %v4002
        %v4028 = vmul.f32 %v913, %v4006
        %v4029 = vmul.f32 %v914, %v4006
        %v4030 = vmul.f32 %v915, %v4010
        %v4031 = vmul.f32 %v916, %v4010
        %v4032 = vmul.f32 %v917, %v4014
        %v4033 = vmul.f32 %v918, %v4014
        %v4034 = vmul.f32 %v919, %v4018
        %v4035 = vmul.f32 %v920, %v4018
        %v4052 = vrot.slane %v4020, 4
        %v4053 = vrot.slane %v4021, 4
        %v4054 = vsel %vm3632, %v4052, %v4053
        %v4055 = vrot.slane %v4022, 4
        %v4056 = vrot.slane %v4023, 4
        %v4057 = vsel %vm3632, %v4055, %v4056
        %v4058 = vrot.slane %v4024, 4
        %v4059 = vrot.slane %v4025, 4
        %v4060 = vsel %vm3632, %v4058, %v4059
        %v4061 = vrot.slane %v4026, 4
        %v4062 = vrot.slane %v4027, 4
        %v4063 = vsel %vm3632, %v4061, %v4062
        %v4064 = vrot.slane %v4028, 4
        %v4065 = vrot.slane %v4029, 4
        %v4066 = vsel %vm3632, %v4064, %v4065
        %v4067 = vrot.slane %v4030, 4
        %v4068 = vrot.slane %v4031, 4
        %v4069 = vsel %vm3632, %v4067, %v4068
        %v4070 = vrot.slane %v4032, 4
        %v4071 = vrot.slane %v4033, 4
        %v4072 = vsel %vm3632, %v4070, %v4071
        %v4073 = vrot.slane %v4034, 4
        %v4074 = vrot.slane %v4035, 4
        %v4075 = vsel %vm3632, %v4073, %v4074
        %4076 = vrot.lane.b32.xlu0 %v4054, 125
        %v4077 = vpop.permute.xlu0 %4076
        %4078 = vrot.lane.b32.xlu0 %v4057, 125
        %v4079 = vpop.permute.xlu0 %4078
        %4080 = vrot.lane.b32.xlu0 %v4060, 125
        %v4081 = vpop.permute.xlu0 %4080
        %4082 = vrot.lane.b32.xlu0 %v4063, 125
        %v4083 = vpop.permute.xlu0 %4082
        %4084 = vrot.lane.b32.xlu0 %v4066, 125
        %v4085 = vpop.permute.xlu0 %4084
        %4086 = vrot.lane.b32.xlu0 %v4069, 125
        %v4087 = vpop.permute.xlu0 %4086
        %4088 = vrot.lane.b32.xlu0 %v4072, 125
        %v4089 = vpop.permute.xlu0 %4088
        %4090 = vrot.lane.b32.xlu0 %v4075, 125
        %v4091 = vpop.permute.xlu0 %4090
        %v4100 = vadd.f32 %v3955, %v4077
        %v4101 = vadd.f32 %v3956, %v4079
        %v4102 = vadd.f32 %v3957, %v4081
        %v4103 = vadd.f32 %v3958, %v4083
        %v4104 = vadd.f32 %v3959, %v4085
        %v4105 = vadd.f32 %v3960, %v4087
        %v4106 = vadd.f32 %v3961, %v4089
        %v4107 = vadd.f32 %v3962, %v4091
        %s4108 = scalar_lea.vmem %s4, 192
        %v4109 = vld [vmem:[%s4108] sm:$0x1]
        %v4110 = vld [vmem:[%s4108 + $0x1] sm:$0x1]
        %v4111 = vld [vmem:[%s4108 + $0x2] sm:$0x1]
        %v4112 = vld [vmem:[%s4108 + $0x3] sm:$0x1]
        %v4113 = vld [vmem:[%s4108 + $0x4] sm:$0x1]
        %v4114 = vld [vmem:[%s4108 + $0x5] sm:$0x1]
        %v4115 = vld [vmem:[%s4108 + $0x6] sm:$0x1]
        %v4116 = vld [vmem:[%s4108 + $0x7] sm:$0x1]
        %v4125 = vperm.slane %v4109, 0
        %v4126 = vperm.slane %v4110, 0
        %v4127 = vperm.slane %v4111, 0
        %v4128 = vperm.slane %v4112, 0
        %v4129 = vperm.slane %v4113, 0
        %v4130 = vperm.slane %v4114, 0
        %v4131 = vperm.slane %v4115, 0
        %v4132 = vperm.slane %v4116, 0
        %4133 = vset.pattern.permute.xlu0 0
        %4134 = vperm.xlu0 %4133, %v4125
        %v4135 = vpop.permute.xlu0 %4134
        %4137 = vset.pattern.permute.xlu0 0
        %4138 = vperm.xlu0 %4137, %v4126
        %v4139 = vpop.permute.xlu0 %4138
        %4141 = vset.pattern.permute.xlu0 0
        %4142 = vperm.xlu0 %4141, %v4127
        %v4143 = vpop.permute.xlu0 %4142
        %4145 = vset.pattern.permute.xlu0 0
        %4146 = vperm.xlu0 %4145, %v4128
        %v4147 = vpop.permute.xlu0 %4146
        %4149 = vset.pattern.permute.xlu0 0
        %4150 = vperm.xlu0 %4149, %v4129
        %v4151 = vpop.permute.xlu0 %4150
        %4153 = vset.pattern.permute.xlu0 0
        %4154 = vperm.xlu0 %4153, %v4130
        %v4155 = vpop.permute.xlu0 %4154
        %4157 = vset.pattern.permute.xlu0 0
        %4158 = vperm.xlu0 %4157, %v4131
        %v4159 = vpop.permute.xlu0 %4158
        %4161 = vset.pattern.permute.xlu0 0
        %4162 = vperm.xlu0 %4161, %v4132
        %v4163 = vpop.permute.xlu0 %4162
        %v4165 = vmul.f32 %v905, %v4135
        %v4166 = vmul.f32 %v906, %v4135
        %v4167 = vmul.f32 %v907, %v4139
        %v4168 = vmul.f32 %v908, %v4139
        %v4169 = vmul.f32 %v909, %v4143
        %v4170 = vmul.f32 %v910, %v4143
        %v4171 = vmul.f32 %v911, %v4147
        %v4172 = vmul.f32 %v912, %v4147
        %v4173 = vmul.f32 %v913, %v4151
        %v4174 = vmul.f32 %v914, %v4151
        %v4175 = vmul.f32 %v915, %v4155
        %v4176 = vmul.f32 %v916, %v4155
        %v4177 = vmul.f32 %v917, %v4159
        %v4178 = vmul.f32 %v918, %v4159
        %v4179 = vmul.f32 %v919, %v4163
        %v4180 = vmul.f32 %v920, %v4163
        %v4197 = vrot.slane %v4165, 4
        %v4198 = vrot.slane %v4166, 4
        %v4199 = vsel %vm3632, %v4197, %v4198
        %v4200 = vrot.slane %v4167, 4
        %v4201 = vrot.slane %v4168, 4
        %v4202 = vsel %vm3632, %v4200, %v4201
        %v4203 = vrot.slane %v4169, 4
        %v4204 = vrot.slane %v4170, 4
        %v4205 = vsel %vm3632, %v4203, %v4204
        %v4206 = vrot.slane %v4171, 4
        %v4207 = vrot.slane %v4172, 4
        %v4208 = vsel %vm3632, %v4206, %v4207
        %v4209 = vrot.slane %v4173, 4
        %v4210 = vrot.slane %v4174, 4
        %v4211 = vsel %vm3632, %v4209, %v4210
        %v4212 = vrot.slane %v4175, 4
        %v4213 = vrot.slane %v4176, 4
        %v4214 = vsel %vm3632, %v4212, %v4213
        %v4215 = vrot.slane %v4177, 4
        %v4216 = vrot.slane %v4178, 4
        %v4217 = vsel %vm3632, %v4215, %v4216
        %v4218 = vrot.slane %v4179, 4
        %v4219 = vrot.slane %v4180, 4
        %v4220 = vsel %vm3632, %v4218, %v4219
        %4221 = vrot.lane.b32.xlu0 %v4199, 124
        %v4222 = vpop.permute.xlu0 %4221
        %4223 = vrot.lane.b32.xlu0 %v4202, 124
        %v4224 = vpop.permute.xlu0 %4223
        %4225 = vrot.lane.b32.xlu0 %v4205, 124
        %v4226 = vpop.permute.xlu0 %4225
        %4227 = vrot.lane.b32.xlu0 %v4208, 124
        %v4228 = vpop.permute.xlu0 %4227
        %4229 = vrot.lane.b32.xlu0 %v4211, 124
        %v4230 = vpop.permute.xlu0 %4229
        %4231 = vrot.lane.b32.xlu0 %v4214, 124
        %v4232 = vpop.permute.xlu0 %4231
        %4233 = vrot.lane.b32.xlu0 %v4217, 124
        %v4234 = vpop.permute.xlu0 %4233
        %4235 = vrot.lane.b32.xlu0 %v4220, 124
        %v4236 = vpop.permute.xlu0 %4235
        %v4245 = vadd.f32 %v4100, %v4222
        %v4246 = vadd.f32 %v4101, %v4224
        %v4247 = vadd.f32 %v4102, %v4226
        %v4248 = vadd.f32 %v4103, %v4228
        %v4249 = vadd.f32 %v4104, %v4230
        %v4250 = vadd.f32 %v4105, %v4232
        %v4251 = vadd.f32 %v4106, %v4234
        %v4252 = vadd.f32 %v4107, %v4236
        %v4253 = vld [vmem:[%s5] sm:$0x1]
        %v4254 = vld [vmem:[%s5 + $0x1] sm:$0x1]
        %v4255 = vld [vmem:[%s5 + $0x2] sm:$0x1]
        %v4256 = vld [vmem:[%s5 + $0x3] sm:$0x1]
        %v4257 = vld [vmem:[%s5 + $0x4] sm:$0x1]
        %v4258 = vld [vmem:[%s5 + $0x5] sm:$0x1]
        %v4259 = vld [vmem:[%s5 + $0x6] sm:$0x1]
        %v4260 = vld [vmem:[%s5 + $0x7] sm:$0x1]
        %v4269 = vperm.slane %v4253, 0
        %v4270 = vperm.slane %v4254, 0
        %v4271 = vperm.slane %v4255, 0
        %v4272 = vperm.slane %v4256, 0
        %v4273 = vperm.slane %v4257, 0
        %v4274 = vperm.slane %v4258, 0
        %v4275 = vperm.slane %v4259, 0
        %v4276 = vperm.slane %v4260, 0
        %4277 = vset.pattern.permute.xlu0 0
        %4278 = vperm.xlu0 %4277, %v4269
        %v4279 = vpop.permute.xlu0 %4278
        %4281 = vset.pattern.permute.xlu0 0
        %4282 = vperm.xlu0 %4281, %v4270
        %v4283 = vpop.permute.xlu0 %4282
        %4285 = vset.pattern.permute.xlu0 0
        %4286 = vperm.xlu0 %4285, %v4271
        %v4287 = vpop.permute.xlu0 %4286
        %4289 = vset.pattern.permute.xlu0 0
        %4290 = vperm.xlu0 %4289, %v4272
        %v4291 = vpop.permute.xlu0 %4290
        %4293 = vset.pattern.permute.xlu0 0
        %4294 = vperm.xlu0 %4293, %v4273
        %v4295 = vpop.permute.xlu0 %4294
        %4297 = vset.pattern.permute.xlu0 0
        %4298 = vperm.xlu0 %4297, %v4274
        %v4299 = vpop.permute.xlu0 %4298
        %4301 = vset.pattern.permute.xlu0 0
        %4302 = vperm.xlu0 %4301, %v4275
        %v4303 = vpop.permute.xlu0 %4302
        %4305 = vset.pattern.permute.xlu0 0
        %4306 = vperm.xlu0 %4305, %v4276
        %v4307 = vpop.permute.xlu0 %4306
        %v4309 = vmul.f32 %v4245, %v4279
        %v4310 = vmul.f32 %v4246, %v4283
        %v4311 = vmul.f32 %v4247, %v4287
        %v4312 = vmul.f32 %v4248, %v4291
        %v4313 = vmul.f32 %v4249, %v4295
        %v4314 = vmul.f32 %v4250, %v4299
        %v4315 = vmul.f32 %v4251, %v4303
        %v4316 = vmul.f32 %v4252, %v4307
        %v4317 = vld [vmem:[%s6] sm:$0x1]
        %v4318 = vld [vmem:[%s6 + $0x1] sm:$0x1]
        %v4319 = vld [vmem:[%s6 + $0x2] sm:$0x1]
        %v4320 = vld [vmem:[%s6 + $0x3] sm:$0x1]
        %v4321 = vld [vmem:[%s6 + $0x4] sm:$0x1]
        %v4322 = vld [vmem:[%s6 + $0x5] sm:$0x1]
        %v4323 = vld [vmem:[%s6 + $0x6] sm:$0x1]
        %v4324 = vld [vmem:[%s6 + $0x7] sm:$0x1]
        %v4333 = vperm.slane %v4317, 0
        %v4334 = vperm.slane %v4318, 0
        %v4335 = vperm.slane %v4319, 0
        %v4336 = vperm.slane %v4320, 0
        %v4337 = vperm.slane %v4321, 0
        %v4338 = vperm.slane %v4322, 0
        %v4339 = vperm.slane %v4323, 0
        %v4340 = vperm.slane %v4324, 0
        %4341 = vset.pattern.permute.xlu0 0
        %4342 = vperm.xlu0 %4341, %v4333
        %v4343 = vpop.permute.xlu0 %4342
        %4345 = vset.pattern.permute.xlu0 0
        %4346 = vperm.xlu0 %4345, %v4334
        %v4347 = vpop.permute.xlu0 %4346
        %4349 = vset.pattern.permute.xlu0 0
        %4350 = vperm.xlu0 %4349, %v4335
        %v4351 = vpop.permute.xlu0 %4350
        %4353 = vset.pattern.permute.xlu0 0
        %4354 = vperm.xlu0 %4353, %v4336
        %v4355 = vpop.permute.xlu0 %4354
        %4357 = vset.pattern.permute.xlu0 0
        %4358 = vperm.xlu0 %4357, %v4337
        %v4359 = vpop.permute.xlu0 %4358
        %4361 = vset.pattern.permute.xlu0 0
        %4362 = vperm.xlu0 %4361, %v4338
        %v4363 = vpop.permute.xlu0 %4362
        %4365 = vset.pattern.permute.xlu0 0
        %4366 = vperm.xlu0 %4365, %v4339
        %v4367 = vpop.permute.xlu0 %4366
        %4369 = vset.pattern.permute.xlu0 0
        %4370 = vperm.xlu0 %4369, %v4340
        %v4371 = vpop.permute.xlu0 %4370
        %v4373 = vadd.f32 %v4309, %v4343
        %v4374 = vadd.f32 %v4310, %v4347
        %v4375 = vadd.f32 %v4311, %v4351
        %v4376 = vadd.f32 %v4312, %v4355
        %v4377 = vadd.f32 %v4313, %v4359
        %v4378 = vadd.f32 %v4314, %v4363
        %v4379 = vadd.f32 %v4315, %v4367
        %v4380 = vadd.f32 %v4316, %v4371
        %v4381 = vmax.f32 %v4373, 0.0
        %v4382 = vmax.f32 %v4374, 0.0
        %v4383 = vmax.f32 %v4375, 0.0
        %v4384 = vmax.f32 %v4376, 0.0
        %v4385 = vmax.f32 %v4377, 0.0
        %v4386 = vmax.f32 %v4378, 0.0
        %v4387 = vmax.f32 %v4379, 0.0
        %v4388 = vmax.f32 %v4380, 0.0
        %v4389 = vld [vmem:[%s7] sm:$0x1]
        %v4390 = vld [vmem:[%s7 + $0x1] sm:$0x1]
        %v4391 = vld [vmem:[%s7 + $0x2] sm:$0x1]
        %v4392 = vld [vmem:[%s7 + $0x3] sm:$0x1]
        %v4397 = vperm.slane %v4389, 0
        %v4398 = vperm.slane %v4390, 0
        %v4399 = vperm.slane %v4391, 0
        %v4400 = vperm.slane %v4392, 0
        %4401 = vset.pattern.permute.xlu0 0
        %4402 = vperm.xlu0 %4401, %v4397
        %v4403 = vpop.permute.xlu0 %4402
        %4405 = vset.pattern.permute.xlu0 0
        %4406 = vperm.xlu0 %4405, %v4398
        %v4407 = vpop.permute.xlu0 %4406
        %4409 = vset.pattern.permute.xlu0 0
        %4410 = vperm.xlu0 %4409, %v4399
        %v4411 = vpop.permute.xlu0 %4410
        %4413 = vset.pattern.permute.xlu0 0
        %4414 = vperm.xlu0 %4413, %v4400
        %v4415 = vpop.permute.xlu0 %4414
        %v4417 = vmul.f32 %v4381, %v4403
        %v4418 = vmul.f32 %v4381, %v4407
        %v4419 = vmul.f32 %v4381, %v4411
        %v4420 = vmul.f32 %v4381, %v4415
        %s4421 = scalar_lea.vmem %s7, 4
        %v4422 = vld [vmem:[%s4421] sm:$0x1]
        %v4423 = vld [vmem:[%s4421 + $0x1] sm:$0x1]
        %v4424 = vld [vmem:[%s4421 + $0x2] sm:$0x1]
        %v4425 = vld [vmem:[%s4421 + $0x3] sm:$0x1]
        %v4430 = vperm.slane %v4422, 0
        %v4431 = vperm.slane %v4423, 0
        %v4432 = vperm.slane %v4424, 0
        %v4433 = vperm.slane %v4425, 0
        %4434 = vset.pattern.permute.xlu0 0
        %4435 = vperm.xlu0 %4434, %v4430
        %v4436 = vpop.permute.xlu0 %4435
        %4438 = vset.pattern.permute.xlu0 0
        %4439 = vperm.xlu0 %4438, %v4431
        %v4440 = vpop.permute.xlu0 %4439
        %4442 = vset.pattern.permute.xlu0 0
        %4443 = vperm.xlu0 %4442, %v4432
        %v4444 = vpop.permute.xlu0 %4443
        %4446 = vset.pattern.permute.xlu0 0
        %4447 = vperm.xlu0 %4446, %v4433
        %v4448 = vpop.permute.xlu0 %4447
        %v4450 = vmul.f32 %v4382, %v4436
        %v4451 = vmul.f32 %v4382, %v4440
        %v4452 = vmul.f32 %v4382, %v4444
        %v4453 = vmul.f32 %v4382, %v4448
        %v4454 = vadd.f32 %v4417, %v4450
        %v4455 = vadd.f32 %v4418, %v4451
        %v4456 = vadd.f32 %v4419, %v4452
        %v4457 = vadd.f32 %v4420, %v4453
        %s4458 = scalar_lea.vmem %s7, 8
        %v4459 = vld [vmem:[%s4458] sm:$0x1]
        %v4460 = vld [vmem:[%s4458 + $0x1] sm:$0x1]
        %v4461 = vld [vmem:[%s4458 + $0x2] sm:$0x1]
        %v4462 = vld [vmem:[%s4458 + $0x3] sm:$0x1]
        %v4467 = vperm.slane %v4459, 0
        %v4468 = vperm.slane %v4460, 0
        %v4469 = vperm.slane %v4461, 0
        %v4470 = vperm.slane %v4462, 0
        %4471 = vset.pattern.permute.xlu0 0
        %4472 = vperm.xlu0 %4471, %v4467
        %v4473 = vpop.permute.xlu0 %4472
        %4475 = vset.pattern.permute.xlu0 0
        %4476 = vperm.xlu0 %4475, %v4468
        %v4477 = vpop.permute.xlu0 %4476
        %4479 = vset.pattern.permute.xlu0 0
        %4480 = vperm.xlu0 %4479, %v4469
        %v4481 = vpop.permute.xlu0 %4480
        %4483 = vset.pattern.permute.xlu0 0
        %4484 = vperm.xlu0 %4483, %v4470
        %v4485 = vpop.permute.xlu0 %4484
        %v4487 = vmul.f32 %v4383, %v4473
        %v4488 = vmul.f32 %v4383, %v4477
        %v4489 = vmul.f32 %v4383, %v4481
        %v4490 = vmul.f32 %v4383, %v4485
        %v4491 = vadd.f32 %v4454, %v4487
        %v4492 = vadd.f32 %v4455, %v4488
        %v4493 = vadd.f32 %v4456, %v4489
        %v4494 = vadd.f32 %v4457, %v4490
        %s4495 = scalar_lea.vmem %s7, 12
        %v4496 = vld [vmem:[%s4495] sm:$0x1]
        %v4497 = vld [vmem:[%s4495 + $0x1] sm:$0x1]
        %v4498 = vld [vmem:[%s4495 + $0x2] sm:$0x1]
        %v4499 = vld [vmem:[%s4495 + $0x3] sm:$0x1]
        %v4504 = vperm.slane %v4496, 0
        %v4505 = vperm.slane %v4497, 0
        %v4506 = vperm.slane %v4498, 0
        %v4507 = vperm.slane %v4499, 0
        %4508 = vset.pattern.permute.xlu0 0
        %4509 = vperm.xlu0 %4508, %v4504
        %v4510 = vpop.permute.xlu0 %4509
        %4512 = vset.pattern.permute.xlu0 0
        %4513 = vperm.xlu0 %4512, %v4505
        %v4514 = vpop.permute.xlu0 %4513
        %4516 = vset.pattern.permute.xlu0 0
        %4517 = vperm.xlu0 %4516, %v4506
        %v4518 = vpop.permute.xlu0 %4517
        %4520 = vset.pattern.permute.xlu0 0
        %4521 = vperm.xlu0 %4520, %v4507
        %v4522 = vpop.permute.xlu0 %4521
        %v4524 = vmul.f32 %v4384, %v4510
        %v4525 = vmul.f32 %v4384, %v4514
        %v4526 = vmul.f32 %v4384, %v4518
        %v4527 = vmul.f32 %v4384, %v4522
        %v4528 = vadd.f32 %v4491, %v4524
        %v4529 = vadd.f32 %v4492, %v4525
        %v4530 = vadd.f32 %v4493, %v4526
        %v4531 = vadd.f32 %v4494, %v4527
        %s4532 = scalar_lea.vmem %s7, 16
        %v4533 = vld [vmem:[%s4532] sm:$0x1]
        %v4534 = vld [vmem:[%s4532 + $0x1] sm:$0x1]
        %v4535 = vld [vmem:[%s4532 + $0x2] sm:$0x1]
        %v4536 = vld [vmem:[%s4532 + $0x3] sm:$0x1]
        %v4541 = vperm.slane %v4533, 0
        %v4542 = vperm.slane %v4534, 0
        %v4543 = vperm.slane %v4535, 0
        %v4544 = vperm.slane %v4536, 0
        %4545 = vset.pattern.permute.xlu0 0
        %4546 = vperm.xlu0 %4545, %v4541
        %v4547 = vpop.permute.xlu0 %4546
        %4549 = vset.pattern.permute.xlu0 0
        %4550 = vperm.xlu0 %4549, %v4542
        %v4551 = vpop.permute.xlu0 %4550
        %4553 = vset.pattern.permute.xlu0 0
        %4554 = vperm.xlu0 %4553, %v4543
        %v4555 = vpop.permute.xlu0 %4554
        %4557 = vset.pattern.permute.xlu0 0
        %4558 = vperm.xlu0 %4557, %v4544
        %v4559 = vpop.permute.xlu0 %4558
        %v4561 = vmul.f32 %v4385, %v4547
        %v4562 = vmul.f32 %v4385, %v4551
        %v4563 = vmul.f32 %v4385, %v4555
        %v4564 = vmul.f32 %v4385, %v4559
        %v4565 = vadd.f32 %v4528, %v4561
        %v4566 = vadd.f32 %v4529, %v4562
        %v4567 = vadd.f32 %v4530, %v4563
        %v4568 = vadd.f32 %v4531, %v4564
        %s4569 = scalar_lea.vmem %s7, 20
        %v4570 = vld [vmem:[%s4569] sm:$0x1]
        %v4571 = vld [vmem:[%s4569 + $0x1] sm:$0x1]
        %v4572 = vld [vmem:[%s4569 + $0x2] sm:$0x1]
        %v4573 = vld [vmem:[%s4569 + $0x3] sm:$0x1]
        %v4578 = vperm.slane %v4570, 0
        %v4579 = vperm.slane %v4571, 0
        %v4580 = vperm.slane %v4572, 0
        %v4581 = vperm.slane %v4573, 0
        %4582 = vset.pattern.permute.xlu0 0
        %4583 = vperm.xlu0 %4582, %v4578
        %v4584 = vpop.permute.xlu0 %4583
        %4586 = vset.pattern.permute.xlu0 0
        %4587 = vperm.xlu0 %4586, %v4579
        %v4588 = vpop.permute.xlu0 %4587
        %4590 = vset.pattern.permute.xlu0 0
        %4591 = vperm.xlu0 %4590, %v4580
        %v4592 = vpop.permute.xlu0 %4591
        %4594 = vset.pattern.permute.xlu0 0
        %4595 = vperm.xlu0 %4594, %v4581
        %v4596 = vpop.permute.xlu0 %4595
        %v4598 = vmul.f32 %v4386, %v4584
        %v4599 = vmul.f32 %v4386, %v4588
        %v4600 = vmul.f32 %v4386, %v4592
        %v4601 = vmul.f32 %v4386, %v4596
        %v4602 = vadd.f32 %v4565, %v4598
        %v4603 = vadd.f32 %v4566, %v4599
        %v4604 = vadd.f32 %v4567, %v4600
        %v4605 = vadd.f32 %v4568, %v4601
        %s4606 = scalar_lea.vmem %s7, 24
        %v4607 = vld [vmem:[%s4606] sm:$0x1]
        %v4608 = vld [vmem:[%s4606 + $0x1] sm:$0x1]
        %v4609 = vld [vmem:[%s4606 + $0x2] sm:$0x1]
        %v4610 = vld [vmem:[%s4606 + $0x3] sm:$0x1]
        %v4615 = vperm.slane %v4607, 0
        %v4616 = vperm.slane %v4608, 0
        %v4617 = vperm.slane %v4609, 0
        %v4618 = vperm.slane %v4610, 0
        %4619 = vset.pattern.permute.xlu0 0
        %4620 = vperm.xlu0 %4619, %v4615
        %v4621 = vpop.permute.xlu0 %4620
        %4623 = vset.pattern.permute.xlu0 0
        %4624 = vperm.xlu0 %4623, %v4616
        %v4625 = vpop.permute.xlu0 %4624
        %4627 = vset.pattern.permute.xlu0 0
        %4628 = vperm.xlu0 %4627, %v4617
        %v4629 = vpop.permute.xlu0 %4628
        %4631 = vset.pattern.permute.xlu0 0
        %4632 = vperm.xlu0 %4631, %v4618
        %v4633 = vpop.permute.xlu0 %4632
        %v4635 = vmul.f32 %v4387, %v4621
        %v4636 = vmul.f32 %v4387, %v4625
        %v4637 = vmul.f32 %v4387, %v4629
        %v4638 = vmul.f32 %v4387, %v4633
        %v4639 = vadd.f32 %v4602, %v4635
        %v4640 = vadd.f32 %v4603, %v4636
        %v4641 = vadd.f32 %v4604, %v4637
        %v4642 = vadd.f32 %v4605, %v4638
        %s4643 = scalar_lea.vmem %s7, 28
        %v4644 = vld [vmem:[%s4643] sm:$0x1]
        %v4645 = vld [vmem:[%s4643 + $0x1] sm:$0x1]
        %v4646 = vld [vmem:[%s4643 + $0x2] sm:$0x1]
        %v4647 = vld [vmem:[%s4643 + $0x3] sm:$0x1]
        %v4652 = vperm.slane %v4644, 0
        %v4653 = vperm.slane %v4645, 0
        %v4654 = vperm.slane %v4646, 0
        %v4655 = vperm.slane %v4647, 0
        %4656 = vset.pattern.permute.xlu0 0
        %4657 = vperm.xlu0 %4656, %v4652
        %v4658 = vpop.permute.xlu0 %4657
        %4660 = vset.pattern.permute.xlu0 0
        %4661 = vperm.xlu0 %4660, %v4653
        %v4662 = vpop.permute.xlu0 %4661
        %4664 = vset.pattern.permute.xlu0 0
        %4665 = vperm.xlu0 %4664, %v4654
        %v4666 = vpop.permute.xlu0 %4665
        %4668 = vset.pattern.permute.xlu0 0
        %4669 = vperm.xlu0 %4668, %v4655
        %v4670 = vpop.permute.xlu0 %4669
        %v4672 = vmul.f32 %v4388, %v4658
        %v4673 = vmul.f32 %v4388, %v4662
        %v4674 = vmul.f32 %v4388, %v4666
        %v4675 = vmul.f32 %v4388, %v4670
        %v4676 = vadd.f32 %v4639, %v4672
        %v4677 = vadd.f32 %v4640, %v4673
        %v4678 = vadd.f32 %v4641, %v4674
        %v4679 = vadd.f32 %v4642, %v4675
        %v4680 = vld [vmem:[%s8] sm:$0x1]
        %v4681 = vld [vmem:[%s8 + $0x1] sm:$0x1]
        %v4682 = vld [vmem:[%s8 + $0x2] sm:$0x1]
        %v4683 = vld [vmem:[%s8 + $0x3] sm:$0x1]
        %v4688 = vperm.slane %v4680, 0
        %v4689 = vperm.slane %v4681, 0
        %v4690 = vperm.slane %v4682, 0
        %v4691 = vperm.slane %v4683, 0
        %4692 = vset.pattern.permute.xlu0 0
        %4693 = vperm.xlu0 %4692, %v4688
        %v4694 = vpop.permute.xlu0 %4693
        %4696 = vset.pattern.permute.xlu0 0
        %4697 = vperm.xlu0 %4696, %v4689
        %v4698 = vpop.permute.xlu0 %4697
        %4700 = vset.pattern.permute.xlu0 0
        %4701 = vperm.xlu0 %4700, %v4690
        %v4702 = vpop.permute.xlu0 %4701
        %4704 = vset.pattern.permute.xlu0 0
        %4705 = vperm.xlu0 %4704, %v4691
        %v4706 = vpop.permute.xlu0 %4705
        %v4708 = vmul.f32 %v4676, %v4694
        %v4709 = vmul.f32 %v4677, %v4698
        %v4710 = vmul.f32 %v4678, %v4702
        %v4711 = vmul.f32 %v4679, %v4706
        %v4712 = vld [vmem:[%s9] sm:$0x1]
        %v4713 = vld [vmem:[%s9 + $0x1] sm:$0x1]
        %v4714 = vld [vmem:[%s9 + $0x2] sm:$0x1]
        %v4715 = vld [vmem:[%s9 + $0x3] sm:$0x1]
        %v4720 = vperm.slane %v4712, 0
        %v4721 = vperm.slane %v4713, 0
        %v4722 = vperm.slane %v4714, 0
        %v4723 = vperm.slane %v4715, 0
        %4724 = vset.pattern.permute.xlu0 0
        %4725 = vperm.xlu0 %4724, %v4720
        %v4726 = vpop.permute.xlu0 %4725
        %4728 = vset.pattern.permute.xlu0 0
        %4729 = vperm.xlu0 %4728, %v4721
        %v4730 = vpop.permute.xlu0 %4729
        %4732 = vset.pattern.permute.xlu0 0
        %4733 = vperm.xlu0 %4732, %v4722
        %v4734 = vpop.permute.xlu0 %4733
        %4736 = vset.pattern.permute.xlu0 0
        %4737 = vperm.xlu0 %4736, %v4723
        %v4738 = vpop.permute.xlu0 %4737
        %v4740 = vadd.f32 %v4708, %v4726
        %v4741 = vadd.f32 %v4709, %v4730
        %v4742 = vadd.f32 %v4710, %v4734
        %v4743 = vadd.f32 %v4711, %v4738
        %s4744 = sadd.s32 %s372, 2
        %s4745 = scalar_lea.vmem %s371, %s4744
        %v4746 = vld [vmem:[%s4745] sm:$0xff]
        %v4747 = vld [vmem:[%s4745 + $0x18] sm:$0xff]
        %v4748 = vld [vmem:[%s4745 + $0x30] sm:$0xff]
        %v4749 = vld [vmem:[%s4745 + $0x48] sm:$0xff]
        %4754 = vrot.lane.b32.xlu0 %v4746, 126
        %v4755 = vpop.permute.xlu0 %4754
        %4756 = vrot.lane.b32.xlu0 %v4747, 126
        %v4757 = vpop.permute.xlu0 %4756
        %4758 = vrot.lane.b32.xlu0 %v4748, 126
        %v4759 = vpop.permute.xlu0 %4758
        %4760 = vrot.lane.b32.xlu0 %v4749, 126
        %v4761 = vpop.permute.xlu0 %4760
        %v4766 = vadd.f32 %v4740, %v4755
        %v4767 = vadd.f32 %v4741, %v4757
        %v4768 = vadd.f32 %v4742, %v4759
        %v4769 = vadd.f32 %v4743, %v4761
        %v4774 = vrot.slane %v4767, 7
        %vm4775 = vcmask 1041409
        %v4776 = vsel %vm4775, %v4774, %v4766
        %v4777 = vrot.slane %v4768, 6
        %vm4778 = vcmask 1042434
        %v4779 = vsel %vm4778, %v4777, %v4776
        %v4780 = vrot.slane %v4769, 5
        %vm4781 = vcmask 1043459
        %v4782 = vsel %vm4781, %v4780, %v4779
        %vm4784 = vcmask 125952
        %4785 = vst.msk [vmem:[%s366] sm:$0xf] %vm4784, %v4782
        %v4786 = vsel %vm4778, %v4774, %v4766
        %v4787 = vsel %vm4781, %v4777, %v4786
        %vm4788 = vcmask 1044484
        %v4789 = vsel %vm4788, %v4780, %v4787
        %4790 = vrot.lane.b32.xlu0 %v4789, 16
        %v4791 = vpop.permute.xlu0 %4790
        %vm4793 = vcmask 258177
        %4794 = vst.msk [vmem:[%s366 - $0x1] sm:$0x1e] %vm4793, %v4791
        %v4795 = vsel %vm4781, %v4774, %v4766
        %v4796 = vsel %vm4788, %v4777, %v4795
        %vm4797 = vcmask 1045509
        %v4798 = vsel %vm4797, %v4780, %v4796
        %4799 = vrot.lane.b32.xlu0 %v4798, 32
        %v4800 = vpop.permute.xlu0 %4799
        %vm4802 = vcmask 390402
        %4803 = vst.msk [vmem:[%s366 - $0x2] sm:$0x3c] %vm4802, %v4800
        %v4804 = vsel %vm4788, %v4774, %v4766
        %v4805 = vsel %vm4797, %v4777, %v4804
        %vm4806 = vcmask 1046534
        %v4807 = vsel %vm4806, %v4780, %v4805
        %4808 = vrot.lane.b32.xlu0 %v4807, 48
        %v4809 = vpop.permute.xlu0 %4808
        %vm4811 = vcmask 522627
        %4812 = vst.msk [vmem:[%s366 - $0x3] sm:$0x78] %vm4811, %v4809
        %v4813 = vsel %vm4797, %v4774, %v4766
        %v4814 = vsel %vm4806, %v4777, %v4813
        %vm4815 = vcmask 1047559
        %v4816 = vsel %vm4815, %v4780, %v4814
        %4817 = vrot.lane.b32.xlu0 %v4816, 64
        %v4818 = vpop.permute.xlu0 %4817
        %vm4820 = vcmask 654852
        %4821 = vst.msk [vmem:[%s366 - $0x4] sm:$0xf0] %vm4820, %v4818
        %v4822 = vsel %vm4806, %v4774, %v4766
        %v4823 = vsel %vm4815, %v4777, %v4822
        %4824 = vrot.lane.b32.xlu0 %v4823, 80
        %v4825 = vpop.permute.xlu0 %4824
        %4826 = vrot.lane.b32.xlu0 %v4780, 80
        %v4827 = vpop.permute.xlu0 %4826
        %vm4830 = vcmask 786053
        %4831 = vst.msk [vmem:[%s366 - $0x5] sm:$0xe0] %vm4830, %v4825
        %vm4832 = vcmask 778880
        %4833 = vst.msk [vmem:[%s366 + $0x3] sm:$0x1] %vm4832, %v4827
        %v4834 = vsel %vm4815, %v4774, %v4766
        %v4835 = vsel %vm4775, %v4780, %v4777
        %4836 = vrot.lane.b32.xlu0 %v4834, 96
        %v4837 = vpop.permute.xlu0 %4836
        %4838 = vrot.lane.b32.xlu0 %v4835, 96
        %v4839 = vpop.permute.xlu0 %4838
        %vm4842 = vcmask 917254
        %4843 = vst.msk [vmem:[%s366 - $0x6] sm:$0xc0] %vm4842, %v4837
        %vm4844 = vcmask 911104
        %4845 = vst.msk [vmem:[%s366 + $0x2] sm:$0x3] %vm4844, %v4839
        %v4846 = vsel %vm4775, %v4777, %v4774
        %v4847 = vsel %vm4778, %v4780, %v4846
        %4848 = vrot.lane.b32.xlu0 %v4766, 112
        %v4849 = vpop.permute.xlu0 %4848
        %4850 = vrot.lane.b32.xlu0 %v4847, 112
        %v4851 = vpop.permute.xlu0 %4850
        %vm4854 = vcmask 1048455
        %4855 = vst.msk [vmem:[%s366 - $0x7] sm:$0x80] %vm4854, %v4849
        %vm4856 = vcmask 1043328
        %4857 = vst.msk [vmem:[%s366 + $0x1] sm:$0x7] %vm4856, %v4851
        %s4858 = sand.u32 %s261, 1
        %s4859 = scalar_lea.sflag [#allocation3], %s4858
        %s4860 = sand.u32 %s261, 1
        %s4861 = smul.addr %s4860, 4
        %s4862 = scalar_lea.vmem [#allocation2], %s4861
        // Predicated region
        $region61: #{tpu_custom_call.1} parent=59 // pred_check
          %p4863 = pneg %p271
        $region62: #{tpu_custom_call.1} parent=59 // pred_check_branch
          %4865 = sbr.rel (%p4863) target = $region64
        $region63: #{tpu_custom_call.1} parent=59 // pred_region
          %4867 = vsyncadd %s4859, 0
          %s4868 = smul.addr %s28, 2
          %s4869 = sadd.s32 %s29, %s4868
          %s4870 = smul.addr %s4869, 4
          %s4871 = scalar_lea.hbm %s10, %s4870
          %s4873 = sshll.u32 %s4862, 4
          %s4874 = int_to_ptr.vmem [resolvable:$true] %s4873
          %s4875 = sshll.u32 %s4871, 4
          %s4876 = int_to_ptr.hbm [resolvable:$true] %s4875
          %4878 = dma.vmem_to_hbm [thread:$0]  %s4874, 64, %s4876, %s4859
        $region64: #{tpu_custom_call.1} parent=59 // pred_fallthru
          _
      $region60: #{tpu_custom_call.1} parent=5 // pred_fallthru
        _
      %p4879 = scmp.le.s32.totalorder 2, %s19
      // Predicated region
      $region65: #{tpu_custom_call.1} parent=5 // pred_check
        %p4880 = pneg %p4879
      $region66: #{tpu_custom_call.1} parent=5 // pred_check_branch
        %4882 = sbr.rel (%p4880) target = $region68
      $region67: #{tpu_custom_call.1} parent=5 // pred_region
        %s4883 = ssub.s32 %s19, 2
        // Predicated region
        $region69: #{tpu_custom_call.1} parent=67 // pred_check
          %p4884 = pneg %p277
        $region70: #{tpu_custom_call.1} parent=67 // pred_check_branch
          %4886 = sbr.rel (%p4884) target = $region72
        $region71: #{tpu_custom_call.1} parent=67 // pred_region
          %s4887 = sand.u32 %s262, 1
          %s4888 = scalar_lea.sflag [#allocation3], %s4887
          %s4889 = sand.u32 %s262, 1
          %s4890 = smul.addr %s4889, 4
          %s4891 = scalar_lea.vmem [#allocation2], %s4890
          %4893 = dma.done %s4888, 64
        $region72: #{tpu_custom_call.1} parent=67 // pred_fallthru
          _
      $region68: #{tpu_custom_call.1} parent=5 // pred_fallthru
        _
    $region6: #{tpu_custom_call.1} parent=1 // loop_footer
      %s23 = sadd.s32 1, %s19
    $region7: #{tpu_custom_call.1} parent=1 // loop_footer_branch
      %18 = sbr.rel target = $region3
    $region8: #{tpu_custom_call.1} parent=1 // loop_exit
      _
    %4894 = vsyncpa [#allocation3], 1
    %s4895 = scalar_lea.sflag [#allocation3], 1
    %4896 = vsyncpa %s4895, 1

</llo_original>
